<compile_context>
chip_gen: v5e
topology: v5e:2x2
jax: 0.10.0
libtpu: 0.0.40
codegen_flags: <defaults>
</compile_context>

<pallas_src>
import functools

import jax
import jax.numpy as jnp
from jax.experimental import pallas as pl
from jax.experimental.pallas import tpu as pltpu

IN_DIM = 3
HID = 256
OUT_DIM = 1


def _round_up(x, m):
    return ((x + m - 1) // m) * m


def _mlp_kernel(x_ref, w1_ref, b1_ref, w2_ref, b2_ref, w3_ref, b3_ref, o_ref,
                *, mxu_dtype):
    # x_ref: (IN_DIM, tm)  -- features in sublanes, batch in lanes.
    x = x_ref[...]
    w1 = w1_ref[...]                                   # (HID, IN_DIM)

    # c1: Linear(3, 256) as IN_DIM rank-1 VPU updates. A K=3 MXU dot would be
    # ~98% empty; VALU slots are otherwise idle here.
    h = w1[:, 0:1] * x[0:1, :]
    for k in range(1, IN_DIM):
        h = h + w1[:, k:k + 1] * x[k:k + 1, :]
    h = jnp.maximum(h + b1_ref[...], 0.0)              # (HID, tm)

    # c2: Linear(256, 256) -- the only real MXU work. Optionally bf16 operands
    # on v6e/v7x (f32 accumulation preserved).
    h = jnp.dot(w2_ref[...].astype(mxu_dtype), h.astype(mxu_dtype),
                preferred_element_type=jnp.float32)
    h = jnp.maximum(h + b2_ref[...], 0.0)              # (HID, tm)

    # c3: Linear(256, 1) as VPU multiply + cross-sublane reduction (XLU); a
    # (tm,256)x(256,1) MXU dot would drain a 1-lane result FIFO for nothing.
    o = jnp.sum(h * w3_ref[...], axis=0, keepdims=True) + b3_ref[...]
    o_ref[...] = o.astype(o_ref.dtype)                 # (1, tm) lane-dense store


def teste2_forward(x, w1, b1, w2, b2, w3, b3, *, tm=512, mxu_dtype=jnp.float32):
    """Forward pass of Teste2.

    Weights are in the PyTorch nn.Linear layout: w = (out_features, in_features),
    b = (out_features,). Returns (N, 1) float32.
    """
    N = x.shape[0]
    assert x.shape[1] == IN_DIM

    # ---- tile-size selection -------------------------------------------------
    tm = max(128, _round_up(int(tm), 128))
    n_aligned = _round_up(max(N, 1), 128)
    tm = min(tm, n_aligned)                       # don't over-pad tiny batches
    if n_aligned // tm < 2 and n_aligned >= 256:  # keep >=2 grid steps for v7x megacore
        tm = _round_up(pl.cdiv(n_aligned, 2), 128)
    n_pad = _round_up(N, tm)
    grid = (n_pad // tm,)

    # ---- layout plumbing (batch -> lane dim, biases as columns) ---------------
    x_t = jnp.pad(x.astype(jnp.float32), ((0, n_pad - N), (0, 0))).T  # (IN_DIM, n_pad)
    b1c = b1.reshape(HID, 1).astype(jnp.float32)
    b2c = b2.reshape(HID, 1).astype(jnp.float32)
    w3c = w3.reshape(HID, 1).astype(jnp.float32)   # (1, HID) -> (HID, 1) column
    b3c = b3.reshape(1, 1).astype(jnp.float32)
    w1f = w1.astype(jnp.float32)
    w2f = w2.astype(jnp.float32)

    # Constant weights/biases: whole-array, VMEM-resident, not pipelined
    # (no useless double-buffering of constants).
    def vmem_resident():
        return pl.BlockSpec(memory_space=pltpu.MemorySpace.VMEM)

    # Rough per-step VMEM budget; only raise the scoped limit when a very large
    # tm actually needs it (v5e's default scoped limit is 16 MiB).
    weights_bytes = sum(int(a.size) * a.dtype.itemsize
                        for a in (w1f, b1c, w2f, b2c, w3c, b3c))
    act_bytes = 6 * HID * tm * 4            # activations + elementwise temporaries
    io_bytes = 2 * (IN_DIM + 1) * tm * 4    # double-buffered x / out tiles
    est = weights_bytes + act_bytes + io_bytes
    vmem_limit = None
    if est > 12 * 1024 * 1024:
        vmem_limit = int(min(2 * est, 100 * 1024 * 1024))

    kernel = functools.partial(_mlp_kernel, mxu_dtype=mxu_dtype)

    out = pl.pallas_call(
        kernel,
        out_shape=jax.ShapeDtypeStruct((1, n_pad), jnp.float32),
        grid=grid,
        in_specs=[
            pl.BlockSpec((IN_DIM, tm), lambda i: (0, i)),  # x tile (lane-dense)
            vmem_resident(),   # W1 (HID, IN_DIM)
            vmem_resident(),   # b1 (HID, 1)
            vmem_resident(),   # W2 (HID, HID)
            vmem_resident(),   # b2 (HID, 1)
            vmem_resident(),   # W3^T (HID, 1)
            vmem_resident(),   # b3 (1, 1)
        ],
        out_specs=pl.BlockSpec((1, tm), lambda i: (0, i)),
        compiler_params=pltpu.CompilerParams(
            dimension_semantics=("parallel",),
            vmem_limit_bytes=vmem_limit,
        ),
    )(x_t, w1f, b1c, w2f, b2c, w3c, b3c)

    return out[0, :N].reshape(N, OUT_DIM)


def init_linear(key, fan_in, fan_out):
    # torch.nn.Linear default init: U(-1/sqrt(fan_in), 1/sqrt(fan_in)),
    # weight shape (out_features, in_features), bias shape (out_features,).
    kw, kb = jax.random.split(key)
    bound = 1.0 / jnp.sqrt(jnp.float32(fan_in))
    w = jax.random.uniform(kw, (fan_out, fan_in), jnp.float32, -bound, bound)
    b = jax.random.uniform(kb, (fan_out,), jnp.float32, -bound, bound)
    return w, b


if __name__ == "__main__":
    key = jax.random.PRNGKey(0)
    kx, k1, k2, k3 = jax.random.split(key, 4)

    N = 1000  # deliberately not a multiple of the tile -> exercises the padded tail
    x = jax.random.normal(kx, (N, IN_DIM), jnp.float32)

    w1, b1 = init_linear(k1, IN_DIM, HID)
    w2, b2 = init_linear(k2, HID, HID)
    w3, b3 = init_linear(k3, HID, OUT_DIM)

    out = teste2_forward(x, w1, b1, w2, b2, w3, b3)
    out = jax.block_until_ready(out)

    # Pure-JAX reference of the same (PyTorch-convention) forward pass.
    ref = jnp.maximum(x @ w1.T + b1, 0.0)
    ref = jnp.maximum(ref @ w2.T + b2, 0.0)
    ref = ref @ w3.T + b3

    assert out.shape == (N, OUT_DIM)
    assert jnp.allclose(out, ref, atol=1e-4, rtol=1e-4)

    print("KERNEL_OK")
</pallas_src>

<mosaic_0001>
module attributes {stable_mosaic.version = 11 : i64} {
  func.func @_mlp_kernel(%arg0: i32, %arg1: memref<3x512xf32, #tpu.memory_space<vmem>>, %arg2: memref<256x3xf32, #tpu.memory_space<vmem>>, %arg3: memref<256x1xf32, #tpu.memory_space<vmem>>, %arg4: memref<256x256xf32, #tpu.memory_space<vmem>>, %arg5: memref<256x1xf32, #tpu.memory_space<vmem>>, %arg6: memref<256x1xf32, #tpu.memory_space<vmem>>, %arg7: memref<1x1xf32, #tpu.memory_space<vmem>>, %arg8: memref<1x512xf32, #tpu.memory_space<vmem>>) attributes {dimension_semantics = [#tpu.dimension_semantics<parallel>], iteration_bounds = array<i64: 2>, scalar_prefetch = 0 : i64, scratch_operands = 0 : i64, tpu.core_type = #tpu.core_type<tc>, window_params = [{transform_indices = @transform_0, window_bounds = array<i64: 3, 512>}, {pipeline_mode = #tpu.pipeline_mode<synchronous>, transform_indices = @transform_1, window_bounds = array<i64: 256, 3>}, {pipeline_mode = #tpu.pipeline_mode<synchronous>, transform_indices = @transform_2, window_bounds = array<i64: 256, 1>}, {pipeline_mode = #tpu.pipeline_mode<synchronous>, transform_indices = @transform_3, window_bounds = array<i64: 256, 256>}, {pipeline_mode = #tpu.pipeline_mode<synchronous>, transform_indices = @transform_4, window_bounds = array<i64: 256, 1>}, {pipeline_mode = #tpu.pipeline_mode<synchronous>, transform_indices = @transform_5, window_bounds = array<i64: 256, 1>}, {pipeline_mode = #tpu.pipeline_mode<synchronous>, transform_indices = @transform_6, window_bounds = array<i64: 1, 1>}, {transform_indices = @transform_7, window_bounds = array<i64: 1, 512>}]} {
    %c0 = arith.constant 0 : index
    %c0_0 = arith.constant 0 : index
    %0 = vector.load %arg1[%c0, %c0_0] : memref<3x512xf32, #tpu.memory_space<vmem>>, vector<3x512xf32>
    %c0_1 = arith.constant 0 : index
    %c0_2 = arith.constant 0 : index
    %1 = vector.load %arg2[%c0_1, %c0_2] : memref<256x3xf32, #tpu.memory_space<vmem>>, vector<256x3xf32>
    %2 = vector.extract_strided_slice %1 {offsets = [0, 0], sizes = [256, 1], strides = [1, 1]} : vector<256x3xf32> to vector<256x1xf32>
    %3 = vector.extract_strided_slice %0 {offsets = [0, 0], sizes = [1, 512], strides = [1, 1]} : vector<3x512xf32> to vector<1x512xf32>
    %4 = vector.broadcast %2 : vector<256x1xf32> to vector<256x512xf32>
    %5 = vector.broadcast %3 : vector<1x512xf32> to vector<256x512xf32>
    %6 = arith.mulf %4, %5 : vector<256x512xf32>
    %7 = vector.extract_strided_slice %1 {offsets = [0, 1], sizes = [256, 1], strides = [1, 1]} : vector<256x3xf32> to vector<256x1xf32>
    %8 = vector.extract_strided_slice %0 {offsets = [1, 0], sizes = [1, 512], strides = [1, 1]} : vector<3x512xf32> to vector<1x512xf32>
    %9 = vector.broadcast %7 : vector<256x1xf32> to vector<256x512xf32>
    %10 = vector.broadcast %8 : vector<1x512xf32> to vector<256x512xf32>
    %11 = arith.mulf %9, %10 : vector<256x512xf32>
    %12 = arith.addf %6, %11 : vector<256x512xf32>
    %13 = vector.extract_strided_slice %1 {offsets = [0, 2], sizes = [256, 1], strides = [1, 1]} : vector<256x3xf32> to vector<256x1xf32>
    %14 = vector.extract_strided_slice %0 {offsets = [2, 0], sizes = [1, 512], strides = [1, 1]} : vector<3x512xf32> to vector<1x512xf32>
    %15 = vector.broadcast %13 : vector<256x1xf32> to vector<256x512xf32>
    %16 = vector.broadcast %14 : vector<1x512xf32> to vector<256x512xf32>
    %17 = arith.mulf %15, %16 : vector<256x512xf32>
    %18 = arith.addf %12, %17 : vector<256x512xf32>
    %c0_3 = arith.constant 0 : index
    %c0_4 = arith.constant 0 : index
    %19 = vector.load %arg3[%c0_3, %c0_4] : memref<256x1xf32, #tpu.memory_space<vmem>>, vector<256x1xf32>
    %20 = vector.broadcast %19 : vector<256x1xf32> to vector<256x512xf32>
    %21 = arith.addf %18, %20 : vector<256x512xf32>
    %cst = arith.constant 0.000000e+00 : f32
    %22 = vector.broadcast %cst : f32 to vector<256x512xf32>
    %23 = arith.maximumf %21, %22 : vector<256x512xf32>
    %c0_5 = arith.constant 0 : index
    %c0_6 = arith.constant 0 : index
    %24 = vector.load %arg4[%c0_5, %c0_6] : memref<256x256xf32, #tpu.memory_space<vmem>>, vector<256x256xf32>
    %cst_7 = arith.constant dense<0.000000e+00> : vector<256x512xf32>
    %25 = tpu.matmul %24, %23, %cst_7 {dimension_numbers = #tpu.dot_dimension_numbers<[1], [0], [0], [1], [0, 0, 1, 1], [], []>} : vector<256x256xf32>, vector<256x512xf32>, vector<256x512xf32> -> vector<256x512xf32>
    %c0_8 = arith.constant 0 : index
    %c0_9 = arith.constant 0 : index
    %26 = vector.load %arg5[%c0_8, %c0_9] : memref<256x1xf32, #tpu.memory_space<vmem>>, vector<256x1xf32>
    %27 = vector.broadcast %26 : vector<256x1xf32> to vector<256x512xf32>
    %28 = arith.addf %25, %27 : vector<256x512xf32>
    %cst_10 = arith.constant 0.000000e+00 : f32
    %29 = vector.broadcast %cst_10 : f32 to vector<256x512xf32>
    %30 = arith.maximumf %28, %29 : vector<256x512xf32>
    %c0_11 = arith.constant 0 : index
    %c0_12 = arith.constant 0 : index
    %31 = vector.load %arg6[%c0_11, %c0_12] : memref<256x1xf32, #tpu.memory_space<vmem>>, vector<256x1xf32>
    %32 = vector.broadcast %31 : vector<256x1xf32> to vector<256x512xf32>
    %33 = arith.mulf %30, %32 : vector<256x512xf32>
    %cst_13 = arith.constant dense<0.000000e+00> : vector<512xf32>
    %34 = vector.multi_reduction <add>, %33, %cst_13 [0] : vector<256x512xf32> to vector<512xf32>
    %35 = vector.shape_cast %34 : vector<512xf32> to vector<1x512xf32>
    %c0_14 = arith.constant 0 : index
    %c0_15 = arith.constant 0 : index
    %36 = vector.load %arg7[%c0_14, %c0_15] : memref<1x1xf32, #tpu.memory_space<vmem>>, vector<1x1xf32>
    %37 = vector.broadcast %36 : vector<1x1xf32> to vector<1x512xf32>
    %38 = arith.addf %35, %37 : vector<1x512xf32>
    %c0_16 = arith.constant 0 : index
    %c0_17 = arith.constant 0 : index
    %39 = vector.load %arg8[%c0_16, %c0_17] : memref<1x512xf32, #tpu.memory_space<vmem>>, vector<1x512xf32>
    tpu.vector_store %arg8[%c0_16, %c0_17], %38 {strides = array<i32>} : memref<1x512xf32, #tpu.memory_space<vmem>>, vector<1x512xf32>,
    return
  }
  func.func @transform_0(%arg0: i32) -> (i32, i32) {
    %c0_i32 = arith.constant 0 : i32
    %c0_i32_0 = arith.constant 0 : i32
    return %c0_i32, %arg0 : i32, i32
  }
  func.func @transform_1(%arg0: i32) -> (i32, i32) {
    %c0_i32 = arith.constant 0 : i32
    %c0_i32_0 = arith.constant 0 : i32
    %c0_i32_1 = arith.constant 0 : i32
    return %c0_i32, %c0_i32_0 : i32, i32
  }
  func.func @transform_2(%arg0: i32) -> (i32, i32) {
    %c0_i32 = arith.constant 0 : i32
    %c0_i32_0 = arith.constant 0 : i32
    %c0_i32_1 = arith.constant 0 : i32
    return %c0_i32, %c0_i32_0 : i32, i32
  }
  func.func @transform_3(%arg0: i32) -> (i32, i32) {
    %c0_i32 = arith.constant 0 : i32
    %c0_i32_0 = arith.constant 0 : i32
    %c0_i32_1 = arith.constant 0 : i32
    return %c0_i32, %c0_i32_0 : i32, i32
  }
  func.func @transform_4(%arg0: i32) -> (i32, i32) {
    %c0_i32 = arith.constant 0 : i32
    %c0_i32_0 = arith.constant 0 : i32
    %c0_i32_1 = arith.constant 0 : i32
    return %c0_i32, %c0_i32_0 : i32, i32
  }
  func.func @transform_5(%arg0: i32) -> (i32, i32) {
    %c0_i32 = arith.constant 0 : i32
    %c0_i32_0 = arith.constant 0 : i32
    %c0_i32_1 = arith.constant 0 : i32
    return %c0_i32, %c0_i32_0 : i32, i32
  }
  func.func @transform_6(%arg0: i32) -> (i32, i32) {
    %c0_i32 = arith.constant 0 : i32
    %c0_i32_0 = arith.constant 0 : i32
    %c0_i32_1 = arith.constant 0 : i32
    return %c0_i32, %c0_i32_0 : i32, i32
  }
  func.func @transform_7(%arg0: i32) -> (i32, i32) {
    %c0_i32 = arith.constant 0 : i32
    %c0_i32_0 = arith.constant 0 : i32
    return %c0_i32, %arg0 : i32, i32
  }
}

</mosaic_0001>

<llo_original>
// kernel: tpu_custom_call.1
$region0: #{tpu_custom_call.1}
  #allocation0 [shape = 'u32[]', space=smem, size = 0x4, offset = 0x4, fixed_abs, tag = 'smem constant byte address 0x4 - core index']
  #allocation1 [shape = 'u32[72,128]{1,0:T(1,128)}', space=vmem, size = 0x9000, scoped, tag = 'internal scratch']
  #allocation2 [shape = 'f32[1,1]{1,0:T(1,128)S(1)}', space=vmem, size = 0x200, scoped, tag = 'scoped memory for tpu_custom_call.1']
  %s0 = inlined_call_operand.vmem [shape: f32[3,1024], index: 0, kind: input, shape index: {}]
  %s1 = inlined_call_operand.vmem [shape: f32[256,3], index: 1, kind: input, shape index: {}]
  %s2 = inlined_call_operand.vmem [shape: f32[256,1], index: 2, kind: input, shape index: {}]
  %s3 = inlined_call_operand.vmem [shape: f32[256,256], index: 3, kind: input, shape index: {}]
  %s4 = inlined_call_operand.vmem [shape: f32[256,1], index: 4, kind: input, shape index: {}]
  %s5 = inlined_call_operand.vmem [shape: f32[256,1], index: 5, kind: input, shape index: {}]
  %s6 = inlined_call_operand.<no memory space> [shape: f32[1,1], index: 6, kind: input, shape index: {}]
  %s7 = inlined_call_operand.hbm [shape: f32[1,1024], index: 7, kind: output, shape index: {}]
  %s8 = sld [smem:[#allocation0]]
  $region61: #{tpu_custom_call.1} parent=0
    _
  %s10 = ssub.s32 1, %s8
  %s11 = scalar_select 0, %s10, %s8
  %v12 = vstv %s6
  %13 = vst [vmem:[#allocation2] sm:$0x1] %v12
  $region1: #{tpu_custom_call.1} parent=0
    #allocation3 [shape = 'u8[4096]{0}', space=vmem, size = 0x1000, scoped, tag = 'output window, operand 0']
    #allocation4 [shape = 's32[2]{0}', space=sflag, size = 0x8, scoped, tag = 'scoped memory for tpu_custom_call.1']
    %14 = vsyncpa [#allocation4], 0
    %s15 = scalar_lea.sflag [#allocation4], 1
    %16 = vsyncpa %s15, 0
    loop: start=0, step=1, limit=4
    $region2: #{tpu_custom_call.1} parent=1 // loop_pre_header
      _
    $region3: #{tpu_custom_call.1} parent=1 // loop_header
      %s18 = sphi 0, %s22
      %p19 = scmp.ge.s32.totalorder %s18, 4
      %s28 = sphi 0, %s30
      %s31 = sphi 0, %s28
      %s32 = sphi 0, %s31
      %s48 = sphi 0, %s32
      %s52 = sphi 0, %s52
      %s54 = sphi 0, %s52
      %s55 = sphi 0, %s54
      %s69 = sphi 0, %s55
      %s73 = sphi 0, %s73
      %s75 = sphi 0, %s73
      %s76 = sphi 0, %s75
      %s90 = sphi 0, %s76
      %s94 = sphi 0, %s94
      %s96 = sphi 0, %s94
      %s97 = sphi 0, %s96
      %s111 = sphi 0, %s97
      %s115 = sphi 0, %s115
      %s117 = sphi 0, %s115
      %s118 = sphi 0, %s117
      %s132 = sphi 0, %s118
      %s136 = sphi 0, %s136
      %s138 = sphi 0, %s136
      %s139 = sphi 0, %s138
      %s153 = sphi 0, %s139
      %s157 = sphi 0, %s157
      %s159 = sphi 0, %s157
      %s160 = sphi 0, %s159
      %s174 = sphi 0, %s160
      %s180 = sphi 0, %s182
      %s183 = sphi 0, %s180
      %s184 = sphi 0, %s183
      %s200 = sphi 0, %s184
    $region4: #{tpu_custom_call.1} parent=1 // loop_header_branch
      %21 = sbr.rel (%p19) target = $region8
    $region5: #{tpu_custom_call.1} parent=1 // loop_body
      %s23 = ssub.s32 %s18, 1
      %s24 = ssub.s32 %s18, 2
      %s25 = sadd.s32 %s18, 1
      %s26 = ssub.s32 %s18, %s25
      %p27 = scmp.eq.s32.totalorder %s26, 0
      %s29 = sadd.s32 %s28, 1
      %s30 = scalar_select %p27, %s28, %s29
      %p33 = pneg %p27
      %p34 = scmp.eq.s32.totalorder %s18, 1
      %p35 = por %p33, %p34
      %p36 = scmp.ne.s32.totalorder %s28, %s31
      %p37 = scmp.eq.s32.totalorder %s18, 0
      %p38 = por %p36, %p37
      %p39 = scmp.ne.s32.totalorder %s28, %s31
      %p40 = scmp.eq.s32.totalorder %s23, 1
      %p41 = por %p39, %p40
      %p42 = scmp.ne.s32.totalorder %s31, %s32
      %p43 = scmp.eq.s32.totalorder %s23, 0
      %p44 = por %p42, %p43
      %p45 = scmp.ne.s32.totalorder %s31, %s32
      %p46 = scmp.eq.s32.totalorder %s24, 1
      %p47 = por %p45, %p46
      %p49 = scmp.ne.s32.totalorder %s32, %s48
      %p50 = scmp.eq.s32.totalorder %s24, 0
      %p51 = por %p49, %p50
      %s53 = sadd.s32 %s52, 1
      %p56 = scmp.eq.s32.totalorder %s18, 1
      %p57 = scmp.ne.s32.totalorder %s52, %s54
      %p58 = scmp.eq.s32.totalorder %s18, 0
      %p59 = por %p57, %p58
      %p60 = scmp.ne.s32.totalorder %s52, %s54
      %p61 = scmp.eq.s32.totalorder %s23, 1
      %p62 = por %p60, %p61
      %p63 = scmp.ne.s32.totalorder %s54, %s55
      %p64 = scmp.eq.s32.totalorder %s23, 0
      %p65 = por %p63, %p64
      %p66 = scmp.ne.s32.totalorder %s54, %s55
      %p67 = scmp.eq.s32.totalorder %s24, 1
      %p68 = por %p66, %p67
      %p70 = scmp.ne.s32.totalorder %s55, %s69
      %p71 = scmp.eq.s32.totalorder %s24, 0
      %p72 = por %p70, %p71
      %s74 = sadd.s32 %s73, 1
      %p77 = scmp.eq.s32.totalorder %s18, 1
      %p78 = scmp.ne.s32.totalorder %s73, %s75
      %p79 = scmp.eq.s32.totalorder %s18, 0
      %p80 = por %p78, %p79
      %p81 = scmp.ne.s32.totalorder %s73, %s75
      %p82 = scmp.eq.s32.totalorder %s23, 1
      %p83 = por %p81, %p82
      %p84 = scmp.ne.s32.totalorder %s75, %s76
      %p85 = scmp.eq.s32.totalorder %s23, 0
      %p86 = por %p84, %p85
      %p87 = scmp.ne.s32.totalorder %s75, %s76
      %p88 = scmp.eq.s32.totalorder %s24, 1
      %p89 = por %p87, %p88
      %p91 = scmp.ne.s32.totalorder %s76, %s90
      %p92 = scmp.eq.s32.totalorder %s24, 0
      %p93 = por %p91, %p92
      %s95 = sadd.s32 %s94, 1
      %p98 = scmp.eq.s32.totalorder %s18, 1
      %p99 = scmp.ne.s32.totalorder %s94, %s96
      %p100 = scmp.eq.s32.totalorder %s18, 0
      %p101 = por %p99, %p100
      %p102 = scmp.ne.s32.totalorder %s94, %s96
      %p103 = scmp.eq.s32.totalorder %s23, 1
      %p104 = por %p102, %p103
      %p105 = scmp.ne.s32.totalorder %s96, %s97
      %p106 = scmp.eq.s32.totalorder %s23, 0
      %p107 = por %p105, %p106
      %p108 = scmp.ne.s32.totalorder %s96, %s97
      %p109 = scmp.eq.s32.totalorder %s24, 1
      %p110 = por %p108, %p109
      %p112 = scmp.ne.s32.totalorder %s97, %s111
      %p113 = scmp.eq.s32.totalorder %s24, 0
      %p114 = por %p112, %p113
      %s116 = sadd.s32 %s115, 1
      %p119 = scmp.eq.s32.totalorder %s18, 1
      %p120 = scmp.ne.s32.totalorder %s115, %s117
      %p121 = scmp.eq.s32.totalorder %s18, 0
      %p122 = por %p120, %p121
      %p123 = scmp.ne.s32.totalorder %s115, %s117
      %p124 = scmp.eq.s32.totalorder %s23, 1
      %p125 = por %p123, %p124
      %p126 = scmp.ne.s32.totalorder %s117, %s118
      %p127 = scmp.eq.s32.totalorder %s23, 0
      %p128 = por %p126, %p127
      %p129 = scmp.ne.s32.totalorder %s117, %s118
      %p130 = scmp.eq.s32.totalorder %s24, 1
      %p131 = por %p129, %p130
      %p133 = scmp.ne.s32.totalorder %s118, %s132
      %p134 = scmp.eq.s32.totalorder %s24, 0
      %p135 = por %p133, %p134
      %s137 = sadd.s32 %s136, 1
      %p140 = scmp.eq.s32.totalorder %s18, 1
      %p141 = scmp.ne.s32.totalorder %s136, %s138
      %p142 = scmp.eq.s32.totalorder %s18, 0
      %p143 = por %p141, %p142
      %p144 = scmp.ne.s32.totalorder %s136, %s138
      %p145 = scmp.eq.s32.totalorder %s23, 1
      %p146 = por %p144, %p145
      %p147 = scmp.ne.s32.totalorder %s138, %s139
      %p148 = scmp.eq.s32.totalorder %s23, 0
      %p149 = por %p147, %p148
      %p150 = scmp.ne.s32.totalorder %s138, %s139
      %p151 = scmp.eq.s32.totalorder %s24, 1
      %p152 = por %p150, %p151
      %p154 = scmp.ne.s32.totalorder %s139, %s153
      %p155 = scmp.eq.s32.totalorder %s24, 0
      %p156 = por %p154, %p155
      %s158 = sadd.s32 %s157, 1
      %p161 = scmp.eq.s32.totalorder %s18, 1
      %p162 = scmp.ne.s32.totalorder %s157, %s159
      %p163 = scmp.eq.s32.totalorder %s18, 0
      %p164 = por %p162, %p163
      %p165 = scmp.ne.s32.totalorder %s157, %s159
      %p166 = scmp.eq.s32.totalorder %s23, 1
      %p167 = por %p165, %p166
      %p168 = scmp.ne.s32.totalorder %s159, %s160
      %p169 = scmp.eq.s32.totalorder %s23, 0
      %p170 = por %p168, %p169
      %p171 = scmp.ne.s32.totalorder %s159, %s160
      %p172 = scmp.eq.s32.totalorder %s24, 1
      %p173 = por %p171, %p172
      %p175 = scmp.ne.s32.totalorder %s160, %s174
      %p176 = scmp.eq.s32.totalorder %s24, 0
      %p177 = por %p175, %p176
      %s178 = ssub.s32 %s18, %s25
      %p179 = scmp.eq.s32.totalorder %s178, 0
      %s181 = sadd.s32 %s180, 1
      %s182 = scalar_select %p179, %s180, %s181
      %p185 = pneg %p179
      %p186 = scmp.eq.s32.totalorder %s18, 1
      %p187 = por %p185, %p186
      %p188 = scmp.ne.s32.totalorder %s180, %s183
      %p189 = scmp.eq.s32.totalorder %s18, 0
      %p190 = por %p188, %p189
      %p191 = scmp.ne.s32.totalorder %s180, %s183
      %p192 = scmp.eq.s32.totalorder %s23, 1
      %p193 = por %p191, %p192
      %p194 = scmp.ne.s32.totalorder %s183, %s184
      %p195 = scmp.eq.s32.totalorder %s23, 0
      %p196 = por %p194, %p195
      %p197 = scmp.ne.s32.totalorder %s183, %s184
      %p198 = scmp.eq.s32.totalorder %s24, 1
      %p199 = por %p197, %p198
      %p201 = scmp.ne.s32.totalorder %s184, %s200
      %p202 = scmp.eq.s32.totalorder %s24, 0
      %p203 = por %p201, %p202
      %p204 = scmp.le.s32.totalorder 1, %s18
      %p205 = scmp.lt.s32.totalorder %s18, 3
      %p206 = pnand %p204, %p205
      %p207 = pneg %p206
      // Predicated region
      $region9: #{tpu_custom_call.1} parent=5 // pred_check
        _
      $region10: #{tpu_custom_call.1} parent=5 // pred_check_branch
        %209 = sbr.rel (%p206) target = $region12
      $region11: #{tpu_custom_call.1} parent=5 // pred_region
        %s210 = ssub.s32 %s18, 1
        // Predicated region
        $region13: #{tpu_custom_call.1} parent=11 // pred_check
          %p211 = pneg %p65
        $region14: #{tpu_custom_call.1} parent=11 // pred_check_branch
          %213 = sbr.rel (%p211) target = $region16
        $region15: #{tpu_custom_call.1} parent=11 // pred_region
          _
        $region16: #{tpu_custom_call.1} parent=11 // pred_fallthru
          _
        // Predicated region
        $region17: #{tpu_custom_call.1} parent=11 // pred_check
          %p214 = pneg %p86
        $region18: #{tpu_custom_call.1} parent=11 // pred_check_branch
          %216 = sbr.rel (%p214) target = $region20
        $region19: #{tpu_custom_call.1} parent=11 // pred_region
          _
        $region20: #{tpu_custom_call.1} parent=11 // pred_fallthru
          _
        // Predicated region
        $region21: #{tpu_custom_call.1} parent=11 // pred_check
          %p217 = pneg %p107
        $region22: #{tpu_custom_call.1} parent=11 // pred_check_branch
          %219 = sbr.rel (%p217) target = $region24
        $region23: #{tpu_custom_call.1} parent=11 // pred_region
          _
        $region24: #{tpu_custom_call.1} parent=11 // pred_fallthru
          _
        // Predicated region
        $region25: #{tpu_custom_call.1} parent=11 // pred_check
          %p220 = pneg %p128
        $region26: #{tpu_custom_call.1} parent=11 // pred_check_branch
          %222 = sbr.rel (%p220) target = $region28
        $region27: #{tpu_custom_call.1} parent=11 // pred_region
          _
        $region28: #{tpu_custom_call.1} parent=11 // pred_fallthru
          _
        // Predicated region
        $region29: #{tpu_custom_call.1} parent=11 // pred_check
          %p223 = pneg %p149
        $region30: #{tpu_custom_call.1} parent=11 // pred_check_branch
          %225 = sbr.rel (%p223) target = $region32
        $region31: #{tpu_custom_call.1} parent=11 // pred_region
          _
        $region32: #{tpu_custom_call.1} parent=11 // pred_fallthru
          _
        // Predicated region
        $region33: #{tpu_custom_call.1} parent=11 // pred_check
          %p226 = pneg %p170
        $region34: #{tpu_custom_call.1} parent=11 // pred_check_branch
          %228 = sbr.rel (%p226) target = $region36
        $region35: #{tpu_custom_call.1} parent=11 // pred_region
          _
        $region36: #{tpu_custom_call.1} parent=11 // pred_fallthru
          _
      $region12: #{tpu_custom_call.1} parent=5 // pred_fallthru
        _
      %p229 = scmp.lt.s32.totalorder %s18, 2
      // Predicated region
      $region37: #{tpu_custom_call.1} parent=5 // pred_check
        %p230 = pneg %p229
      $region38: #{tpu_custom_call.1} parent=5 // pred_check_branch
        %232 = sbr.rel (%p230) target = $region40
      $region39: #{tpu_custom_call.1} parent=5 // pred_region
        // Predicated region
        $region41: #{tpu_custom_call.1} parent=39 // pred_check
          %p233 = pneg %p38
        $region42: #{tpu_custom_call.1} parent=39 // pred_check_branch
          %235 = sbr.rel (%p233) target = $region44
        $region43: #{tpu_custom_call.1} parent=39 // pred_region
          %s236 = smul.u32 4, %s18
          %p237 = scmp.lt.s32.totalorder %s236, 7
          %s238 = scalar_select %p237, %s236, 7
          %s239 = smul.addr %s238, 4
          %s240 = scalar_lea.vmem %s0, %s239
          %s241 = smul.u32 4, %s18
        $region44: #{tpu_custom_call.1} parent=39 // pred_fallthru
          _
      $region40: #{tpu_custom_call.1} parent=5 // pred_fallthru
        _
      %p242 = scmp.le.s32.totalorder 1, %s18
      %p243 = scmp.lt.s32.totalorder %s18, 3
      %p244 = pnand %p242, %p243
      %p245 = pneg %p244
      // Predicated region
      $region45: #{tpu_custom_call.1} parent=5 // pred_check
        _
      $region46: #{tpu_custom_call.1} parent=5 // pred_check_branch
        %247 = sbr.rel (%p244) target = $region48
      $region47: #{tpu_custom_call.1} parent=5 // pred_region
        %s248 = ssub.s32 %s18, 1
        %s249 = smul.u32 4, %s23
        %p250 = scmp.lt.s32.totalorder %s249, 7
        %s251 = scalar_select %p250, %s249, 7
        %s252 = smul.addr %s251, 4
        %s253 = scalar_lea.vmem %s0, %s252
        %p254 = pneg %p44
        %p255 = pneg %p41
        %p256 = pneg %p65
        %p257 = pneg %p62
        %p258 = pneg %p86
        %p259 = pneg %p83
        %p260 = pneg %p107
        %p261 = pneg %p104
        %p262 = pneg %p128
        %p263 = pneg %p125
        %p264 = pneg %p149
        %p265 = pneg %p146
        %p266 = pneg %p170
        %p267 = pneg %p167
        %p268 = pneg %p196
        %p269 = pneg %p193
        %s270 = sand.u32 %s183, 1
        %s271 = scalar_lea.sflag [#allocation4], %s270
        %s272 = sand.u32 %s183, 1
        %s273 = smul.addr %s272, 4
        %s274 = scalar_lea.vmem [#allocation3], %s273
        %s275 = smul.u32 4, %s23
        %p276 = scmp.lt.s32.totalorder %s275, 7
        %s277 = scalar_select %p276, %s275, 7
        %s278 = smul.addr %s277, 4
        %s279 = scalar_lea.vmem %s0, %s278
        %s280 = smul.u32 4, %s23
        %s281 = smul.u32 4, %s23
        %v282 = vld [vmem:[%s279] sm:$0x77]
        %v283 = vld [vmem:[%s279 + $0x8] sm:$0x77]
        %v284 = vld [vmem:[%s1] sm:$0xff]
        %v285 = vld [vmem:[%s1 + $0x8] sm:$0xff]
        %v286 = vld [vmem:[%s1 + $0x10] sm:$0xff]
        %v287 = vld [vmem:[%s1 + $0x18] sm:$0xff]
        %v288 = vld [vmem:[%s1 + $0x20] sm:$0xff]
        %v289 = vld [vmem:[%s1 + $0x28] sm:$0xff]
        %v290 = vld [vmem:[%s1 + $0x30] sm:$0xff]
        %v291 = vld [vmem:[%s1 + $0x38] sm:$0xff]
        %v292 = vld [vmem:[%s1 + $0x40] sm:$0xff]
        %v293 = vld [vmem:[%s1 + $0x48] sm:$0xff]
        %v294 = vld [vmem:[%s1 + $0x50] sm:$0xff]
        %v295 = vld [vmem:[%s1 + $0x58] sm:$0xff]
        %v296 = vld [vmem:[%s1 + $0x60] sm:$0xff]
        %v297 = vld [vmem:[%s1 + $0x68] sm:$0xff]
        %v298 = vld [vmem:[%s1 + $0x70] sm:$0xff]
        %v299 = vld [vmem:[%s1 + $0x78] sm:$0xff]
        %v300 = vld [vmem:[%s1 + $0x80] sm:$0xff]
        %v301 = vld [vmem:[%s1 + $0x88] sm:$0xff]
        %v302 = vld [vmem:[%s1 + $0x90] sm:$0xff]
        %v303 = vld [vmem:[%s1 + $0x98] sm:$0xff]
        %v304 = vld [vmem:[%s1 + $0xa0] sm:$0xff]
        %v305 = vld [vmem:[%s1 + $0xa8] sm:$0xff]
        %v306 = vld [vmem:[%s1 + $0xb0] sm:$0xff]
        %v307 = vld [vmem:[%s1 + $0xb8] sm:$0xff]
        %v308 = vld [vmem:[%s1 + $0xc0] sm:$0xff]
        %v309 = vld [vmem:[%s1 + $0xc8] sm:$0xff]
        %v310 = vld [vmem:[%s1 + $0xd0] sm:$0xff]
        %v311 = vld [vmem:[%s1 + $0xd8] sm:$0xff]
        %v312 = vld [vmem:[%s1 + $0xe0] sm:$0xff]
        %v313 = vld [vmem:[%s1 + $0xe8] sm:$0xff]
        %v314 = vld [vmem:[%s1 + $0xf0] sm:$0xff]
        %v315 = vld [vmem:[%s1 + $0xf8] sm:$0xff]
        %317 = vset.pattern.permute.xlu0 0
        %318 = vperm.xlu0 %317, %v284
        %v319 = vpop.permute.xlu0 %318
        %322 = vset.pattern.permute.xlu0 0
        %323 = vperm.xlu0 %322, %v285
        %v324 = vpop.permute.xlu0 %323
        %327 = vset.pattern.permute.xlu0 0
        %328 = vperm.xlu0 %327, %v286
        %v329 = vpop.permute.xlu0 %328
        %332 = vset.pattern.permute.xlu0 0
        %333 = vperm.xlu0 %332, %v287
        %v334 = vpop.permute.xlu0 %333
        %337 = vset.pattern.permute.xlu0 0
        %338 = vperm.xlu0 %337, %v288
        %v339 = vpop.permute.xlu0 %338
        %342 = vset.pattern.permute.xlu0 0
        %343 = vperm.xlu0 %342, %v289
        %v344 = vpop.permute.xlu0 %343
        %347 = vset.pattern.permute.xlu0 0
        %348 = vperm.xlu0 %347, %v290
        %v349 = vpop.permute.xlu0 %348
        %352 = vset.pattern.permute.xlu0 0
        %353 = vperm.xlu0 %352, %v291
        %v354 = vpop.permute.xlu0 %353
        %357 = vset.pattern.permute.xlu0 0
        %358 = vperm.xlu0 %357, %v292
        %v359 = vpop.permute.xlu0 %358
        %362 = vset.pattern.permute.xlu0 0
        %363 = vperm.xlu0 %362, %v293
        %v364 = vpop.permute.xlu0 %363
        %367 = vset.pattern.permute.xlu0 0
        %368 = vperm.xlu0 %367, %v294
        %v369 = vpop.permute.xlu0 %368
        %372 = vset.pattern.permute.xlu0 0
        %373 = vperm.xlu0 %372, %v295
        %v374 = vpop.permute.xlu0 %373
        %377 = vset.pattern.permute.xlu0 0
        %378 = vperm.xlu0 %377, %v296
        %v379 = vpop.permute.xlu0 %378
        %382 = vset.pattern.permute.xlu0 0
        %383 = vperm.xlu0 %382, %v297
        %v384 = vpop.permute.xlu0 %383
        %387 = vset.pattern.permute.xlu0 0
        %388 = vperm.xlu0 %387, %v298
        %v389 = vpop.permute.xlu0 %388
        %392 = vset.pattern.permute.xlu0 0
        %393 = vperm.xlu0 %392, %v299
        %v394 = vpop.permute.xlu0 %393
        %397 = vset.pattern.permute.xlu0 0
        %398 = vperm.xlu0 %397, %v300
        %v399 = vpop.permute.xlu0 %398
        %402 = vset.pattern.permute.xlu0 0
        %403 = vperm.xlu0 %402, %v301
        %v404 = vpop.permute.xlu0 %403
        %407 = vset.pattern.permute.xlu0 0
        %408 = vperm.xlu0 %407, %v302
        %v409 = vpop.permute.xlu0 %408
        %412 = vset.pattern.permute.xlu0 0
        %413 = vperm.xlu0 %412, %v303
        %v414 = vpop.permute.xlu0 %413
        %417 = vset.pattern.permute.xlu0 0
        %418 = vperm.xlu0 %417, %v304
        %v419 = vpop.permute.xlu0 %418
        %422 = vset.pattern.permute.xlu0 0
        %423 = vperm.xlu0 %422, %v305
        %v424 = vpop.permute.xlu0 %423
        %427 = vset.pattern.permute.xlu0 0
        %428 = vperm.xlu0 %427, %v306
        %v429 = vpop.permute.xlu0 %428
        %432 = vset.pattern.permute.xlu0 0
        %433 = vperm.xlu0 %432, %v307
        %v434 = vpop.permute.xlu0 %433
        %437 = vset.pattern.permute.xlu0 0
        %438 = vperm.xlu0 %437, %v308
        %v439 = vpop.permute.xlu0 %438
        %442 = vset.pattern.permute.xlu0 0
        %443 = vperm.xlu0 %442, %v309
        %v444 = vpop.permute.xlu0 %443
        %447 = vset.pattern.permute.xlu0 0
        %448 = vperm.xlu0 %447, %v310
        %v449 = vpop.permute.xlu0 %448
        %452 = vset.pattern.permute.xlu0 0
        %453 = vperm.xlu0 %452, %v311
        %v454 = vpop.permute.xlu0 %453
        %457 = vset.pattern.permute.xlu0 0
        %458 = vperm.xlu0 %457, %v312
        %v459 = vpop.permute.xlu0 %458
        %462 = vset.pattern.permute.xlu0 0
        %463 = vperm.xlu0 %462, %v313
        %v464 = vpop.permute.xlu0 %463
        %467 = vset.pattern.permute.xlu0 0
        %468 = vperm.xlu0 %467, %v314
        %v469 = vpop.permute.xlu0 %468
        %472 = vset.pattern.permute.xlu0 0
        %473 = vperm.xlu0 %472, %v315
        %v474 = vpop.permute.xlu0 %473
        %v478 = vperm.slane %v282, 0
        %v479 = vperm.slane %v282, 4
        %v480 = vperm.slane %v283, 0
        %v481 = vperm.slane %v283, 4
        %v486 = vperm.slane %v478, 0
        %v487 = vperm.slane %v479, 0
        %v488 = vperm.slane %v480, 0
        %v489 = vperm.slane %v481, 0
        %v490 = vmul.f32 %v319, %v486
        %v491 = vmul.f32 %v319, %v487
        %v492 = vmul.f32 %v319, %v488
        %v493 = vmul.f32 %v319, %v489
        %v494 = vmul.f32 %v324, %v486
        %v495 = vmul.f32 %v324, %v487
        %v496 = vmul.f32 %v324, %v488
        %v497 = vmul.f32 %v324, %v489
        %v498 = vmul.f32 %v329, %v486
        %v499 = vmul.f32 %v329, %v487
        %v500 = vmul.f32 %v329, %v488
        %v501 = vmul.f32 %v329, %v489
        %v502 = vmul.f32 %v334, %v486
        %v503 = vmul.f32 %v334, %v487
        %v504 = vmul.f32 %v334, %v488
        %v505 = vmul.f32 %v334, %v489
        %v506 = vmul.f32 %v339, %v486
        %v507 = vmul.f32 %v339, %v487
        %v508 = vmul.f32 %v339, %v488
        %v509 = vmul.f32 %v339, %v489
        %v510 = vmul.f32 %v344, %v486
        %v511 = vmul.f32 %v344, %v487
        %v512 = vmul.f32 %v344, %v488
        %v513 = vmul.f32 %v344, %v489
        %v514 = vmul.f32 %v349, %v486
        %v515 = vmul.f32 %v349, %v487
        %v516 = vmul.f32 %v349, %v488
        %v517 = vmul.f32 %v349, %v489
        %v518 = vmul.f32 %v354, %v486
        %v519 = vmul.f32 %v354, %v487
        %v520 = vmul.f32 %v354, %v488
        %v521 = vmul.f32 %v354, %v489
        %v522 = vmul.f32 %v359, %v486
        %v523 = vmul.f32 %v359, %v487
        %v524 = vmul.f32 %v359, %v488
        %v525 = vmul.f32 %v359, %v489
        %v526 = vmul.f32 %v364, %v486
        %v527 = vmul.f32 %v364, %v487
        %v528 = vmul.f32 %v364, %v488
        %v529 = vmul.f32 %v364, %v489
        %v530 = vmul.f32 %v369, %v486
        %v531 = vmul.f32 %v369, %v487
        %v532 = vmul.f32 %v369, %v488
        %v533 = vmul.f32 %v369, %v489
        %v534 = vmul.f32 %v374, %v486
        %v535 = vmul.f32 %v374, %v487
        %v536 = vmul.f32 %v374, %v488
        %v537 = vmul.f32 %v374, %v489
        %v538 = vmul.f32 %v379, %v486
        %v539 = vmul.f32 %v379, %v487
        %v540 = vmul.f32 %v379, %v488
        %v541 = vmul.f32 %v379, %v489
        %v542 = vmul.f32 %v384, %v486
        %v543 = vmul.f32 %v384, %v487
        %v544 = vmul.f32 %v384, %v488
        %v545 = vmul.f32 %v384, %v489
        %v546 = vmul.f32 %v389, %v486
        %v547 = vmul.f32 %v389, %v487
        %v548 = vmul.f32 %v389, %v488
        %v549 = vmul.f32 %v389, %v489
        %v550 = vmul.f32 %v394, %v486
        %v551 = vmul.f32 %v394, %v487
        %v552 = vmul.f32 %v394, %v488
        %v553 = vmul.f32 %v394, %v489
        %v554 = vmul.f32 %v399, %v486
        %v555 = vmul.f32 %v399, %v487
        %v556 = vmul.f32 %v399, %v488
        %v557 = vmul.f32 %v399, %v489
        %v558 = vmul.f32 %v404, %v486
        %v559 = vmul.f32 %v404, %v487
        %v560 = vmul.f32 %v404, %v488
        %v561 = vmul.f32 %v404, %v489
        %v562 = vmul.f32 %v409, %v486
        %v563 = vmul.f32 %v409, %v487
        %v564 = vmul.f32 %v409, %v488
        %v565 = vmul.f32 %v409, %v489
        %v566 = vmul.f32 %v414, %v486
        %v567 = vmul.f32 %v414, %v487
        %v568 = vmul.f32 %v414, %v488
        %v569 = vmul.f32 %v414, %v489
        %v570 = vmul.f32 %v419, %v486
        %v571 = vmul.f32 %v419, %v487
        %v572 = vmul.f32 %v419, %v488
        %v573 = vmul.f32 %v419, %v489
        %v574 = vmul.f32 %v424, %v486
        %v575 = vmul.f32 %v424, %v487
        %v576 = vmul.f32 %v424, %v488
        %v577 = vmul.f32 %v424, %v489
        %v578 = vmul.f32 %v429, %v486
        %v579 = vmul.f32 %v429, %v487
        %v580 = vmul.f32 %v429, %v488
        %v581 = vmul.f32 %v429, %v489
        %v582 = vmul.f32 %v434, %v486
        %v583 = vmul.f32 %v434, %v487
        %v584 = vmul.f32 %v434, %v488
        %v585 = vmul.f32 %v434, %v489
        %v586 = vmul.f32 %v439, %v486
        %v587 = vmul.f32 %v439, %v487
        %v588 = vmul.f32 %v439, %v488
        %v589 = vmul.f32 %v439, %v489
        %v590 = vmul.f32 %v444, %v486
        %v591 = vmul.f32 %v444, %v487
        %v592 = vmul.f32 %v444, %v488
        %v593 = vmul.f32 %v444, %v489
        %v594 = vmul.f32 %v449, %v486
        %v595 = vmul.f32 %v449, %v487
        %v596 = vmul.f32 %v449, %v488
        %v597 = vmul.f32 %v449, %v489
        %v598 = vmul.f32 %v454, %v486
        %v599 = vmul.f32 %v454, %v487
        %v600 = vmul.f32 %v454, %v488
        %v601 = vmul.f32 %v454, %v489
        %v602 = vmul.f32 %v459, %v486
        %v603 = vmul.f32 %v459, %v487
        %v604 = vmul.f32 %v459, %v488
        %v605 = vmul.f32 %v459, %v489
        %v606 = vmul.f32 %v464, %v486
        %v607 = vmul.f32 %v464, %v487
        %v608 = vmul.f32 %v464, %v488
        %v609 = vmul.f32 %v464, %v489
        %v610 = vmul.f32 %v469, %v486
        %v611 = vmul.f32 %v469, %v487
        %v612 = vmul.f32 %v469, %v488
        %v613 = vmul.f32 %v469, %v489
        %v614 = vmul.f32 %v474, %v486
        %v615 = vmul.f32 %v474, %v487
        %v616 = vmul.f32 %v474, %v488
        %v617 = vmul.f32 %v474, %v489
        %618 = vset.pattern.permute.xlu0 1
        %619 = vperm.xlu0 %618, %v284
        %v620 = vpop.permute.xlu0 %619
        %622 = vset.pattern.permute.xlu0 1
        %623 = vperm.xlu0 %622, %v285
        %v624 = vpop.permute.xlu0 %623
        %626 = vset.pattern.permute.xlu0 1
        %627 = vperm.xlu0 %626, %v286
        %v628 = vpop.permute.xlu0 %627
        %630 = vset.pattern.permute.xlu0 1
        %631 = vperm.xlu0 %630, %v287
        %v632 = vpop.permute.xlu0 %631
        %634 = vset.pattern.permute.xlu0 1
        %635 = vperm.xlu0 %634, %v288
        %v636 = vpop.permute.xlu0 %635
        %638 = vset.pattern.permute.xlu0 1
        %639 = vperm.xlu0 %638, %v289
        %v640 = vpop.permute.xlu0 %639
        %642 = vset.pattern.permute.xlu0 1
        %643 = vperm.xlu0 %642, %v290
        %v644 = vpop.permute.xlu0 %643
        %646 = vset.pattern.permute.xlu0 1
        %647 = vperm.xlu0 %646, %v291
        %v648 = vpop.permute.xlu0 %647
        %650 = vset.pattern.permute.xlu0 1
        %651 = vperm.xlu0 %650, %v292
        %v652 = vpop.permute.xlu0 %651
        %654 = vset.pattern.permute.xlu0 1
        %655 = vperm.xlu0 %654, %v293
        %v656 = vpop.permute.xlu0 %655
        %658 = vset.pattern.permute.xlu0 1
        %659 = vperm.xlu0 %658, %v294
        %v660 = vpop.permute.xlu0 %659
        %662 = vset.pattern.permute.xlu0 1
        %663 = vperm.xlu0 %662, %v295
        %v664 = vpop.permute.xlu0 %663
        %666 = vset.pattern.permute.xlu0 1
        %667 = vperm.xlu0 %666, %v296
        %v668 = vpop.permute.xlu0 %667
        %670 = vset.pattern.permute.xlu0 1
        %671 = vperm.xlu0 %670, %v297
        %v672 = vpop.permute.xlu0 %671
        %674 = vset.pattern.permute.xlu0 1
        %675 = vperm.xlu0 %674, %v298
        %v676 = vpop.permute.xlu0 %675
        %678 = vset.pattern.permute.xlu0 1
        %679 = vperm.xlu0 %678, %v299
        %v680 = vpop.permute.xlu0 %679
        %682 = vset.pattern.permute.xlu0 1
        %683 = vperm.xlu0 %682, %v300
        %v684 = vpop.permute.xlu0 %683
        %686 = vset.pattern.permute.xlu0 1
        %687 = vperm.xlu0 %686, %v301
        %v688 = vpop.permute.xlu0 %687
        %690 = vset.pattern.permute.xlu0 1
        %691 = vperm.xlu0 %690, %v302
        %v692 = vpop.permute.xlu0 %691
        %694 = vset.pattern.permute.xlu0 1
        %695 = vperm.xlu0 %694, %v303
        %v696 = vpop.permute.xlu0 %695
        %698 = vset.pattern.permute.xlu0 1
        %699 = vperm.xlu0 %698, %v304
        %v700 = vpop.permute.xlu0 %699
        %702 = vset.pattern.permute.xlu0 1
        %703 = vperm.xlu0 %702, %v305
        %v704 = vpop.permute.xlu0 %703
        %706 = vset.pattern.permute.xlu0 1
        %707 = vperm.xlu0 %706, %v306
        %v708 = vpop.permute.xlu0 %707
        %710 = vset.pattern.permute.xlu0 1
        %711 = vperm.xlu0 %710, %v307
        %v712 = vpop.permute.xlu0 %711
        %714 = vset.pattern.permute.xlu0 1
        %715 = vperm.xlu0 %714, %v308
        %v716 = vpop.permute.xlu0 %715
        %718 = vset.pattern.permute.xlu0 1
        %719 = vperm.xlu0 %718, %v309
        %v720 = vpop.permute.xlu0 %719
        %722 = vset.pattern.permute.xlu0 1
        %723 = vperm.xlu0 %722, %v310
        %v724 = vpop.permute.xlu0 %723
        %726 = vset.pattern.permute.xlu0 1
        %727 = vperm.xlu0 %726, %v311
        %v728 = vpop.permute.xlu0 %727
        %730 = vset.pattern.permute.xlu0 1
        %731 = vperm.xlu0 %730, %v312
        %v732 = vpop.permute.xlu0 %731
        %734 = vset.pattern.permute.xlu0 1
        %735 = vperm.xlu0 %734, %v313
        %v736 = vpop.permute.xlu0 %735
        %738 = vset.pattern.permute.xlu0 1
        %739 = vperm.xlu0 %738, %v314
        %v740 = vpop.permute.xlu0 %739
        %742 = vset.pattern.permute.xlu0 1
        %743 = vperm.xlu0 %742, %v315
        %v744 = vpop.permute.xlu0 %743
        %v746 = vperm.slane %v282, 1
        %v747 = vperm.slane %v282, 5
        %v748 = vperm.slane %v283, 1
        %v749 = vperm.slane %v283, 5
        %v754 = vperm.slane %v746, 1
        %v755 = vperm.slane %v747, 1
        %v756 = vperm.slane %v748, 1
        %v757 = vperm.slane %v749, 1
        %v758 = vmul.f32 %v620, %v754
        %v759 = vmul.f32 %v620, %v755
        %v760 = vmul.f32 %v620, %v756
        %v761 = vmul.f32 %v620, %v757
        %v762 = vmul.f32 %v624, %v754
        %v763 = vmul.f32 %v624, %v755
        %v764 = vmul.f32 %v624, %v756
        %v765 = vmul.f32 %v624, %v757
        %v766 = vmul.f32 %v628, %v754
        %v767 = vmul.f32 %v628, %v755
        %v768 = vmul.f32 %v628, %v756
        %v769 = vmul.f32 %v628, %v757
        %v770 = vmul.f32 %v632, %v754
        %v771 = vmul.f32 %v632, %v755
        %v772 = vmul.f32 %v632, %v756
        %v773 = vmul.f32 %v632, %v757
        %v774 = vmul.f32 %v636, %v754
        %v775 = vmul.f32 %v636, %v755
        %v776 = vmul.f32 %v636, %v756
        %v777 = vmul.f32 %v636, %v757
        %v778 = vmul.f32 %v640, %v754
        %v779 = vmul.f32 %v640, %v755
        %v780 = vmul.f32 %v640, %v756
        %v781 = vmul.f32 %v640, %v757
        %v782 = vmul.f32 %v644, %v754
        %v783 = vmul.f32 %v644, %v755
        %v784 = vmul.f32 %v644, %v756
        %v785 = vmul.f32 %v644, %v757
        %v786 = vmul.f32 %v648, %v754
        %v787 = vmul.f32 %v648, %v755
        %v788 = vmul.f32 %v648, %v756
        %v789 = vmul.f32 %v648, %v757
        %v790 = vmul.f32 %v652, %v754
        %v791 = vmul.f32 %v652, %v755
        %v792 = vmul.f32 %v652, %v756
        %v793 = vmul.f32 %v652, %v757
        %v794 = vmul.f32 %v656, %v754
        %v795 = vmul.f32 %v656, %v755
        %v796 = vmul.f32 %v656, %v756
        %v797 = vmul.f32 %v656, %v757
        %v798 = vmul.f32 %v660, %v754
        %v799 = vmul.f32 %v660, %v755
        %v800 = vmul.f32 %v660, %v756
        %v801 = vmul.f32 %v660, %v757
        %v802 = vmul.f32 %v664, %v754
        %v803 = vmul.f32 %v664, %v755
        %v804 = vmul.f32 %v664, %v756
        %v805 = vmul.f32 %v664, %v757
        %v806 = vmul.f32 %v668, %v754
        %v807 = vmul.f32 %v668, %v755
        %v808 = vmul.f32 %v668, %v756
        %v809 = vmul.f32 %v668, %v757
        %v810 = vmul.f32 %v672, %v754
        %v811 = vmul.f32 %v672, %v755
        %v812 = vmul.f32 %v672, %v756
        %v813 = vmul.f32 %v672, %v757
        %v814 = vmul.f32 %v676, %v754
        %v815 = vmul.f32 %v676, %v755
        %v816 = vmul.f32 %v676, %v756
        %v817 = vmul.f32 %v676, %v757
        %v818 = vmul.f32 %v680, %v754
        %v819 = vmul.f32 %v680, %v755
        %v820 = vmul.f32 %v680, %v756
        %v821 = vmul.f32 %v680, %v757
        %v822 = vmul.f32 %v684, %v754
        %v823 = vmul.f32 %v684, %v755
        %v824 = vmul.f32 %v684, %v756
        %v825 = vmul.f32 %v684, %v757
        %v826 = vmul.f32 %v688, %v754
        %v827 = vmul.f32 %v688, %v755
        %v828 = vmul.f32 %v688, %v756
        %v829 = vmul.f32 %v688, %v757
        %v830 = vmul.f32 %v692, %v754
        %v831 = vmul.f32 %v692, %v755
        %v832 = vmul.f32 %v692, %v756
        %v833 = vmul.f32 %v692, %v757
        %v834 = vmul.f32 %v696, %v754
        %v835 = vmul.f32 %v696, %v755
        %v836 = vmul.f32 %v696, %v756
        %v837 = vmul.f32 %v696, %v757
        %v838 = vmul.f32 %v700, %v754
        %v839 = vmul.f32 %v700, %v755
        %v840 = vmul.f32 %v700, %v756
        %v841 = vmul.f32 %v700, %v757
        %v842 = vmul.f32 %v704, %v754
        %v843 = vmul.f32 %v704, %v755
        %v844 = vmul.f32 %v704, %v756
        %v845 = vmul.f32 %v704, %v757
        %v846 = vmul.f32 %v708, %v754
        %v847 = vmul.f32 %v708, %v755
        %v848 = vmul.f32 %v708, %v756
        %v849 = vmul.f32 %v708, %v757
        %v850 = vmul.f32 %v712, %v754
        %v851 = vmul.f32 %v712, %v755
        %v852 = vmul.f32 %v712, %v756
        %v853 = vmul.f32 %v712, %v757
        %v854 = vmul.f32 %v716, %v754
        %v855 = vmul.f32 %v716, %v755
        %v856 = vmul.f32 %v716, %v756
        %v857 = vmul.f32 %v716, %v757
        %v858 = vmul.f32 %v720, %v754
        %v859 = vmul.f32 %v720, %v755
        %v860 = vmul.f32 %v720, %v756
        %v861 = vmul.f32 %v720, %v757
        %v862 = vmul.f32 %v724, %v754
        %v863 = vmul.f32 %v724, %v755
        %v864 = vmul.f32 %v724, %v756
        %v865 = vmul.f32 %v724, %v757
        %v866 = vmul.f32 %v728, %v754
        %v867 = vmul.f32 %v728, %v755
        %v868 = vmul.f32 %v728, %v756
        %v869 = vmul.f32 %v728, %v757
        %v870 = vmul.f32 %v732, %v754
        %v871 = vmul.f32 %v732, %v755
        %v872 = vmul.f32 %v732, %v756
        %v873 = vmul.f32 %v732, %v757
        %v874 = vmul.f32 %v736, %v754
        %v875 = vmul.f32 %v736, %v755
        %v876 = vmul.f32 %v736, %v756
        %v877 = vmul.f32 %v736, %v757
        %v878 = vmul.f32 %v740, %v754
        %v879 = vmul.f32 %v740, %v755
        %v880 = vmul.f32 %v740, %v756
        %v881 = vmul.f32 %v740, %v757
        %v882 = vmul.f32 %v744, %v754
        %v883 = vmul.f32 %v744, %v755
        %v884 = vmul.f32 %v744, %v756
        %v885 = vmul.f32 %v744, %v757
        %v886 = vadd.f32 %v490, %v758
        %v887 = vadd.f32 %v491, %v759
        %v888 = vadd.f32 %v492, %v760
        %v889 = vadd.f32 %v493, %v761
        %v890 = vadd.f32 %v494, %v762
        %v891 = vadd.f32 %v495, %v763
        %v892 = vadd.f32 %v496, %v764
        %v893 = vadd.f32 %v497, %v765
        %v894 = vadd.f32 %v498, %v766
        %v895 = vadd.f32 %v499, %v767
        %v896 = vadd.f32 %v500, %v768
        %v897 = vadd.f32 %v501, %v769
        %v898 = vadd.f32 %v502, %v770
        %v899 = vadd.f32 %v503, %v771
        %v900 = vadd.f32 %v504, %v772
        %v901 = vadd.f32 %v505, %v773
        %v902 = vadd.f32 %v506, %v774
        %v903 = vadd.f32 %v507, %v775
        %v904 = vadd.f32 %v508, %v776
        %v905 = vadd.f32 %v509, %v777
        %v906 = vadd.f32 %v510, %v778
        %v907 = vadd.f32 %v511, %v779
        %v908 = vadd.f32 %v512, %v780
        %v909 = vadd.f32 %v513, %v781
        %v910 = vadd.f32 %v514, %v782
        %v911 = vadd.f32 %v515, %v783
        %v912 = vadd.f32 %v516, %v784
        %v913 = vadd.f32 %v517, %v785
        %v914 = vadd.f32 %v518, %v786
        %v915 = vadd.f32 %v519, %v787
        %v916 = vadd.f32 %v520, %v788
        %v917 = vadd.f32 %v521, %v789
        %v918 = vadd.f32 %v522, %v790
        %v919 = vadd.f32 %v523, %v791
        %v920 = vadd.f32 %v524, %v792
        %v921 = vadd.f32 %v525, %v793
        %v922 = vadd.f32 %v526, %v794
        %v923 = vadd.f32 %v527, %v795
        %v924 = vadd.f32 %v528, %v796
        %v925 = vadd.f32 %v529, %v797
        %v926 = vadd.f32 %v530, %v798
        %v927 = vadd.f32 %v531, %v799
        %v928 = vadd.f32 %v532, %v800
        %v929 = vadd.f32 %v533, %v801
        %v930 = vadd.f32 %v534, %v802
        %v931 = vadd.f32 %v535, %v803
        %v932 = vadd.f32 %v536, %v804
        %v933 = vadd.f32 %v537, %v805
        %v934 = vadd.f32 %v538, %v806
        %v935 = vadd.f32 %v539, %v807
        %v936 = vadd.f32 %v540, %v808
        %v937 = vadd.f32 %v541, %v809
        %v938 = vadd.f32 %v542, %v810
        %v939 = vadd.f32 %v543, %v811
        %v940 = vadd.f32 %v544, %v812
        %v941 = vadd.f32 %v545, %v813
        %v942 = vadd.f32 %v546, %v814
        %v943 = vadd.f32 %v547, %v815
        %v944 = vadd.f32 %v548, %v816
        %v945 = vadd.f32 %v549, %v817
        %v946 = vadd.f32 %v550, %v818
        %v947 = vadd.f32 %v551, %v819
        %v948 = vadd.f32 %v552, %v820
        %v949 = vadd.f32 %v553, %v821
        %v950 = vadd.f32 %v554, %v822
        %v951 = vadd.f32 %v555, %v823
        %v952 = vadd.f32 %v556, %v824
        %v953 = vadd.f32 %v557, %v825
        %v954 = vadd.f32 %v558, %v826
        %v955 = vadd.f32 %v559, %v827
        %v956 = vadd.f32 %v560, %v828
        %v957 = vadd.f32 %v561, %v829
        %v958 = vadd.f32 %v562, %v830
        %v959 = vadd.f32 %v563, %v831
        %v960 = vadd.f32 %v564, %v832
        %v961 = vadd.f32 %v565, %v833
        %v962 = vadd.f32 %v566, %v834
        %v963 = vadd.f32 %v567, %v835
        %v964 = vadd.f32 %v568, %v836
        %v965 = vadd.f32 %v569, %v837
        %v966 = vadd.f32 %v570, %v838
        %v967 = vadd.f32 %v571, %v839
        %v968 = vadd.f32 %v572, %v840
        %v969 = vadd.f32 %v573, %v841
        %v970 = vadd.f32 %v574, %v842
        %v971 = vadd.f32 %v575, %v843
        %v972 = vadd.f32 %v576, %v844
        %v973 = vadd.f32 %v577, %v845
        %v974 = vadd.f32 %v578, %v846
        %v975 = vadd.f32 %v579, %v847
        %v976 = vadd.f32 %v580, %v848
        %v977 = vadd.f32 %v581, %v849
        %v978 = vadd.f32 %v582, %v850
        %v979 = vadd.f32 %v583, %v851
        %v980 = vadd.f32 %v584, %v852
        %v981 = vadd.f32 %v585, %v853
        %v982 = vadd.f32 %v586, %v854
        %v983 = vadd.f32 %v587, %v855
        %v984 = vadd.f32 %v588, %v856
        %v985 = vadd.f32 %v589, %v857
        %v986 = vadd.f32 %v590, %v858
        %v987 = vadd.f32 %v591, %v859
        %v988 = vadd.f32 %v592, %v860
        %v989 = vadd.f32 %v593, %v861
        %v990 = vadd.f32 %v594, %v862
        %v991 = vadd.f32 %v595, %v863
        %v992 = vadd.f32 %v596, %v864
        %v993 = vadd.f32 %v597, %v865
        %v994 = vadd.f32 %v598, %v866
        %v995 = vadd.f32 %v599, %v867
        %v996 = vadd.f32 %v600, %v868
        %v997 = vadd.f32 %v601, %v869
        %v998 = vadd.f32 %v602, %v870
        %v999 = vadd.f32 %v603, %v871
        %v1000 = vadd.f32 %v604, %v872
        %v1001 = vadd.f32 %v605, %v873
        %v1002 = vadd.f32 %v606, %v874
        %v1003 = vadd.f32 %v607, %v875
        %v1004 = vadd.f32 %v608, %v876
        %v1005 = vadd.f32 %v609, %v877
        %v1006 = vadd.f32 %v610, %v878
        %v1007 = vadd.f32 %v611, %v879
        %v1008 = vadd.f32 %v612, %v880
        %v1009 = vadd.f32 %v613, %v881
        %v1010 = vadd.f32 %v614, %v882
        %v1011 = vadd.f32 %v615, %v883
        %v1012 = vadd.f32 %v616, %v884
        %v1013 = vadd.f32 %v617, %v885
        %1014 = vset.pattern.permute.xlu0 2
        %1015 = vperm.xlu0 %1014, %v284
        %v1016 = vpop.permute.xlu0 %1015
        %1018 = vset.pattern.permute.xlu0 2
        %1019 = vperm.xlu0 %1018, %v285
        %v1020 = vpop.permute.xlu0 %1019
        %1022 = vset.pattern.permute.xlu0 2
        %1023 = vperm.xlu0 %1022, %v286
        %v1024 = vpop.permute.xlu0 %1023
        %1026 = vset.pattern.permute.xlu0 2
        %1027 = vperm.xlu0 %1026, %v287
        %v1028 = vpop.permute.xlu0 %1027
        %1030 = vset.pattern.permute.xlu0 2
        %1031 = vperm.xlu0 %1030, %v288
        %v1032 = vpop.permute.xlu0 %1031
        %1034 = vset.pattern.permute.xlu0 2
        %1035 = vperm.xlu0 %1034, %v289
        %v1036 = vpop.permute.xlu0 %1035
        %1038 = vset.pattern.permute.xlu0 2
        %1039 = vperm.xlu0 %1038, %v290
        %v1040 = vpop.permute.xlu0 %1039
        %1042 = vset.pattern.permute.xlu0 2
        %1043 = vperm.xlu0 %1042, %v291
        %v1044 = vpop.permute.xlu0 %1043
        %1046 = vset.pattern.permute.xlu0 2
        %1047 = vperm.xlu0 %1046, %v292
        %v1048 = vpop.permute.xlu0 %1047
        %1050 = vset.pattern.permute.xlu0 2
        %1051 = vperm.xlu0 %1050, %v293
        %v1052 = vpop.permute.xlu0 %1051
        %1054 = vset.pattern.permute.xlu0 2
        %1055 = vperm.xlu0 %1054, %v294
        %v1056 = vpop.permute.xlu0 %1055
        %1058 = vset.pattern.permute.xlu0 2
        %1059 = vperm.xlu0 %1058, %v295
        %v1060 = vpop.permute.xlu0 %1059
        %1062 = vset.pattern.permute.xlu0 2
        %1063 = vperm.xlu0 %1062, %v296
        %v1064 = vpop.permute.xlu0 %1063
        %1066 = vset.pattern.permute.xlu0 2
        %1067 = vperm.xlu0 %1066, %v297
        %v1068 = vpop.permute.xlu0 %1067
        %1070 = vset.pattern.permute.xlu0 2
        %1071 = vperm.xlu0 %1070, %v298
        %v1072 = vpop.permute.xlu0 %1071
        %1074 = vset.pattern.permute.xlu0 2
        %1075 = vperm.xlu0 %1074, %v299
        %v1076 = vpop.permute.xlu0 %1075
        %1078 = vset.pattern.permute.xlu0 2
        %1079 = vperm.xlu0 %1078, %v300
        %v1080 = vpop.permute.xlu0 %1079
        %1082 = vset.pattern.permute.xlu0 2
        %1083 = vperm.xlu0 %1082, %v301
        %v1084 = vpop.permute.xlu0 %1083
        %1086 = vset.pattern.permute.xlu0 2
        %1087 = vperm.xlu0 %1086, %v302
        %v1088 = vpop.permute.xlu0 %1087
        %1090 = vset.pattern.permute.xlu0 2
        %1091 = vperm.xlu0 %1090, %v303
        %v1092 = vpop.permute.xlu0 %1091
        %1094 = vset.pattern.permute.xlu0 2
        %1095 = vperm.xlu0 %1094, %v304
        %v1096 = vpop.permute.xlu0 %1095
        %1098 = vset.pattern.permute.xlu0 2
        %1099 = vperm.xlu0 %1098, %v305
        %v1100 = vpop.permute.xlu0 %1099
        %1102 = vset.pattern.permute.xlu0 2
        %1103 = vperm.xlu0 %1102, %v306
        %v1104 = vpop.permute.xlu0 %1103
        %1106 = vset.pattern.permute.xlu0 2
        %1107 = vperm.xlu0 %1106, %v307
        %v1108 = vpop.permute.xlu0 %1107
        %1110 = vset.pattern.permute.xlu0 2
        %1111 = vperm.xlu0 %1110, %v308
        %v1112 = vpop.permute.xlu0 %1111
        %1114 = vset.pattern.permute.xlu0 2
        %1115 = vperm.xlu0 %1114, %v309
        %v1116 = vpop.permute.xlu0 %1115
        %1118 = vset.pattern.permute.xlu0 2
        %1119 = vperm.xlu0 %1118, %v310
        %v1120 = vpop.permute.xlu0 %1119
        %1122 = vset.pattern.permute.xlu0 2
        %1123 = vperm.xlu0 %1122, %v311
        %v1124 = vpop.permute.xlu0 %1123
        %1126 = vset.pattern.permute.xlu0 2
        %1127 = vperm.xlu0 %1126, %v312
        %v1128 = vpop.permute.xlu0 %1127
        %1130 = vset.pattern.permute.xlu0 2
        %1131 = vperm.xlu0 %1130, %v313
        %v1132 = vpop.permute.xlu0 %1131
        %1134 = vset.pattern.permute.xlu0 2
        %1135 = vperm.xlu0 %1134, %v314
        %v1136 = vpop.permute.xlu0 %1135
        %1138 = vset.pattern.permute.xlu0 2
        %1139 = vperm.xlu0 %1138, %v315
        %v1140 = vpop.permute.xlu0 %1139
        %v1142 = vperm.slane %v282, 2
        %v1143 = vperm.slane %v282, 6
        %v1144 = vperm.slane %v283, 2
        %v1145 = vperm.slane %v283, 6
        %v1150 = vperm.slane %v1142, 2
        %v1151 = vperm.slane %v1143, 2
        %v1152 = vperm.slane %v1144, 2
        %v1153 = vperm.slane %v1145, 2
        %v1154 = vmul.f32 %v1016, %v1150
        %v1155 = vmul.f32 %v1016, %v1151
        %v1156 = vmul.f32 %v1016, %v1152
        %v1157 = vmul.f32 %v1016, %v1153
        %v1158 = vmul.f32 %v1020, %v1150
        %v1159 = vmul.f32 %v1020, %v1151
        %v1160 = vmul.f32 %v1020, %v1152
        %v1161 = vmul.f32 %v1020, %v1153
        %v1162 = vmul.f32 %v1024, %v1150
        %v1163 = vmul.f32 %v1024, %v1151
        %v1164 = vmul.f32 %v1024, %v1152
        %v1165 = vmul.f32 %v1024, %v1153
        %v1166 = vmul.f32 %v1028, %v1150
        %v1167 = vmul.f32 %v1028, %v1151
        %v1168 = vmul.f32 %v1028, %v1152
        %v1169 = vmul.f32 %v1028, %v1153
        %v1170 = vmul.f32 %v1032, %v1150
        %v1171 = vmul.f32 %v1032, %v1151
        %v1172 = vmul.f32 %v1032, %v1152
        %v1173 = vmul.f32 %v1032, %v1153
        %v1174 = vmul.f32 %v1036, %v1150
        %v1175 = vmul.f32 %v1036, %v1151
        %v1176 = vmul.f32 %v1036, %v1152
        %v1177 = vmul.f32 %v1036, %v1153
        %v1178 = vmul.f32 %v1040, %v1150
        %v1179 = vmul.f32 %v1040, %v1151
        %v1180 = vmul.f32 %v1040, %v1152
        %v1181 = vmul.f32 %v1040, %v1153
        %v1182 = vmul.f32 %v1044, %v1150
        %v1183 = vmul.f32 %v1044, %v1151
        %v1184 = vmul.f32 %v1044, %v1152
        %v1185 = vmul.f32 %v1044, %v1153
        %v1186 = vmul.f32 %v1048, %v1150
        %v1187 = vmul.f32 %v1048, %v1151
        %v1188 = vmul.f32 %v1048, %v1152
        %v1189 = vmul.f32 %v1048, %v1153
        %v1190 = vmul.f32 %v1052, %v1150
        %v1191 = vmul.f32 %v1052, %v1151
        %v1192 = vmul.f32 %v1052, %v1152
        %v1193 = vmul.f32 %v1052, %v1153
        %v1194 = vmul.f32 %v1056, %v1150
        %v1195 = vmul.f32 %v1056, %v1151
        %v1196 = vmul.f32 %v1056, %v1152
        %v1197 = vmul.f32 %v1056, %v1153
        %v1198 = vmul.f32 %v1060, %v1150
        %v1199 = vmul.f32 %v1060, %v1151
        %v1200 = vmul.f32 %v1060, %v1152
        %v1201 = vmul.f32 %v1060, %v1153
        %v1202 = vmul.f32 %v1064, %v1150
        %v1203 = vmul.f32 %v1064, %v1151
        %v1204 = vmul.f32 %v1064, %v1152
        %v1205 = vmul.f32 %v1064, %v1153
        %v1206 = vmul.f32 %v1068, %v1150
        %v1207 = vmul.f32 %v1068, %v1151
        %v1208 = vmul.f32 %v1068, %v1152
        %v1209 = vmul.f32 %v1068, %v1153
        %v1210 = vmul.f32 %v1072, %v1150
        %v1211 = vmul.f32 %v1072, %v1151
        %v1212 = vmul.f32 %v1072, %v1152
        %v1213 = vmul.f32 %v1072, %v1153
        %v1214 = vmul.f32 %v1076, %v1150
        %v1215 = vmul.f32 %v1076, %v1151
        %v1216 = vmul.f32 %v1076, %v1152
        %v1217 = vmul.f32 %v1076, %v1153
        %v1218 = vmul.f32 %v1080, %v1150
        %v1219 = vmul.f32 %v1080, %v1151
        %v1220 = vmul.f32 %v1080, %v1152
        %v1221 = vmul.f32 %v1080, %v1153
        %v1222 = vmul.f32 %v1084, %v1150
        %v1223 = vmul.f32 %v1084, %v1151
        %v1224 = vmul.f32 %v1084, %v1152
        %v1225 = vmul.f32 %v1084, %v1153
        %v1226 = vmul.f32 %v1088, %v1150
        %v1227 = vmul.f32 %v1088, %v1151
        %v1228 = vmul.f32 %v1088, %v1152
        %v1229 = vmul.f32 %v1088, %v1153
        %v1230 = vmul.f32 %v1092, %v1150
        %v1231 = vmul.f32 %v1092, %v1151
        %v1232 = vmul.f32 %v1092, %v1152
        %v1233 = vmul.f32 %v1092, %v1153
        %v1234 = vmul.f32 %v1096, %v1150
        %v1235 = vmul.f32 %v1096, %v1151
        %v1236 = vmul.f32 %v1096, %v1152
        %v1237 = vmul.f32 %v1096, %v1153
        %v1238 = vmul.f32 %v1100, %v1150
        %v1239 = vmul.f32 %v1100, %v1151
        %v1240 = vmul.f32 %v1100, %v1152
        %v1241 = vmul.f32 %v1100, %v1153
        %v1242 = vmul.f32 %v1104, %v1150
        %v1243 = vmul.f32 %v1104, %v1151
        %v1244 = vmul.f32 %v1104, %v1152
        %v1245 = vmul.f32 %v1104, %v1153
        %v1246 = vmul.f32 %v1108, %v1150
        %v1247 = vmul.f32 %v1108, %v1151
        %v1248 = vmul.f32 %v1108, %v1152
        %v1249 = vmul.f32 %v1108, %v1153
        %v1250 = vmul.f32 %v1112, %v1150
        %v1251 = vmul.f32 %v1112, %v1151
        %v1252 = vmul.f32 %v1112, %v1152
        %v1253 = vmul.f32 %v1112, %v1153
        %v1254 = vmul.f32 %v1116, %v1150
        %v1255 = vmul.f32 %v1116, %v1151
        %v1256 = vmul.f32 %v1116, %v1152
        %v1257 = vmul.f32 %v1116, %v1153
        %v1258 = vmul.f32 %v1120, %v1150
        %v1259 = vmul.f32 %v1120, %v1151
        %v1260 = vmul.f32 %v1120, %v1152
        %v1261 = vmul.f32 %v1120, %v1153
        %v1262 = vmul.f32 %v1124, %v1150
        %v1263 = vmul.f32 %v1124, %v1151
        %v1264 = vmul.f32 %v1124, %v1152
        %v1265 = vmul.f32 %v1124, %v1153
        %v1266 = vmul.f32 %v1128, %v1150
        %v1267 = vmul.f32 %v1128, %v1151
        %v1268 = vmul.f32 %v1128, %v1152
        %v1269 = vmul.f32 %v1128, %v1153
        %v1270 = vmul.f32 %v1132, %v1150
        %v1271 = vmul.f32 %v1132, %v1151
        %v1272 = vmul.f32 %v1132, %v1152
        %v1273 = vmul.f32 %v1132, %v1153
        %v1274 = vmul.f32 %v1136, %v1150
        %v1275 = vmul.f32 %v1136, %v1151
        %v1276 = vmul.f32 %v1136, %v1152
        %v1277 = vmul.f32 %v1136, %v1153
        %v1278 = vmul.f32 %v1140, %v1150
        %v1279 = vmul.f32 %v1140, %v1151
        %v1280 = vmul.f32 %v1140, %v1152
        %v1281 = vmul.f32 %v1140, %v1153
        %v1282 = vadd.f32 %v886, %v1154
        %v1283 = vadd.f32 %v887, %v1155
        %v1284 = vadd.f32 %v888, %v1156
        %v1285 = vadd.f32 %v889, %v1157
        %v1286 = vadd.f32 %v890, %v1158
        %v1287 = vadd.f32 %v891, %v1159
        %v1288 = vadd.f32 %v892, %v1160
        %v1289 = vadd.f32 %v893, %v1161
        %v1290 = vadd.f32 %v894, %v1162
        %v1291 = vadd.f32 %v895, %v1163
        %v1292 = vadd.f32 %v896, %v1164
        %v1293 = vadd.f32 %v897, %v1165
        %v1294 = vadd.f32 %v898, %v1166
        %v1295 = vadd.f32 %v899, %v1167
        %v1296 = vadd.f32 %v900, %v1168
        %v1297 = vadd.f32 %v901, %v1169
        %v1298 = vadd.f32 %v902, %v1170
        %v1299 = vadd.f32 %v903, %v1171
        %v1300 = vadd.f32 %v904, %v1172
        %v1301 = vadd.f32 %v905, %v1173
        %v1302 = vadd.f32 %v906, %v1174
        %v1303 = vadd.f32 %v907, %v1175
        %v1304 = vadd.f32 %v908, %v1176
        %v1305 = vadd.f32 %v909, %v1177
        %v1306 = vadd.f32 %v910, %v1178
        %v1307 = vadd.f32 %v911, %v1179
        %v1308 = vadd.f32 %v912, %v1180
        %v1309 = vadd.f32 %v913, %v1181
        %v1310 = vadd.f32 %v914, %v1182
        %v1311 = vadd.f32 %v915, %v1183
        %v1312 = vadd.f32 %v916, %v1184
        %v1313 = vadd.f32 %v917, %v1185
        %v1314 = vadd.f32 %v918, %v1186
        %v1315 = vadd.f32 %v919, %v1187
        %v1316 = vadd.f32 %v920, %v1188
        %v1317 = vadd.f32 %v921, %v1189
        %v1318 = vadd.f32 %v922, %v1190
        %v1319 = vadd.f32 %v923, %v1191
        %v1320 = vadd.f32 %v924, %v1192
        %v1321 = vadd.f32 %v925, %v1193
        %v1322 = vadd.f32 %v926, %v1194
        %v1323 = vadd.f32 %v927, %v1195
        %v1324 = vadd.f32 %v928, %v1196
        %v1325 = vadd.f32 %v929, %v1197
        %v1326 = vadd.f32 %v930, %v1198
        %v1327 = vadd.f32 %v931, %v1199
        %v1328 = vadd.f32 %v932, %v1200
        %v1329 = vadd.f32 %v933, %v1201
        %v1330 = vadd.f32 %v934, %v1202
        %v1331 = vadd.f32 %v935, %v1203
        %v1332 = vadd.f32 %v936, %v1204
        %v1333 = vadd.f32 %v937, %v1205
        %v1334 = vadd.f32 %v938, %v1206
        %v1335 = vadd.f32 %v939, %v1207
        %v1336 = vadd.f32 %v940, %v1208
        %v1337 = vadd.f32 %v941, %v1209
        %v1338 = vadd.f32 %v942, %v1210
        %v1339 = vadd.f32 %v943, %v1211
        %v1340 = vadd.f32 %v944, %v1212
        %v1341 = vadd.f32 %v945, %v1213
        %v1342 = vadd.f32 %v946, %v1214
        %v1343 = vadd.f32 %v947, %v1215
        %v1344 = vadd.f32 %v948, %v1216
        %v1345 = vadd.f32 %v949, %v1217
        %v1346 = vadd.f32 %v950, %v1218
        %v1347 = vadd.f32 %v951, %v1219
        %v1348 = vadd.f32 %v952, %v1220
        %v1349 = vadd.f32 %v953, %v1221
        %v1350 = vadd.f32 %v954, %v1222
        %v1351 = vadd.f32 %v955, %v1223
        %v1352 = vadd.f32 %v956, %v1224
        %v1353 = vadd.f32 %v957, %v1225
        %v1354 = vadd.f32 %v958, %v1226
        %v1355 = vadd.f32 %v959, %v1227
        %v1356 = vadd.f32 %v960, %v1228
        %v1357 = vadd.f32 %v961, %v1229
        %v1358 = vadd.f32 %v962, %v1230
        %v1359 = vadd.f32 %v963, %v1231
        %v1360 = vadd.f32 %v964, %v1232
        %v1361 = vadd.f32 %v965, %v1233
        %v1362 = vadd.f32 %v966, %v1234
        %v1363 = vadd.f32 %v967, %v1235
        %v1364 = vadd.f32 %v968, %v1236
        %v1365 = vadd.f32 %v969, %v1237
        %v1366 = vadd.f32 %v970, %v1238
        %v1367 = vadd.f32 %v971, %v1239
        %v1368 = vadd.f32 %v972, %v1240
        %v1369 = vadd.f32 %v973, %v1241
        %v1370 = vadd.f32 %v974, %v1242
        %v1371 = vadd.f32 %v975, %v1243
        %v1372 = vadd.f32 %v976, %v1244
        %v1373 = vadd.f32 %v977, %v1245
        %v1374 = vadd.f32 %v978, %v1246
        %v1375 = vadd.f32 %v979, %v1247
        %v1376 = vadd.f32 %v980, %v1248
        %v1377 = vadd.f32 %v981, %v1249
        %v1378 = vadd.f32 %v982, %v1250
        %v1379 = vadd.f32 %v983, %v1251
        %v1380 = vadd.f32 %v984, %v1252
        %v1381 = vadd.f32 %v985, %v1253
        %v1382 = vadd.f32 %v986, %v1254
        %v1383 = vadd.f32 %v987, %v1255
        %v1384 = vadd.f32 %v988, %v1256
        %v1385 = vadd.f32 %v989, %v1257
        %v1386 = vadd.f32 %v990, %v1258
        %v1387 = vadd.f32 %v991, %v1259
        %v1388 = vadd.f32 %v992, %v1260
        %v1389 = vadd.f32 %v993, %v1261
        %v1390 = vadd.f32 %v994, %v1262
        %v1391 = vadd.f32 %v995, %v1263
        %v1392 = vadd.f32 %v996, %v1264
        %v1393 = vadd.f32 %v997, %v1265
        %v1394 = vadd.f32 %v998, %v1266
        %v1395 = vadd.f32 %v999, %v1267
        %v1396 = vadd.f32 %v1000, %v1268
        %v1397 = vadd.f32 %v1001, %v1269
        %v1398 = vadd.f32 %v1002, %v1270
        %v1399 = vadd.f32 %v1003, %v1271
        %v1400 = vadd.f32 %v1004, %v1272
        %v1401 = vadd.f32 %v1005, %v1273
        %v1402 = vadd.f32 %v1006, %v1274
        %v1403 = vadd.f32 %v1007, %v1275
        %v1404 = vadd.f32 %v1008, %v1276
        %v1405 = vadd.f32 %v1009, %v1277
        %v1406 = vadd.f32 %v1010, %v1278
        %v1407 = vadd.f32 %v1011, %v1279
        %v1408 = vadd.f32 %v1012, %v1280
        %v1409 = vadd.f32 %v1013, %v1281
        %v1410 = vld [vmem:[%s2] sm:$0xff]
        %v1411 = vld [vmem:[%s2 + $0x8] sm:$0xff]
        %v1412 = vld [vmem:[%s2 + $0x10] sm:$0xff]
        %v1413 = vld [vmem:[%s2 + $0x18] sm:$0xff]
        %v1414 = vld [vmem:[%s2 + $0x20] sm:$0xff]
        %v1415 = vld [vmem:[%s2 + $0x28] sm:$0xff]
        %v1416 = vld [vmem:[%s2 + $0x30] sm:$0xff]
        %v1417 = vld [vmem:[%s2 + $0x38] sm:$0xff]
        %v1418 = vld [vmem:[%s2 + $0x40] sm:$0xff]
        %v1419 = vld [vmem:[%s2 + $0x48] sm:$0xff]
        %v1420 = vld [vmem:[%s2 + $0x50] sm:$0xff]
        %v1421 = vld [vmem:[%s2 + $0x58] sm:$0xff]
        %v1422 = vld [vmem:[%s2 + $0x60] sm:$0xff]
        %v1423 = vld [vmem:[%s2 + $0x68] sm:$0xff]
        %v1424 = vld [vmem:[%s2 + $0x70] sm:$0xff]
        %v1425 = vld [vmem:[%s2 + $0x78] sm:$0xff]
        %v1426 = vld [vmem:[%s2 + $0x80] sm:$0xff]
        %v1427 = vld [vmem:[%s2 + $0x88] sm:$0xff]
        %v1428 = vld [vmem:[%s2 + $0x90] sm:$0xff]
        %v1429 = vld [vmem:[%s2 + $0x98] sm:$0xff]
        %v1430 = vld [vmem:[%s2 + $0xa0] sm:$0xff]
        %v1431 = vld [vmem:[%s2 + $0xa8] sm:$0xff]
        %v1432 = vld [vmem:[%s2 + $0xb0] sm:$0xff]
        %v1433 = vld [vmem:[%s2 + $0xb8] sm:$0xff]
        %v1434 = vld [vmem:[%s2 + $0xc0] sm:$0xff]
        %v1435 = vld [vmem:[%s2 + $0xc8] sm:$0xff]
        %v1436 = vld [vmem:[%s2 + $0xd0] sm:$0xff]
        %v1437 = vld [vmem:[%s2 + $0xd8] sm:$0xff]
        %v1438 = vld [vmem:[%s2 + $0xe0] sm:$0xff]
        %v1439 = vld [vmem:[%s2 + $0xe8] sm:$0xff]
        %v1440 = vld [vmem:[%s2 + $0xf0] sm:$0xff]
        %v1441 = vld [vmem:[%s2 + $0xf8] sm:$0xff]
        %1443 = vset.pattern.permute.xlu0 0
        %1444 = vperm.xlu0 %1443, %v1410
        %v1445 = vpop.permute.xlu0 %1444
        %1448 = vset.pattern.permute.xlu0 0
        %1449 = vperm.xlu0 %1448, %v1411
        %v1450 = vpop.permute.xlu0 %1449
        %1453 = vset.pattern.permute.xlu0 0
        %1454 = vperm.xlu0 %1453, %v1412
        %v1455 = vpop.permute.xlu0 %1454
        %1458 = vset.pattern.permute.xlu0 0
        %1459 = vperm.xlu0 %1458, %v1413
        %v1460 = vpop.permute.xlu0 %1459
        %1463 = vset.pattern.permute.xlu0 0
        %1464 = vperm.xlu0 %1463, %v1414
        %v1465 = vpop.permute.xlu0 %1464
        %1468 = vset.pattern.permute.xlu0 0
        %1469 = vperm.xlu0 %1468, %v1415
        %v1470 = vpop.permute.xlu0 %1469
        %1473 = vset.pattern.permute.xlu0 0
        %1474 = vperm.xlu0 %1473, %v1416
        %v1475 = vpop.permute.xlu0 %1474
        %1478 = vset.pattern.permute.xlu0 0
        %1479 = vperm.xlu0 %1478, %v1417
        %v1480 = vpop.permute.xlu0 %1479
        %1483 = vset.pattern.permute.xlu0 0
        %1484 = vperm.xlu0 %1483, %v1418
        %v1485 = vpop.permute.xlu0 %1484
        %1488 = vset.pattern.permute.xlu0 0
        %1489 = vperm.xlu0 %1488, %v1419
        %v1490 = vpop.permute.xlu0 %1489
        %1493 = vset.pattern.permute.xlu0 0
        %1494 = vperm.xlu0 %1493, %v1420
        %v1495 = vpop.permute.xlu0 %1494
        %1498 = vset.pattern.permute.xlu0 0
        %1499 = vperm.xlu0 %1498, %v1421
        %v1500 = vpop.permute.xlu0 %1499
        %1503 = vset.pattern.permute.xlu0 0
        %1504 = vperm.xlu0 %1503, %v1422
        %v1505 = vpop.permute.xlu0 %1504
        %1508 = vset.pattern.permute.xlu0 0
        %1509 = vperm.xlu0 %1508, %v1423
        %v1510 = vpop.permute.xlu0 %1509
        %1513 = vset.pattern.permute.xlu0 0
        %1514 = vperm.xlu0 %1513, %v1424
        %v1515 = vpop.permute.xlu0 %1514
        %1518 = vset.pattern.permute.xlu0 0
        %1519 = vperm.xlu0 %1518, %v1425
        %v1520 = vpop.permute.xlu0 %1519
        %1523 = vset.pattern.permute.xlu0 0
        %1524 = vperm.xlu0 %1523, %v1426
        %v1525 = vpop.permute.xlu0 %1524
        %1528 = vset.pattern.permute.xlu0 0
        %1529 = vperm.xlu0 %1528, %v1427
        %v1530 = vpop.permute.xlu0 %1529
        %1533 = vset.pattern.permute.xlu0 0
        %1534 = vperm.xlu0 %1533, %v1428
        %v1535 = vpop.permute.xlu0 %1534
        %1538 = vset.pattern.permute.xlu0 0
        %1539 = vperm.xlu0 %1538, %v1429
        %v1540 = vpop.permute.xlu0 %1539
        %1543 = vset.pattern.permute.xlu0 0
        %1544 = vperm.xlu0 %1543, %v1430
        %v1545 = vpop.permute.xlu0 %1544
        %1548 = vset.pattern.permute.xlu0 0
        %1549 = vperm.xlu0 %1548, %v1431
        %v1550 = vpop.permute.xlu0 %1549
        %1553 = vset.pattern.permute.xlu0 0
        %1554 = vperm.xlu0 %1553, %v1432
        %v1555 = vpop.permute.xlu0 %1554
        %1558 = vset.pattern.permute.xlu0 0
        %1559 = vperm.xlu0 %1558, %v1433
        %v1560 = vpop.permute.xlu0 %1559
        %1563 = vset.pattern.permute.xlu0 0
        %1564 = vperm.xlu0 %1563, %v1434
        %v1565 = vpop.permute.xlu0 %1564
        %1568 = vset.pattern.permute.xlu0 0
        %1569 = vperm.xlu0 %1568, %v1435
        %v1570 = vpop.permute.xlu0 %1569
        %1573 = vset.pattern.permute.xlu0 0
        %1574 = vperm.xlu0 %1573, %v1436
        %v1575 = vpop.permute.xlu0 %1574
        %1578 = vset.pattern.permute.xlu0 0
        %1579 = vperm.xlu0 %1578, %v1437
        %v1580 = vpop.permute.xlu0 %1579
        %1583 = vset.pattern.permute.xlu0 0
        %1584 = vperm.xlu0 %1583, %v1438
        %v1585 = vpop.permute.xlu0 %1584
        %1588 = vset.pattern.permute.xlu0 0
        %1589 = vperm.xlu0 %1588, %v1439
        %v1590 = vpop.permute.xlu0 %1589
        %1593 = vset.pattern.permute.xlu0 0
        %1594 = vperm.xlu0 %1593, %v1440
        %v1595 = vpop.permute.xlu0 %1594
        %1598 = vset.pattern.permute.xlu0 0
        %1599 = vperm.xlu0 %1598, %v1441
        %v1600 = vpop.permute.xlu0 %1599
        %v1602 = vadd.f32 %v1282, %v1445
        %v1603 = vadd.f32 %v1283, %v1445
        %v1604 = vadd.f32 %v1284, %v1445
        %v1605 = vadd.f32 %v1285, %v1445
        %v1606 = vadd.f32 %v1286, %v1450
        %v1607 = vadd.f32 %v1287, %v1450
        %v1608 = vadd.f32 %v1288, %v1450
        %v1609 = vadd.f32 %v1289, %v1450
        %v1610 = vadd.f32 %v1290, %v1455
        %v1611 = vadd.f32 %v1291, %v1455
        %v1612 = vadd.f32 %v1292, %v1455
        %v1613 = vadd.f32 %v1293, %v1455
        %v1614 = vadd.f32 %v1294, %v1460
        %v1615 = vadd.f32 %v1295, %v1460
        %v1616 = vadd.f32 %v1296, %v1460
        %v1617 = vadd.f32 %v1297, %v1460
        %v1618 = vadd.f32 %v1298, %v1465
        %v1619 = vadd.f32 %v1299, %v1465
        %v1620 = vadd.f32 %v1300, %v1465
        %v1621 = vadd.f32 %v1301, %v1465
        %v1622 = vadd.f32 %v1302, %v1470
        %v1623 = vadd.f32 %v1303, %v1470
        %v1624 = vadd.f32 %v1304, %v1470
        %v1625 = vadd.f32 %v1305, %v1470
        %v1626 = vadd.f32 %v1306, %v1475
        %v1627 = vadd.f32 %v1307, %v1475
        %v1628 = vadd.f32 %v1308, %v1475
        %v1629 = vadd.f32 %v1309, %v1475
        %v1630 = vadd.f32 %v1310, %v1480
        %v1631 = vadd.f32 %v1311, %v1480
        %v1632 = vadd.f32 %v1312, %v1480
        %v1633 = vadd.f32 %v1313, %v1480
        %v1634 = vadd.f32 %v1314, %v1485
        %v1635 = vadd.f32 %v1315, %v1485
        %v1636 = vadd.f32 %v1316, %v1485
        %v1637 = vadd.f32 %v1317, %v1485
        %v1638 = vadd.f32 %v1318, %v1490
        %v1639 = vadd.f32 %v1319, %v1490
        %v1640 = vadd.f32 %v1320, %v1490
        %v1641 = vadd.f32 %v1321, %v1490
        %v1642 = vadd.f32 %v1322, %v1495
        %v1643 = vadd.f32 %v1323, %v1495
        %v1644 = vadd.f32 %v1324, %v1495
        %v1645 = vadd.f32 %v1325, %v1495
        %v1646 = vadd.f32 %v1326, %v1500
        %v1647 = vadd.f32 %v1327, %v1500
        %v1648 = vadd.f32 %v1328, %v1500
        %v1649 = vadd.f32 %v1329, %v1500
        %v1650 = vadd.f32 %v1330, %v1505
        %v1651 = vadd.f32 %v1331, %v1505
        %v1652 = vadd.f32 %v1332, %v1505
        %v1653 = vadd.f32 %v1333, %v1505
        %v1654 = vadd.f32 %v1334, %v1510
        %v1655 = vadd.f32 %v1335, %v1510
        %v1656 = vadd.f32 %v1336, %v1510
        %v1657 = vadd.f32 %v1337, %v1510
        %v1658 = vadd.f32 %v1338, %v1515
        %v1659 = vadd.f32 %v1339, %v1515
        %v1660 = vadd.f32 %v1340, %v1515
        %v1661 = vadd.f32 %v1341, %v1515
        %v1662 = vadd.f32 %v1342, %v1520
        %v1663 = vadd.f32 %v1343, %v1520
        %v1664 = vadd.f32 %v1344, %v1520
        %v1665 = vadd.f32 %v1345, %v1520
        %v1666 = vadd.f32 %v1346, %v1525
        %v1667 = vadd.f32 %v1347, %v1525
        %v1668 = vadd.f32 %v1348, %v1525
        %v1669 = vadd.f32 %v1349, %v1525
        %v1670 = vadd.f32 %v1350, %v1530
        %v1671 = vadd.f32 %v1351, %v1530
        %v1672 = vadd.f32 %v1352, %v1530
        %v1673 = vadd.f32 %v1353, %v1530
        %v1674 = vadd.f32 %v1354, %v1535
        %v1675 = vadd.f32 %v1355, %v1535
        %v1676 = vadd.f32 %v1356, %v1535
        %v1677 = vadd.f32 %v1357, %v1535
        %v1678 = vadd.f32 %v1358, %v1540
        %v1679 = vadd.f32 %v1359, %v1540
        %v1680 = vadd.f32 %v1360, %v1540
        %v1681 = vadd.f32 %v1361, %v1540
        %v1682 = vadd.f32 %v1362, %v1545
        %v1683 = vadd.f32 %v1363, %v1545
        %v1684 = vadd.f32 %v1364, %v1545
        %v1685 = vadd.f32 %v1365, %v1545
        %v1686 = vadd.f32 %v1366, %v1550
        %v1687 = vadd.f32 %v1367, %v1550
        %v1688 = vadd.f32 %v1368, %v1550
        %v1689 = vadd.f32 %v1369, %v1550
        %v1690 = vadd.f32 %v1370, %v1555
        %v1691 = vadd.f32 %v1371, %v1555
        %v1692 = vadd.f32 %v1372, %v1555
        %v1693 = vadd.f32 %v1373, %v1555
        %v1694 = vadd.f32 %v1374, %v1560
        %v1695 = vadd.f32 %v1375, %v1560
        %v1696 = vadd.f32 %v1376, %v1560
        %v1697 = vadd.f32 %v1377, %v1560
        %v1698 = vadd.f32 %v1378, %v1565
        %v1699 = vadd.f32 %v1379, %v1565
        %v1700 = vadd.f32 %v1380, %v1565
        %v1701 = vadd.f32 %v1381, %v1565
        %v1702 = vadd.f32 %v1382, %v1570
        %v1703 = vadd.f32 %v1383, %v1570
        %v1704 = vadd.f32 %v1384, %v1570
        %v1705 = vadd.f32 %v1385, %v1570
        %v1706 = vadd.f32 %v1386, %v1575
        %v1707 = vadd.f32 %v1387, %v1575
        %v1708 = vadd.f32 %v1388, %v1575
        %v1709 = vadd.f32 %v1389, %v1575
        %v1710 = vadd.f32 %v1390, %v1580
        %v1711 = vadd.f32 %v1391, %v1580
        %v1712 = vadd.f32 %v1392, %v1580
        %v1713 = vadd.f32 %v1393, %v1580
        %v1714 = vadd.f32 %v1394, %v1585
        %v1715 = vadd.f32 %v1395, %v1585
        %v1716 = vadd.f32 %v1396, %v1585
        %v1717 = vadd.f32 %v1397, %v1585
        %v1718 = vadd.f32 %v1398, %v1590
        %v1719 = vadd.f32 %v1399, %v1590
        %v1720 = vadd.f32 %v1400, %v1590
        %v1721 = vadd.f32 %v1401, %v1590
        %v1722 = vadd.f32 %v1402, %v1595
        %v1723 = vadd.f32 %v1403, %v1595
        %v1724 = vadd.f32 %v1404, %v1595
        %v1725 = vadd.f32 %v1405, %v1595
        %v1726 = vadd.f32 %v1406, %v1600
        %v1727 = vadd.f32 %v1407, %v1600
        %v1728 = vadd.f32 %v1408, %v1600
        %v1729 = vadd.f32 %v1409, %v1600
        %v1730 = vmax.f32 %v1602, 0.0
        %v1731 = vmax.f32 %v1603, 0.0
        %v1732 = vmax.f32 %v1604, 0.0
        %v1733 = vmax.f32 %v1605, 0.0
        %v1734 = vmax.f32 %v1606, 0.0
        %v1735 = vmax.f32 %v1607, 0.0
        %v1736 = vmax.f32 %v1608, 0.0
        %v1737 = vmax.f32 %v1609, 0.0
        %v1738 = vmax.f32 %v1610, 0.0
        %v1739 = vmax.f32 %v1611, 0.0
        %v1740 = vmax.f32 %v1612, 0.0
        %v1741 = vmax.f32 %v1613, 0.0
        %v1742 = vmax.f32 %v1614, 0.0
        %v1743 = vmax.f32 %v1615, 0.0
        %v1744 = vmax.f32 %v1616, 0.0
        %v1745 = vmax.f32 %v1617, 0.0
        %v1746 = vmax.f32 %v1618, 0.0
        %v1747 = vmax.f32 %v1619, 0.0
        %v1748 = vmax.f32 %v1620, 0.0
        %v1749 = vmax.f32 %v1621, 0.0
        %v1750 = vmax.f32 %v1622, 0.0
        %v1751 = vmax.f32 %v1623, 0.0
        %v1752 = vmax.f32 %v1624, 0.0
        %v1753 = vmax.f32 %v1625, 0.0
        %v1754 = vmax.f32 %v1626, 0.0
        %v1755 = vmax.f32 %v1627, 0.0
        %v1756 = vmax.f32 %v1628, 0.0
        %v1757 = vmax.f32 %v1629, 0.0
        %v1758 = vmax.f32 %v1630, 0.0
        %v1759 = vmax.f32 %v1631, 0.0
        %v1760 = vmax.f32 %v1632, 0.0
        %v1761 = vmax.f32 %v1633, 0.0
        %v1762 = vmax.f32 %v1634, 0.0
        %v1763 = vmax.f32 %v1635, 0.0
        %v1764 = vmax.f32 %v1636, 0.0
        %v1765 = vmax.f32 %v1637, 0.0
        %v1766 = vmax.f32 %v1638, 0.0
        %v1767 = vmax.f32 %v1639, 0.0
        %v1768 = vmax.f32 %v1640, 0.0
        %v1769 = vmax.f32 %v1641, 0.0
        %v1770 = vmax.f32 %v1642, 0.0
        %v1771 = vmax.f32 %v1643, 0.0
        %v1772 = vmax.f32 %v1644, 0.0
        %v1773 = vmax.f32 %v1645, 0.0
        %v1774 = vmax.f32 %v1646, 0.0
        %v1775 = vmax.f32 %v1647, 0.0
        %v1776 = vmax.f32 %v1648, 0.0
        %v1777 = vmax.f32 %v1649, 0.0
        %v1778 = vmax.f32 %v1650, 0.0
        %v1779 = vmax.f32 %v1651, 0.0
        %v1780 = vmax.f32 %v1652, 0.0
        %v1781 = vmax.f32 %v1653, 0.0
        %v1782 = vmax.f32 %v1654, 0.0
        %v1783 = vmax.f32 %v1655, 0.0
        %v1784 = vmax.f32 %v1656, 0.0
        %v1785 = vmax.f32 %v1657, 0.0
        %v1786 = vmax.f32 %v1658, 0.0
        %v1787 = vmax.f32 %v1659, 0.0
        %v1788 = vmax.f32 %v1660, 0.0
        %v1789 = vmax.f32 %v1661, 0.0
        %v1790 = vmax.f32 %v1662, 0.0
        %v1791 = vmax.f32 %v1663, 0.0
        %v1792 = vmax.f32 %v1664, 0.0
        %v1793 = vmax.f32 %v1665, 0.0
        %v1794 = vmax.f32 %v1666, 0.0
        %v1795 = vmax.f32 %v1667, 0.0
        %v1796 = vmax.f32 %v1668, 0.0
        %v1797 = vmax.f32 %v1669, 0.0
        %v1798 = vmax.f32 %v1670, 0.0
        %v1799 = vmax.f32 %v1671, 0.0
        %v1800 = vmax.f32 %v1672, 0.0
        %v1801 = vmax.f32 %v1673, 0.0
        %v1802 = vmax.f32 %v1674, 0.0
        %v1803 = vmax.f32 %v1675, 0.0
        %v1804 = vmax.f32 %v1676, 0.0
        %v1805 = vmax.f32 %v1677, 0.0
        %v1806 = vmax.f32 %v1678, 0.0
        %v1807 = vmax.f32 %v1679, 0.0
        %v1808 = vmax.f32 %v1680, 0.0
        %v1809 = vmax.f32 %v1681, 0.0
        %v1810 = vmax.f32 %v1682, 0.0
        %v1811 = vmax.f32 %v1683, 0.0
        %v1812 = vmax.f32 %v1684, 0.0
        %v1813 = vmax.f32 %v1685, 0.0
        %v1814 = vmax.f32 %v1686, 0.0
        %v1815 = vmax.f32 %v1687, 0.0
        %v1816 = vmax.f32 %v1688, 0.0
        %v1817 = vmax.f32 %v1689, 0.0
        %v1818 = vmax.f32 %v1690, 0.0
        %v1819 = vmax.f32 %v1691, 0.0
        %v1820 = vmax.f32 %v1692, 0.0
        %v1821 = vmax.f32 %v1693, 0.0
        %v1822 = vmax.f32 %v1694, 0.0
        %v1823 = vmax.f32 %v1695, 0.0
        %v1824 = vmax.f32 %v1696, 0.0
        %v1825 = vmax.f32 %v1697, 0.0
        %v1826 = vmax.f32 %v1698, 0.0
        %v1827 = vmax.f32 %v1699, 0.0
        %v1828 = vmax.f32 %v1700, 0.0
        %v1829 = vmax.f32 %v1701, 0.0
        %v1830 = vmax.f32 %v1702, 0.0
        %v1831 = vmax.f32 %v1703, 0.0
        %v1832 = vmax.f32 %v1704, 0.0
        %v1833 = vmax.f32 %v1705, 0.0
        %v1834 = vmax.f32 %v1706, 0.0
        %v1835 = vmax.f32 %v1707, 0.0
        %v1836 = vmax.f32 %v1708, 0.0
        %v1837 = vmax.f32 %v1709, 0.0
        %v1838 = vmax.f32 %v1710, 0.0
        %v1839 = vmax.f32 %v1711, 0.0
        %v1840 = vmax.f32 %v1712, 0.0
        %v1841 = vmax.f32 %v1713, 0.0
        %v1842 = vmax.f32 %v1714, 0.0
        %v1843 = vmax.f32 %v1715, 0.0
        %v1844 = vmax.f32 %v1716, 0.0
        %v1845 = vmax.f32 %v1717, 0.0
        %v1846 = vmax.f32 %v1718, 0.0
        %v1847 = vmax.f32 %v1719, 0.0
        %v1848 = vmax.f32 %v1720, 0.0
        %v1849 = vmax.f32 %v1721, 0.0
        %v1850 = vmax.f32 %v1722, 0.0
        %v1851 = vmax.f32 %v1723, 0.0
        %v1852 = vmax.f32 %v1724, 0.0
        %v1853 = vmax.f32 %v1725, 0.0
        %v1854 = vmax.f32 %v1726, 0.0
        %v1855 = vmax.f32 %v1727, 0.0
        %v1856 = vmax.f32 %v1728, 0.0
        %v1857 = vmax.f32 %v1729, 0.0
        %v1858 = vld [vmem:[%s3] sm:$0xff]
        %v1859 = vld [vmem:[%s3 + $0x8] sm:$0xff]
        %v1860 = vld [vmem:[%s3 + $0x10] sm:$0xff]
        %v1861 = vld [vmem:[%s3 + $0x18] sm:$0xff]
        %v1862 = vld [vmem:[%s3 + $0x20] sm:$0xff]
        %v1863 = vld [vmem:[%s3 + $0x28] sm:$0xff]
        %v1864 = vld [vmem:[%s3 + $0x30] sm:$0xff]
        %v1865 = vld [vmem:[%s3 + $0x38] sm:$0xff]
        %v1866 = vld [vmem:[%s3 + $0x40] sm:$0xff]
        %v1867 = vld [vmem:[%s3 + $0x48] sm:$0xff]
        %v1868 = vld [vmem:[%s3 + $0x50] sm:$0xff]
        %v1869 = vld [vmem:[%s3 + $0x58] sm:$0xff]
        %v1870 = vld [vmem:[%s3 + $0x60] sm:$0xff]
        %v1871 = vld [vmem:[%s3 + $0x68] sm:$0xff]
        %v1872 = vld [vmem:[%s3 + $0x70] sm:$0xff]
        %v1873 = vld [vmem:[%s3 + $0x78] sm:$0xff]
        %v1874 = vld [vmem:[%s3 + $0x80] sm:$0xff]
        %v1875 = vld [vmem:[%s3 + $0x88] sm:$0xff]
        %v1876 = vld [vmem:[%s3 + $0x90] sm:$0xff]
        %v1877 = vld [vmem:[%s3 + $0x98] sm:$0xff]
        %v1878 = vld [vmem:[%s3 + $0xa0] sm:$0xff]
        %v1879 = vld [vmem:[%s3 + $0xa8] sm:$0xff]
        %v1880 = vld [vmem:[%s3 + $0xb0] sm:$0xff]
        %v1881 = vld [vmem:[%s3 + $0xb8] sm:$0xff]
        %v1882 = vld [vmem:[%s3 + $0xc0] sm:$0xff]
        %v1883 = vld [vmem:[%s3 + $0xc8] sm:$0xff]
        %v1884 = vld [vmem:[%s3 + $0xd0] sm:$0xff]
        %v1885 = vld [vmem:[%s3 + $0xd8] sm:$0xff]
        %v1886 = vld [vmem:[%s3 + $0xe0] sm:$0xff]
        %v1887 = vld [vmem:[%s3 + $0xe8] sm:$0xff]
        %v1888 = vld [vmem:[%s3 + $0xf0] sm:$0xff]
        %v1889 = vld [vmem:[%s3 + $0xf8] sm:$0xff]
        %v1890 = vld [vmem:[%s3 + $0x100] sm:$0xff]
        %v1891 = vld [vmem:[%s3 + $0x108] sm:$0xff]
        %v1892 = vld [vmem:[%s3 + $0x110] sm:$0xff]
        %v1893 = vld [vmem:[%s3 + $0x118] sm:$0xff]
        %v1894 = vld [vmem:[%s3 + $0x120] sm:$0xff]
        %v1895 = vld [vmem:[%s3 + $0x128] sm:$0xff]
        %v1896 = vld [vmem:[%s3 + $0x130] sm:$0xff]
        %v1897 = vld [vmem:[%s3 + $0x138] sm:$0xff]
        %v1898 = vld [vmem:[%s3 + $0x140] sm:$0xff]
        %v1899 = vld [vmem:[%s3 + $0x148] sm:$0xff]
        %v1900 = vld [vmem:[%s3 + $0x150] sm:$0xff]
        %v1901 = vld [vmem:[%s3 + $0x158] sm:$0xff]
        %v1902 = vld [vmem:[%s3 + $0x160] sm:$0xff]
        %v1903 = vld [vmem:[%s3 + $0x168] sm:$0xff]
        %v1904 = vld [vmem:[%s3 + $0x170] sm:$0xff]
        %v1905 = vld [vmem:[%s3 + $0x178] sm:$0xff]
        %v1906 = vld [vmem:[%s3 + $0x180] sm:$0xff]
        %v1907 = vld [vmem:[%s3 + $0x188] sm:$0xff]
        %v1908 = vld [vmem:[%s3 + $0x190] sm:$0xff]
        %v1909 = vld [vmem:[%s3 + $0x198] sm:$0xff]
        %v1910 = vld [vmem:[%s3 + $0x1a0] sm:$0xff]
        %v1911 = vld [vmem:[%s3 + $0x1a8] sm:$0xff]
        %v1912 = vld [vmem:[%s3 + $0x1b0] sm:$0xff]
        %v1913 = vld [vmem:[%s3 + $0x1b8] sm:$0xff]
        %v1914 = vld [vmem:[%s3 + $0x1c0] sm:$0xff]
        %v1915 = vld [vmem:[%s3 + $0x1c8] sm:$0xff]
        %v1916 = vld [vmem:[%s3 + $0x1d0] sm:$0xff]
        %v1917 = vld [vmem:[%s3 + $0x1d8] sm:$0xff]
        %v1918 = vld [vmem:[%s3 + $0x1e0] sm:$0xff]
        %v1919 = vld [vmem:[%s3 + $0x1e8] sm:$0xff]
        %v1920 = vld [vmem:[%s3 + $0x1f0] sm:$0xff]
        %v1921 = vld [vmem:[%s3 + $0x1f8] sm:$0xff]
        %v1922 = vld [vmem:[%s4] sm:$0xff]
        %v1923 = vld [vmem:[%s4 + $0x8] sm:$0xff]
        %v1924 = vld [vmem:[%s4 + $0x10] sm:$0xff]
        %v1925 = vld [vmem:[%s4 + $0x18] sm:$0xff]
        %v1926 = vld [vmem:[%s4 + $0x20] sm:$0xff]
        %v1927 = vld [vmem:[%s4 + $0x28] sm:$0xff]
        %v1928 = vld [vmem:[%s4 + $0x30] sm:$0xff]
        %v1929 = vld [vmem:[%s4 + $0x38] sm:$0xff]
        %v1930 = vld [vmem:[%s4 + $0x40] sm:$0xff]
        %v1931 = vld [vmem:[%s4 + $0x48] sm:$0xff]
        %v1932 = vld [vmem:[%s4 + $0x50] sm:$0xff]
        %v1933 = vld [vmem:[%s4 + $0x58] sm:$0xff]
        %v1934 = vld [vmem:[%s4 + $0x60] sm:$0xff]
        %v1935 = vld [vmem:[%s4 + $0x68] sm:$0xff]
        %v1936 = vld [vmem:[%s4 + $0x70] sm:$0xff]
        %v1937 = vld [vmem:[%s4 + $0x78] sm:$0xff]
        %v1938 = vld [vmem:[%s4 + $0x80] sm:$0xff]
        %v1939 = vld [vmem:[%s4 + $0x88] sm:$0xff]
        %v1940 = vld [vmem:[%s4 + $0x90] sm:$0xff]
        %v1941 = vld [vmem:[%s4 + $0x98] sm:$0xff]
        %v1942 = vld [vmem:[%s4 + $0xa0] sm:$0xff]
        %v1943 = vld [vmem:[%s4 + $0xa8] sm:$0xff]
        %v1944 = vld [vmem:[%s4 + $0xb0] sm:$0xff]
        %v1945 = vld [vmem:[%s4 + $0xb8] sm:$0xff]
        %v1946 = vld [vmem:[%s4 + $0xc0] sm:$0xff]
        %v1947 = vld [vmem:[%s4 + $0xc8] sm:$0xff]
        %v1948 = vld [vmem:[%s4 + $0xd0] sm:$0xff]
        %v1949 = vld [vmem:[%s4 + $0xd8] sm:$0xff]
        %v1950 = vld [vmem:[%s4 + $0xe0] sm:$0xff]
        %v1951 = vld [vmem:[%s4 + $0xe8] sm:$0xff]
        %v1952 = vld [vmem:[%s4 + $0xf0] sm:$0xff]
        %v1953 = vld [vmem:[%s4 + $0xf8] sm:$0xff]
        %1955 = vset.pattern.permute.xlu0 0
        %1956 = vperm.xlu0 %1955, %v1922
        %v1957 = vpop.permute.xlu0 %1956
        %1960 = vset.pattern.permute.xlu0 0
        %1961 = vperm.xlu0 %1960, %v1923
        %v1962 = vpop.permute.xlu0 %1961
        %1965 = vset.pattern.permute.xlu0 0
        %1966 = vperm.xlu0 %1965, %v1924
        %v1967 = vpop.permute.xlu0 %1966
        %1970 = vset.pattern.permute.xlu0 0
        %1971 = vperm.xlu0 %1970, %v1925
        %v1972 = vpop.permute.xlu0 %1971
        %1975 = vset.pattern.permute.xlu0 0
        %1976 = vperm.xlu0 %1975, %v1926
        %v1977 = vpop.permute.xlu0 %1976
        %1980 = vset.pattern.permute.xlu0 0
        %1981 = vperm.xlu0 %1980, %v1927
        %v1982 = vpop.permute.xlu0 %1981
        %1985 = vset.pattern.permute.xlu0 0
        %1986 = vperm.xlu0 %1985, %v1928
        %v1987 = vpop.permute.xlu0 %1986
        %1990 = vset.pattern.permute.xlu0 0
        %1991 = vperm.xlu0 %1990, %v1929
        %v1992 = vpop.permute.xlu0 %1991
        %1995 = vset.pattern.permute.xlu0 0
        %1996 = vperm.xlu0 %1995, %v1930
        %v1997 = vpop.permute.xlu0 %1996
        %2000 = vset.pattern.permute.xlu0 0
        %2001 = vperm.xlu0 %2000, %v1931
        %v2002 = vpop.permute.xlu0 %2001
        %2005 = vset.pattern.permute.xlu0 0
        %2006 = vperm.xlu0 %2005, %v1932
        %v2007 = vpop.permute.xlu0 %2006
        %2010 = vset.pattern.permute.xlu0 0
        %2011 = vperm.xlu0 %2010, %v1933
        %v2012 = vpop.permute.xlu0 %2011
        %2015 = vset.pattern.permute.xlu0 0
        %2016 = vperm.xlu0 %2015, %v1934
        %v2017 = vpop.permute.xlu0 %2016
        %2020 = vset.pattern.permute.xlu0 0
        %2021 = vperm.xlu0 %2020, %v1935
        %v2022 = vpop.permute.xlu0 %2021
        %2025 = vset.pattern.permute.xlu0 0
        %2026 = vperm.xlu0 %2025, %v1936
        %v2027 = vpop.permute.xlu0 %2026
        %2030 = vset.pattern.permute.xlu0 0
        %2031 = vperm.xlu0 %2030, %v1937
        %v2032 = vpop.permute.xlu0 %2031
        %2035 = vset.pattern.permute.xlu0 0
        %2036 = vperm.xlu0 %2035, %v1938
        %v2037 = vpop.permute.xlu0 %2036
        %2040 = vset.pattern.permute.xlu0 0
        %2041 = vperm.xlu0 %2040, %v1939
        %v2042 = vpop.permute.xlu0 %2041
        %2045 = vset.pattern.permute.xlu0 0
        %2046 = vperm.xlu0 %2045, %v1940
        %v2047 = vpop.permute.xlu0 %2046
        %2050 = vset.pattern.permute.xlu0 0
        %2051 = vperm.xlu0 %2050, %v1941
        %v2052 = vpop.permute.xlu0 %2051
        %2055 = vset.pattern.permute.xlu0 0
        %2056 = vperm.xlu0 %2055, %v1942
        %v2057 = vpop.permute.xlu0 %2056
        %2060 = vset.pattern.permute.xlu0 0
        %2061 = vperm.xlu0 %2060, %v1943
        %v2062 = vpop.permute.xlu0 %2061
        %2065 = vset.pattern.permute.xlu0 0
        %2066 = vperm.xlu0 %2065, %v1944
        %v2067 = vpop.permute.xlu0 %2066
        %2070 = vset.pattern.permute.xlu0 0
        %2071 = vperm.xlu0 %2070, %v1945
        %v2072 = vpop.permute.xlu0 %2071
        %2075 = vset.pattern.permute.xlu0 0
        %2076 = vperm.xlu0 %2075, %v1946
        %v2077 = vpop.permute.xlu0 %2076
        %2080 = vset.pattern.permute.xlu0 0
        %2081 = vperm.xlu0 %2080, %v1947
        %v2082 = vpop.permute.xlu0 %2081
        %2085 = vset.pattern.permute.xlu0 0
        %2086 = vperm.xlu0 %2085, %v1948
        %v2087 = vpop.permute.xlu0 %2086
        %2090 = vset.pattern.permute.xlu0 0
        %2091 = vperm.xlu0 %2090, %v1949
        %v2092 = vpop.permute.xlu0 %2091
        %2095 = vset.pattern.permute.xlu0 0
        %2096 = vperm.xlu0 %2095, %v1950
        %v2097 = vpop.permute.xlu0 %2096
        %2100 = vset.pattern.permute.xlu0 0
        %2101 = vperm.xlu0 %2100, %v1951
        %v2102 = vpop.permute.xlu0 %2101
        %2105 = vset.pattern.permute.xlu0 0
        %2106 = vperm.xlu0 %2105, %v1952
        %v2107 = vpop.permute.xlu0 %2106
        %2110 = vset.pattern.permute.xlu0 0
        %2111 = vperm.xlu0 %2110, %v1953
        %v2112 = vpop.permute.xlu0 %2111
        %2114 = vmatpush.msra.mxu0 %v1790
        %2115 = vmatpush.msra.mxu0 %v1786
        %2116 = vmatpush.msra.mxu0 %v1782
        %2117 = vmatpush.msra.mxu0 %v1778
        %2118 = vmatpush.msra.mxu0 %v1774
        %2119 = vmatpush.msra.mxu0 %v1770
        %2120 = vmatpush.msra.mxu0 %v1766
        %2121 = vmatpush.msra.mxu0 %v1762
        %2122 = vmatpush.msra.mxu0 %v1758
        %2123 = vmatpush.msra.mxu0 %v1754
        %2124 = vmatpush.msra.mxu0 %v1750
        %2125 = vmatpush.msra.mxu0 %v1746
        %2126 = vmatpush.msra.mxu0 %v1742
        %2127 = vmatpush.msra.mxu0 %v1738
        %2128 = vmatpush.msra.mxu0 %v1734
        %2129 = vmatpush.msra.mxu0 %v1730
        %2130 = vmatmul.f32.gmra.mxu0 %v1858
        %v2131 = vpop.f32.mrf.mxu0
        %v2132 = vadd.f32 %v1957, %v2131
        %2133 = vmatmul.f32.gmra.mxu0 %v1860
        %v2134 = vpop.f32.mrf.mxu0
        %v2135 = vadd.f32 %v1962, %v2134
        %2136 = vmatmul.f32.gmra.mxu0 %v1862
        %v2137 = vpop.f32.mrf.mxu0
        %v2138 = vadd.f32 %v1967, %v2137
        %2139 = vmatmul.f32.gmra.mxu0 %v1864
        %v2140 = vpop.f32.mrf.mxu0
        %v2141 = vadd.f32 %v1972, %v2140
        %2142 = vmatmul.f32.gmra.mxu0 %v1866
        %v2143 = vpop.f32.mrf.mxu0
        %v2144 = vadd.f32 %v1977, %v2143
        %2145 = vmatmul.f32.gmra.mxu0 %v1868
        %v2146 = vpop.f32.mrf.mxu0
        %v2147 = vadd.f32 %v1982, %v2146
        %2148 = vmatmul.f32.gmra.mxu0 %v1870
        %v2149 = vpop.f32.mrf.mxu0
        %v2150 = vadd.f32 %v1987, %v2149
        %2151 = vmatmul.f32.gmra.mxu0 %v1872
        %v2152 = vpop.f32.mrf.mxu0
        %v2153 = vadd.f32 %v1992, %v2152
        %2154 = vmatmul.f32.gmra.mxu0 %v1874
        %v2155 = vpop.f32.mrf.mxu0
        %v2156 = vadd.f32 %v1997, %v2155
        %2157 = vmatmul.f32.gmra.mxu0 %v1876
        %v2158 = vpop.f32.mrf.mxu0
        %v2159 = vadd.f32 %v2002, %v2158
        %2160 = vmatmul.f32.gmra.mxu0 %v1878
        %v2161 = vpop.f32.mrf.mxu0
        %v2162 = vadd.f32 %v2007, %v2161
        %2163 = vmatmul.f32.gmra.mxu0 %v1880
        %v2164 = vpop.f32.mrf.mxu0
        %v2165 = vadd.f32 %v2012, %v2164
        %2166 = vmatmul.f32.gmra.mxu0 %v1882
        %v2167 = vpop.f32.mrf.mxu0
        %v2168 = vadd.f32 %v2017, %v2167
        %2169 = vmatmul.f32.gmra.mxu0 %v1884
        %v2170 = vpop.f32.mrf.mxu0
        %v2171 = vadd.f32 %v2022, %v2170
        %2172 = vmatmul.f32.gmra.mxu0 %v1886
        %v2173 = vpop.f32.mrf.mxu0
        %v2174 = vadd.f32 %v2027, %v2173
        %2175 = vmatmul.f32.gmra.mxu0 %v1888
        %v2176 = vpop.f32.mrf.mxu0
        %v2177 = vadd.f32 %v2032, %v2176
        %2178 = vmatmul.f32.gmra.mxu0 %v1890
        %v2179 = vpop.f32.mrf.mxu0
        %v2180 = vadd.f32 %v2037, %v2179
        %2181 = vmatmul.f32.gmra.mxu0 %v1892
        %v2182 = vpop.f32.mrf.mxu0
        %v2183 = vadd.f32 %v2042, %v2182
        %2184 = vmatmul.f32.gmra.mxu0 %v1894
        %v2185 = vpop.f32.mrf.mxu0
        %v2186 = vadd.f32 %v2047, %v2185
        %2187 = vmatmul.f32.gmra.mxu0 %v1896
        %v2188 = vpop.f32.mrf.mxu0
        %v2189 = vadd.f32 %v2052, %v2188
        %2190 = vmatmul.f32.gmra.mxu0 %v1898
        %v2191 = vpop.f32.mrf.mxu0
        %v2192 = vadd.f32 %v2057, %v2191
        %2193 = vmatmul.f32.gmra.mxu0 %v1900
        %v2194 = vpop.f32.mrf.mxu0
        %v2195 = vadd.f32 %v2062, %v2194
        %2196 = vmatmul.f32.gmra.mxu0 %v1902
        %v2197 = vpop.f32.mrf.mxu0
        %v2198 = vadd.f32 %v2067, %v2197
        %2199 = vmatmul.f32.gmra.mxu0 %v1904
        %v2200 = vpop.f32.mrf.mxu0
        %v2201 = vadd.f32 %v2072, %v2200
        %2202 = vmatmul.f32.gmra.mxu0 %v1906
        %v2203 = vpop.f32.mrf.mxu0
        %v2204 = vadd.f32 %v2077, %v2203
        %2205 = vmatmul.f32.gmra.mxu0 %v1908
        %v2206 = vpop.f32.mrf.mxu0
        %v2207 = vadd.f32 %v2082, %v2206
        %2208 = vmatmul.f32.gmra.mxu0 %v1910
        %v2209 = vpop.f32.mrf.mxu0
        %v2210 = vadd.f32 %v2087, %v2209
        %2211 = vmatmul.f32.gmra.mxu0 %v1912
        %v2212 = vpop.f32.mrf.mxu0
        %v2213 = vadd.f32 %v2092, %v2212
        %2214 = vmatmul.f32.gmra.mxu0 %v1914
        %v2215 = vpop.f32.mrf.mxu0
        %v2216 = vadd.f32 %v2097, %v2215
        %2217 = vmatmul.f32.gmra.mxu0 %v1916
        %v2218 = vpop.f32.mrf.mxu0
        %v2219 = vadd.f32 %v2102, %v2218
        %2220 = vmatmul.f32.gmra.mxu0 %v1918
        %v2221 = vpop.f32.mrf.mxu0
        %v2222 = vadd.f32 %v2107, %v2221
        %2223 = vmatmul.f32.gmra.mxu0 %v1920
        %v2224 = vpop.f32.mrf.mxu0
        %v2225 = vadd.f32 %v2112, %v2224
        %2226 = vdwg.mxu0
        %2227 = vmatpush.msra.mxu0 %v1854
        %2228 = vmatpush.msra.mxu0 %v1850
        %2229 = vmatpush.msra.mxu0 %v1846
        %2230 = vmatpush.msra.mxu0 %v1842
        %2231 = vmatpush.msra.mxu0 %v1838
        %2232 = vmatpush.msra.mxu0 %v1834
        %2233 = vmatpush.msra.mxu0 %v1830
        %2234 = vmatpush.msra.mxu0 %v1826
        %2235 = vmatpush.msra.mxu0 %v1822
        %2236 = vmatpush.msra.mxu0 %v1818
        %2237 = vmatpush.msra.mxu0 %v1814
        %2238 = vmatpush.msra.mxu0 %v1810
        %2239 = vmatpush.msra.mxu0 %v1806
        %2240 = vmatpush.msra.mxu0 %v1802
        %2241 = vmatpush.msra.mxu0 %v1798
        %2242 = vmatpush.msra.mxu0 %v1794
        %2243 = vmatmul.f32.gmra.mxu0 %v1859
        %v2244 = vpop.f32.mrf.mxu0
        %v2245 = vadd.f32 %v2132, %v2244
        %2246 = vmatmul.f32.gmra.mxu0 %v1861
        %v2247 = vpop.f32.mrf.mxu0
        %v2248 = vadd.f32 %v2135, %v2247
        %2249 = vmatmul.f32.gmra.mxu0 %v1863
        %v2250 = vpop.f32.mrf.mxu0
        %v2251 = vadd.f32 %v2138, %v2250
        %2252 = vmatmul.f32.gmra.mxu0 %v1865
        %v2253 = vpop.f32.mrf.mxu0
        %v2254 = vadd.f32 %v2141, %v2253
        %2255 = vmatmul.f32.gmra.mxu0 %v1867
        %v2256 = vpop.f32.mrf.mxu0
        %v2257 = vadd.f32 %v2144, %v2256
        %2258 = vmatmul.f32.gmra.mxu0 %v1869
        %v2259 = vpop.f32.mrf.mxu0
        %v2260 = vadd.f32 %v2147, %v2259
        %2261 = vmatmul.f32.gmra.mxu0 %v1871
        %v2262 = vpop.f32.mrf.mxu0
        %v2263 = vadd.f32 %v2150, %v2262
        %2264 = vmatmul.f32.gmra.mxu0 %v1873
        %v2265 = vpop.f32.mrf.mxu0
        %v2266 = vadd.f32 %v2153, %v2265
        %2267 = vmatmul.f32.gmra.mxu0 %v1875
        %v2268 = vpop.f32.mrf.mxu0
        %v2269 = vadd.f32 %v2156, %v2268
        %2270 = vmatmul.f32.gmra.mxu0 %v1877
        %v2271 = vpop.f32.mrf.mxu0
        %v2272 = vadd.f32 %v2159, %v2271
        %2273 = vmatmul.f32.gmra.mxu0 %v1879
        %v2274 = vpop.f32.mrf.mxu0
        %v2275 = vadd.f32 %v2162, %v2274
        %2276 = vmatmul.f32.gmra.mxu0 %v1881
        %v2277 = vpop.f32.mrf.mxu0
        %v2278 = vadd.f32 %v2165, %v2277
        %2279 = vmatmul.f32.gmra.mxu0 %v1883
        %v2280 = vpop.f32.mrf.mxu0
        %v2281 = vadd.f32 %v2168, %v2280
        %2282 = vmatmul.f32.gmra.mxu0 %v1885
        %v2283 = vpop.f32.mrf.mxu0
        %v2284 = vadd.f32 %v2171, %v2283
        %2285 = vmatmul.f32.gmra.mxu0 %v1887
        %v2286 = vpop.f32.mrf.mxu0
        %v2287 = vadd.f32 %v2174, %v2286
        %2288 = vmatmul.f32.gmra.mxu0 %v1889
        %v2289 = vpop.f32.mrf.mxu0
        %v2290 = vadd.f32 %v2177, %v2289
        %2291 = vmatmul.f32.gmra.mxu0 %v1891
        %v2292 = vpop.f32.mrf.mxu0
        %v2293 = vadd.f32 %v2180, %v2292
        %2294 = vmatmul.f32.gmra.mxu0 %v1893
        %v2295 = vpop.f32.mrf.mxu0
        %v2296 = vadd.f32 %v2183, %v2295
        %2297 = vmatmul.f32.gmra.mxu0 %v1895
        %v2298 = vpop.f32.mrf.mxu0
        %v2299 = vadd.f32 %v2186, %v2298
        %2300 = vmatmul.f32.gmra.mxu0 %v1897
        %v2301 = vpop.f32.mrf.mxu0
        %v2302 = vadd.f32 %v2189, %v2301
        %2303 = vmatmul.f32.gmra.mxu0 %v1899
        %v2304 = vpop.f32.mrf.mxu0
        %v2305 = vadd.f32 %v2192, %v2304
        %2306 = vmatmul.f32.gmra.mxu0 %v1901
        %v2307 = vpop.f32.mrf.mxu0
        %v2308 = vadd.f32 %v2195, %v2307
        %2309 = vmatmul.f32.gmra.mxu0 %v1903
        %v2310 = vpop.f32.mrf.mxu0
        %v2311 = vadd.f32 %v2198, %v2310
        %2312 = vmatmul.f32.gmra.mxu0 %v1905
        %v2313 = vpop.f32.mrf.mxu0
        %v2314 = vadd.f32 %v2201, %v2313
        %2315 = vmatmul.f32.gmra.mxu0 %v1907
        %v2316 = vpop.f32.mrf.mxu0
        %v2317 = vadd.f32 %v2204, %v2316
        %2318 = vmatmul.f32.gmra.mxu0 %v1909
        %v2319 = vpop.f32.mrf.mxu0
        %v2320 = vadd.f32 %v2207, %v2319
        %2321 = vmatmul.f32.gmra.mxu0 %v1911
        %v2322 = vpop.f32.mrf.mxu0
        %v2323 = vadd.f32 %v2210, %v2322
        %2324 = vmatmul.f32.gmra.mxu0 %v1913
        %v2325 = vpop.f32.mrf.mxu0
        %v2326 = vadd.f32 %v2213, %v2325
        %2327 = vmatmul.f32.gmra.mxu0 %v1915
        %v2328 = vpop.f32.mrf.mxu0
        %v2329 = vadd.f32 %v2216, %v2328
        %2330 = vmatmul.f32.gmra.mxu0 %v1917
        %v2331 = vpop.f32.mrf.mxu0
        %v2332 = vadd.f32 %v2219, %v2331
        %2333 = vmatmul.f32.gmra.mxu0 %v1919
        %v2334 = vpop.f32.mrf.mxu0
        %v2335 = vadd.f32 %v2222, %v2334
        %2336 = vmatmul.f32.gmra.mxu0 %v1921
        %v2337 = vpop.f32.mrf.mxu0
        %v2338 = vadd.f32 %v2225, %v2337
        %2339 = vdwg.mxu0
        %2340 = vmatpush.msra.mxu0 %v1791
        %2341 = vmatpush.msra.mxu0 %v1787
        %2342 = vmatpush.msra.mxu0 %v1783
        %2343 = vmatpush.msra.mxu0 %v1779
        %2344 = vmatpush.msra.mxu0 %v1775
        %2345 = vmatpush.msra.mxu0 %v1771
        %2346 = vmatpush.msra.mxu0 %v1767
        %2347 = vmatpush.msra.mxu0 %v1763
        %2348 = vmatpush.msra.mxu0 %v1759
        %2349 = vmatpush.msra.mxu0 %v1755
        %2350 = vmatpush.msra.mxu0 %v1751
        %2351 = vmatpush.msra.mxu0 %v1747
        %2352 = vmatpush.msra.mxu0 %v1743
        %2353 = vmatpush.msra.mxu0 %v1739
        %2354 = vmatpush.msra.mxu0 %v1735
        %2355 = vmatpush.msra.mxu0 %v1731
        %2356 = vmatmul.f32.gmra.mxu0 %v1858
        %v2357 = vpop.f32.mrf.mxu0
        %v2358 = vadd.f32 %v1957, %v2357
        %2359 = vmatmul.f32.gmra.mxu0 %v1860
        %v2360 = vpop.f32.mrf.mxu0
        %v2361 = vadd.f32 %v1962, %v2360
        %2362 = vmatmul.f32.gmra.mxu0 %v1862
        %v2363 = vpop.f32.mrf.mxu0
        %v2364 = vadd.f32 %v1967, %v2363
        %2365 = vmatmul.f32.gmra.mxu0 %v1864
        %v2366 = vpop.f32.mrf.mxu0
        %v2367 = vadd.f32 %v1972, %v2366
        %2368 = vmatmul.f32.gmra.mxu0 %v1866
        %v2369 = vpop.f32.mrf.mxu0
        %v2370 = vadd.f32 %v1977, %v2369
        %2371 = vmatmul.f32.gmra.mxu0 %v1868
        %v2372 = vpop.f32.mrf.mxu0
        %v2373 = vadd.f32 %v1982, %v2372
        %2374 = vmatmul.f32.gmra.mxu0 %v1870
        %v2375 = vpop.f32.mrf.mxu0
        %v2376 = vadd.f32 %v1987, %v2375
        %2377 = vmatmul.f32.gmra.mxu0 %v1872
        %v2378 = vpop.f32.mrf.mxu0
        %v2379 = vadd.f32 %v1992, %v2378
        %2380 = vmatmul.f32.gmra.mxu0 %v1874
        %v2381 = vpop.f32.mrf.mxu0
        %v2382 = vadd.f32 %v1997, %v2381
        %2383 = vmatmul.f32.gmra.mxu0 %v1876
        %v2384 = vpop.f32.mrf.mxu0
        %v2385 = vadd.f32 %v2002, %v2384
        %2386 = vmatmul.f32.gmra.mxu0 %v1878
        %v2387 = vpop.f32.mrf.mxu0
        %v2388 = vadd.f32 %v2007, %v2387
        %2389 = vmatmul.f32.gmra.mxu0 %v1880
        %v2390 = vpop.f32.mrf.mxu0
        %v2391 = vadd.f32 %v2012, %v2390
        %2392 = vmatmul.f32.gmra.mxu0 %v1882
        %v2393 = vpop.f32.mrf.mxu0
        %v2394 = vadd.f32 %v2017, %v2393
        %2395 = vmatmul.f32.gmra.mxu0 %v1884
        %v2396 = vpop.f32.mrf.mxu0
        %v2397 = vadd.f32 %v2022, %v2396
        %2398 = vmatmul.f32.gmra.mxu0 %v1886
        %v2399 = vpop.f32.mrf.mxu0
        %v2400 = vadd.f32 %v2027, %v2399
        %2401 = vmatmul.f32.gmra.mxu0 %v1888
        %v2402 = vpop.f32.mrf.mxu0
        %v2403 = vadd.f32 %v2032, %v2402
        %2404 = vmatmul.f32.gmra.mxu0 %v1890
        %v2405 = vpop.f32.mrf.mxu0
        %v2406 = vadd.f32 %v2037, %v2405
        %2407 = vmatmul.f32.gmra.mxu0 %v1892
        %v2408 = vpop.f32.mrf.mxu0
        %v2409 = vadd.f32 %v2042, %v2408
        %2410 = vmatmul.f32.gmra.mxu0 %v1894
        %v2411 = vpop.f32.mrf.mxu0
        %v2412 = vadd.f32 %v2047, %v2411
        %2413 = vmatmul.f32.gmra.mxu0 %v1896
        %v2414 = vpop.f32.mrf.mxu0
        %v2415 = vadd.f32 %v2052, %v2414
        %2416 = vmatmul.f32.gmra.mxu0 %v1898
        %v2417 = vpop.f32.mrf.mxu0
        %v2418 = vadd.f32 %v2057, %v2417
        %2419 = vmatmul.f32.gmra.mxu0 %v1900
        %v2420 = vpop.f32.mrf.mxu0
        %v2421 = vadd.f32 %v2062, %v2420
        %2422 = vmatmul.f32.gmra.mxu0 %v1902
        %v2423 = vpop.f32.mrf.mxu0
        %v2424 = vadd.f32 %v2067, %v2423
        %2425 = vmatmul.f32.gmra.mxu0 %v1904
        %v2426 = vpop.f32.mrf.mxu0
        %v2427 = vadd.f32 %v2072, %v2426
        %2428 = vmatmul.f32.gmra.mxu0 %v1906
        %v2429 = vpop.f32.mrf.mxu0
        %v2430 = vadd.f32 %v2077, %v2429
        %2431 = vmatmul.f32.gmra.mxu0 %v1908
        %v2432 = vpop.f32.mrf.mxu0
        %v2433 = vadd.f32 %v2082, %v2432
        %2434 = vmatmul.f32.gmra.mxu0 %v1910
        %v2435 = vpop.f32.mrf.mxu0
        %v2436 = vadd.f32 %v2087, %v2435
        %2437 = vmatmul.f32.gmra.mxu0 %v1912
        %v2438 = vpop.f32.mrf.mxu0
        %v2439 = vadd.f32 %v2092, %v2438
        %2440 = vmatmul.f32.gmra.mxu0 %v1914
        %v2441 = vpop.f32.mrf.mxu0
        %v2442 = vadd.f32 %v2097, %v2441
        %2443 = vmatmul.f32.gmra.mxu0 %v1916
        %v2444 = vpop.f32.mrf.mxu0
        %v2445 = vadd.f32 %v2102, %v2444
        %2446 = vmatmul.f32.gmra.mxu0 %v1918
        %v2447 = vpop.f32.mrf.mxu0
        %v2448 = vadd.f32 %v2107, %v2447
        %2449 = vmatmul.f32.gmra.mxu0 %v1920
        %v2450 = vpop.f32.mrf.mxu0
        %v2451 = vadd.f32 %v2112, %v2450
        %2452 = vdwg.mxu0
        %2453 = vmatpush.msra.mxu0 %v1855
        %2454 = vmatpush.msra.mxu0 %v1851
        %2455 = vmatpush.msra.mxu0 %v1847
        %2456 = vmatpush.msra.mxu0 %v1843
        %2457 = vmatpush.msra.mxu0 %v1839
        %2458 = vmatpush.msra.mxu0 %v1835
        %2459 = vmatpush.msra.mxu0 %v1831
        %2460 = vmatpush.msra.mxu0 %v1827
        %2461 = vmatpush.msra.mxu0 %v1823
        %2462 = vmatpush.msra.mxu0 %v1819
        %2463 = vmatpush.msra.mxu0 %v1815
        %2464 = vmatpush.msra.mxu0 %v1811
        %2465 = vmatpush.msra.mxu0 %v1807
        %2466 = vmatpush.msra.mxu0 %v1803
        %2467 = vmatpush.msra.mxu0 %v1799
        %2468 = vmatpush.msra.mxu0 %v1795
        %2469 = vmatmul.f32.gmra.mxu0 %v1859
        %v2470 = vpop.f32.mrf.mxu0
        %v2471 = vadd.f32 %v2358, %v2470
        %2472 = vmatmul.f32.gmra.mxu0 %v1861
        %v2473 = vpop.f32.mrf.mxu0
        %v2474 = vadd.f32 %v2361, %v2473
        %2475 = vmatmul.f32.gmra.mxu0 %v1863
        %v2476 = vpop.f32.mrf.mxu0
        %v2477 = vadd.f32 %v2364, %v2476
        %2478 = vmatmul.f32.gmra.mxu0 %v1865
        %v2479 = vpop.f32.mrf.mxu0
        %v2480 = vadd.f32 %v2367, %v2479
        %2481 = vmatmul.f32.gmra.mxu0 %v1867
        %v2482 = vpop.f32.mrf.mxu0
        %v2483 = vadd.f32 %v2370, %v2482
        %2484 = vmatmul.f32.gmra.mxu0 %v1869
        %v2485 = vpop.f32.mrf.mxu0
        %v2486 = vadd.f32 %v2373, %v2485
        %2487 = vmatmul.f32.gmra.mxu0 %v1871
        %v2488 = vpop.f32.mrf.mxu0
        %v2489 = vadd.f32 %v2376, %v2488
        %2490 = vmatmul.f32.gmra.mxu0 %v1873
        %v2491 = vpop.f32.mrf.mxu0
        %v2492 = vadd.f32 %v2379, %v2491
        %2493 = vmatmul.f32.gmra.mxu0 %v1875
        %v2494 = vpop.f32.mrf.mxu0
        %v2495 = vadd.f32 %v2382, %v2494
        %2496 = vmatmul.f32.gmra.mxu0 %v1877
        %v2497 = vpop.f32.mrf.mxu0
        %v2498 = vadd.f32 %v2385, %v2497
        %2499 = vmatmul.f32.gmra.mxu0 %v1879
        %v2500 = vpop.f32.mrf.mxu0
        %v2501 = vadd.f32 %v2388, %v2500
        %2502 = vmatmul.f32.gmra.mxu0 %v1881
        %v2503 = vpop.f32.mrf.mxu0
        %v2504 = vadd.f32 %v2391, %v2503
        %2505 = vmatmul.f32.gmra.mxu0 %v1883
        %v2506 = vpop.f32.mrf.mxu0
        %v2507 = vadd.f32 %v2394, %v2506
        %2508 = vmatmul.f32.gmra.mxu0 %v1885
        %v2509 = vpop.f32.mrf.mxu0
        %v2510 = vadd.f32 %v2397, %v2509
        %2511 = vmatmul.f32.gmra.mxu0 %v1887
        %v2512 = vpop.f32.mrf.mxu0
        %v2513 = vadd.f32 %v2400, %v2512
        %2514 = vmatmul.f32.gmra.mxu0 %v1889
        %v2515 = vpop.f32.mrf.mxu0
        %v2516 = vadd.f32 %v2403, %v2515
        %2517 = vmatmul.f32.gmra.mxu0 %v1891
        %v2518 = vpop.f32.mrf.mxu0
        %v2519 = vadd.f32 %v2406, %v2518
        %2520 = vmatmul.f32.gmra.mxu0 %v1893
        %v2521 = vpop.f32.mrf.mxu0
        %v2522 = vadd.f32 %v2409, %v2521
        %2523 = vmatmul.f32.gmra.mxu0 %v1895
        %v2524 = vpop.f32.mrf.mxu0
        %v2525 = vadd.f32 %v2412, %v2524
        %2526 = vmatmul.f32.gmra.mxu0 %v1897
        %v2527 = vpop.f32.mrf.mxu0
        %v2528 = vadd.f32 %v2415, %v2527
        %2529 = vmatmul.f32.gmra.mxu0 %v1899
        %v2530 = vpop.f32.mrf.mxu0
        %v2531 = vadd.f32 %v2418, %v2530
        %2532 = vmatmul.f32.gmra.mxu0 %v1901
        %v2533 = vpop.f32.mrf.mxu0
        %v2534 = vadd.f32 %v2421, %v2533
        %2535 = vmatmul.f32.gmra.mxu0 %v1903
        %v2536 = vpop.f32.mrf.mxu0
        %v2537 = vadd.f32 %v2424, %v2536
        %2538 = vmatmul.f32.gmra.mxu0 %v1905
        %v2539 = vpop.f32.mrf.mxu0
        %v2540 = vadd.f32 %v2427, %v2539
        %2541 = vmatmul.f32.gmra.mxu0 %v1907
        %v2542 = vpop.f32.mrf.mxu0
        %v2543 = vadd.f32 %v2430, %v2542
        %2544 = vmatmul.f32.gmra.mxu0 %v1909
        %v2545 = vpop.f32.mrf.mxu0
        %v2546 = vadd.f32 %v2433, %v2545
        %2547 = vmatmul.f32.gmra.mxu0 %v1911
        %v2548 = vpop.f32.mrf.mxu0
        %v2549 = vadd.f32 %v2436, %v2548
        %2550 = vmatmul.f32.gmra.mxu0 %v1913
        %v2551 = vpop.f32.mrf.mxu0
        %v2552 = vadd.f32 %v2439, %v2551
        %2553 = vmatmul.f32.gmra.mxu0 %v1915
        %v2554 = vpop.f32.mrf.mxu0
        %v2555 = vadd.f32 %v2442, %v2554
        %2556 = vmatmul.f32.gmra.mxu0 %v1917
        %v2557 = vpop.f32.mrf.mxu0
        %v2558 = vadd.f32 %v2445, %v2557
        %2559 = vmatmul.f32.gmra.mxu0 %v1919
        %v2560 = vpop.f32.mrf.mxu0
        %v2561 = vadd.f32 %v2448, %v2560
        %2562 = vmatmul.f32.gmra.mxu0 %v1921
        %v2563 = vpop.f32.mrf.mxu0
        %v2564 = vadd.f32 %v2451, %v2563
        %2565 = vdwg.mxu0
        %2566 = vmatpush.msra.mxu0 %v1792
        %2567 = vmatpush.msra.mxu0 %v1788
        %2568 = vmatpush.msra.mxu0 %v1784
        %2569 = vmatpush.msra.mxu0 %v1780
        %2570 = vmatpush.msra.mxu0 %v1776
        %2571 = vmatpush.msra.mxu0 %v1772
        %2572 = vmatpush.msra.mxu0 %v1768
        %2573 = vmatpush.msra.mxu0 %v1764
        %2574 = vmatpush.msra.mxu0 %v1760
        %2575 = vmatpush.msra.mxu0 %v1756
        %2576 = vmatpush.msra.mxu0 %v1752
        %2577 = vmatpush.msra.mxu0 %v1748
        %2578 = vmatpush.msra.mxu0 %v1744
        %2579 = vmatpush.msra.mxu0 %v1740
        %2580 = vmatpush.msra.mxu0 %v1736
        %2581 = vmatpush.msra.mxu0 %v1732
        %2582 = vmatmul.f32.gmra.mxu0 %v1858
        %v2583 = vpop.f32.mrf.mxu0
        %v2584 = vadd.f32 %v1957, %v2583
        %2585 = vmatmul.f32.gmra.mxu0 %v1860
        %v2586 = vpop.f32.mrf.mxu0
        %v2587 = vadd.f32 %v1962, %v2586
        %2588 = vmatmul.f32.gmra.mxu0 %v1862
        %v2589 = vpop.f32.mrf.mxu0
        %v2590 = vadd.f32 %v1967, %v2589
        %2591 = vmatmul.f32.gmra.mxu0 %v1864
        %v2592 = vpop.f32.mrf.mxu0
        %v2593 = vadd.f32 %v1972, %v2592
        %2594 = vmatmul.f32.gmra.mxu0 %v1866
        %v2595 = vpop.f32.mrf.mxu0
        %v2596 = vadd.f32 %v1977, %v2595
        %2597 = vmatmul.f32.gmra.mxu0 %v1868
        %v2598 = vpop.f32.mrf.mxu0
        %v2599 = vadd.f32 %v1982, %v2598
        %2600 = vmatmul.f32.gmra.mxu0 %v1870
        %v2601 = vpop.f32.mrf.mxu0
        %v2602 = vadd.f32 %v1987, %v2601
        %2603 = vmatmul.f32.gmra.mxu0 %v1872
        %v2604 = vpop.f32.mrf.mxu0
        %v2605 = vadd.f32 %v1992, %v2604
        %2606 = vmatmul.f32.gmra.mxu0 %v1874
        %v2607 = vpop.f32.mrf.mxu0
        %v2608 = vadd.f32 %v1997, %v2607
        %2609 = vmatmul.f32.gmra.mxu0 %v1876
        %v2610 = vpop.f32.mrf.mxu0
        %v2611 = vadd.f32 %v2002, %v2610
        %2612 = vmatmul.f32.gmra.mxu0 %v1878
        %v2613 = vpop.f32.mrf.mxu0
        %v2614 = vadd.f32 %v2007, %v2613
        %2615 = vmatmul.f32.gmra.mxu0 %v1880
        %v2616 = vpop.f32.mrf.mxu0
        %v2617 = vadd.f32 %v2012, %v2616
        %2618 = vmatmul.f32.gmra.mxu0 %v1882
        %v2619 = vpop.f32.mrf.mxu0
        %v2620 = vadd.f32 %v2017, %v2619
        %2621 = vmatmul.f32.gmra.mxu0 %v1884
        %v2622 = vpop.f32.mrf.mxu0
        %v2623 = vadd.f32 %v2022, %v2622
        %2624 = vmatmul.f32.gmra.mxu0 %v1886
        %v2625 = vpop.f32.mrf.mxu0
        %v2626 = vadd.f32 %v2027, %v2625
        %2627 = vmatmul.f32.gmra.mxu0 %v1888
        %v2628 = vpop.f32.mrf.mxu0
        %v2629 = vadd.f32 %v2032, %v2628
        %2630 = vmatmul.f32.gmra.mxu0 %v1890
        %v2631 = vpop.f32.mrf.mxu0
        %v2632 = vadd.f32 %v2037, %v2631
        %2633 = vmatmul.f32.gmra.mxu0 %v1892
        %v2634 = vpop.f32.mrf.mxu0
        %v2635 = vadd.f32 %v2042, %v2634
        %2636 = vmatmul.f32.gmra.mxu0 %v1894
        %v2637 = vpop.f32.mrf.mxu0
        %v2638 = vadd.f32 %v2047, %v2637
        %2639 = vmatmul.f32.gmra.mxu0 %v1896
        %v2640 = vpop.f32.mrf.mxu0
        %v2641 = vadd.f32 %v2052, %v2640
        %2642 = vmatmul.f32.gmra.mxu0 %v1898
        %v2643 = vpop.f32.mrf.mxu0
        %v2644 = vadd.f32 %v2057, %v2643
        %2645 = vmatmul.f32.gmra.mxu0 %v1900
        %v2646 = vpop.f32.mrf.mxu0
        %v2647 = vadd.f32 %v2062, %v2646
        %2648 = vmatmul.f32.gmra.mxu0 %v1902
        %v2649 = vpop.f32.mrf.mxu0
        %v2650 = vadd.f32 %v2067, %v2649
        %2651 = vmatmul.f32.gmra.mxu0 %v1904
        %v2652 = vpop.f32.mrf.mxu0
        %v2653 = vadd.f32 %v2072, %v2652
        %2654 = vmatmul.f32.gmra.mxu0 %v1906
        %v2655 = vpop.f32.mrf.mxu0
        %v2656 = vadd.f32 %v2077, %v2655
        %2657 = vmatmul.f32.gmra.mxu0 %v1908
        %v2658 = vpop.f32.mrf.mxu0
        %v2659 = vadd.f32 %v2082, %v2658
        %2660 = vmatmul.f32.gmra.mxu0 %v1910
        %v2661 = vpop.f32.mrf.mxu0
        %v2662 = vadd.f32 %v2087, %v2661
        %2663 = vmatmul.f32.gmra.mxu0 %v1912
        %v2664 = vpop.f32.mrf.mxu0
        %v2665 = vadd.f32 %v2092, %v2664
        %2666 = vmatmul.f32.gmra.mxu0 %v1914
        %v2667 = vpop.f32.mrf.mxu0
        %v2668 = vadd.f32 %v2097, %v2667
        %2669 = vmatmul.f32.gmra.mxu0 %v1916
        %v2670 = vpop.f32.mrf.mxu0
        %v2671 = vadd.f32 %v2102, %v2670
        %2672 = vmatmul.f32.gmra.mxu0 %v1918
        %v2673 = vpop.f32.mrf.mxu0
        %v2674 = vadd.f32 %v2107, %v2673
        %2675 = vmatmul.f32.gmra.mxu0 %v1920
        %v2676 = vpop.f32.mrf.mxu0
        %v2677 = vadd.f32 %v2112, %v2676
        %2678 = vdwg.mxu0
        %2679 = vmatpush.msra.mxu0 %v1856
        %2680 = vmatpush.msra.mxu0 %v1852
        %2681 = vmatpush.msra.mxu0 %v1848
        %2682 = vmatpush.msra.mxu0 %v1844
        %2683 = vmatpush.msra.mxu0 %v1840
        %2684 = vmatpush.msra.mxu0 %v1836
        %2685 = vmatpush.msra.mxu0 %v1832
        %2686 = vmatpush.msra.mxu0 %v1828
        %2687 = vmatpush.msra.mxu0 %v1824
        %2688 = vmatpush.msra.mxu0 %v1820
        %2689 = vmatpush.msra.mxu0 %v1816
        %2690 = vmatpush.msra.mxu0 %v1812
        %2691 = vmatpush.msra.mxu0 %v1808
        %2692 = vmatpush.msra.mxu0 %v1804
        %2693 = vmatpush.msra.mxu0 %v1800
        %2694 = vmatpush.msra.mxu0 %v1796
        %2695 = vmatmul.f32.gmra.mxu0 %v1859
        %v2696 = vpop.f32.mrf.mxu0
        %v2697 = vadd.f32 %v2584, %v2696
        %2698 = vmatmul.f32.gmra.mxu0 %v1861
        %v2699 = vpop.f32.mrf.mxu0
        %v2700 = vadd.f32 %v2587, %v2699
        %2701 = vmatmul.f32.gmra.mxu0 %v1863
        %v2702 = vpop.f32.mrf.mxu0
        %v2703 = vadd.f32 %v2590, %v2702
        %2704 = vmatmul.f32.gmra.mxu0 %v1865
        %v2705 = vpop.f32.mrf.mxu0
        %v2706 = vadd.f32 %v2593, %v2705
        %2707 = vmatmul.f32.gmra.mxu0 %v1867
        %v2708 = vpop.f32.mrf.mxu0
        %v2709 = vadd.f32 %v2596, %v2708
        %2710 = vmatmul.f32.gmra.mxu0 %v1869
        %v2711 = vpop.f32.mrf.mxu0
        %v2712 = vadd.f32 %v2599, %v2711
        %2713 = vmatmul.f32.gmra.mxu0 %v1871
        %v2714 = vpop.f32.mrf.mxu0
        %v2715 = vadd.f32 %v2602, %v2714
        %2716 = vmatmul.f32.gmra.mxu0 %v1873
        %v2717 = vpop.f32.mrf.mxu0
        %v2718 = vadd.f32 %v2605, %v2717
        %2719 = vmatmul.f32.gmra.mxu0 %v1875
        %v2720 = vpop.f32.mrf.mxu0
        %v2721 = vadd.f32 %v2608, %v2720
        %2722 = vmatmul.f32.gmra.mxu0 %v1877
        %v2723 = vpop.f32.mrf.mxu0
        %v2724 = vadd.f32 %v2611, %v2723
        %2725 = vmatmul.f32.gmra.mxu0 %v1879
        %v2726 = vpop.f32.mrf.mxu0
        %v2727 = vadd.f32 %v2614, %v2726
        %2728 = vmatmul.f32.gmra.mxu0 %v1881
        %v2729 = vpop.f32.mrf.mxu0
        %v2730 = vadd.f32 %v2617, %v2729
        %2731 = vmatmul.f32.gmra.mxu0 %v1883
        %v2732 = vpop.f32.mrf.mxu0
        %v2733 = vadd.f32 %v2620, %v2732
        %2734 = vmatmul.f32.gmra.mxu0 %v1885
        %v2735 = vpop.f32.mrf.mxu0
        %v2736 = vadd.f32 %v2623, %v2735
        %2737 = vmatmul.f32.gmra.mxu0 %v1887
        %v2738 = vpop.f32.mrf.mxu0
        %v2739 = vadd.f32 %v2626, %v2738
        %2740 = vmatmul.f32.gmra.mxu0 %v1889
        %v2741 = vpop.f32.mrf.mxu0
        %v2742 = vadd.f32 %v2629, %v2741
        %2743 = vmatmul.f32.gmra.mxu0 %v1891
        %v2744 = vpop.f32.mrf.mxu0
        %v2745 = vadd.f32 %v2632, %v2744
        %2746 = vmatmul.f32.gmra.mxu0 %v1893
        %v2747 = vpop.f32.mrf.mxu0
        %v2748 = vadd.f32 %v2635, %v2747
        %2749 = vmatmul.f32.gmra.mxu0 %v1895
        %v2750 = vpop.f32.mrf.mxu0
        %v2751 = vadd.f32 %v2638, %v2750
        %2752 = vmatmul.f32.gmra.mxu0 %v1897
        %v2753 = vpop.f32.mrf.mxu0
        %v2754 = vadd.f32 %v2641, %v2753
        %2755 = vmatmul.f32.gmra.mxu0 %v1899
        %v2756 = vpop.f32.mrf.mxu0
        %v2757 = vadd.f32 %v2644, %v2756
        %2758 = vmatmul.f32.gmra.mxu0 %v1901
        %v2759 = vpop.f32.mrf.mxu0
        %v2760 = vadd.f32 %v2647, %v2759
        %2761 = vmatmul.f32.gmra.mxu0 %v1903
        %v2762 = vpop.f32.mrf.mxu0
        %v2763 = vadd.f32 %v2650, %v2762
        %2764 = vmatmul.f32.gmra.mxu0 %v1905
        %v2765 = vpop.f32.mrf.mxu0
        %v2766 = vadd.f32 %v2653, %v2765
        %2767 = vmatmul.f32.gmra.mxu0 %v1907
        %v2768 = vpop.f32.mrf.mxu0
        %v2769 = vadd.f32 %v2656, %v2768
        %2770 = vmatmul.f32.gmra.mxu0 %v1909
        %v2771 = vpop.f32.mrf.mxu0
        %v2772 = vadd.f32 %v2659, %v2771
        %2773 = vmatmul.f32.gmra.mxu0 %v1911
        %v2774 = vpop.f32.mrf.mxu0
        %v2775 = vadd.f32 %v2662, %v2774
        %2776 = vmatmul.f32.gmra.mxu0 %v1913
        %v2777 = vpop.f32.mrf.mxu0
        %v2778 = vadd.f32 %v2665, %v2777
        %2779 = vmatmul.f32.gmra.mxu0 %v1915
        %v2780 = vpop.f32.mrf.mxu0
        %v2781 = vadd.f32 %v2668, %v2780
        %2782 = vmatmul.f32.gmra.mxu0 %v1917
        %v2783 = vpop.f32.mrf.mxu0
        %v2784 = vadd.f32 %v2671, %v2783
        %2785 = vmatmul.f32.gmra.mxu0 %v1919
        %v2786 = vpop.f32.mrf.mxu0
        %v2787 = vadd.f32 %v2674, %v2786
        %2788 = vmatmul.f32.gmra.mxu0 %v1921
        %v2789 = vpop.f32.mrf.mxu0
        %v2790 = vadd.f32 %v2677, %v2789
        %2791 = vdwg.mxu0
        %2792 = vmatpush.msra.mxu0 %v1793
        %2793 = vmatpush.msra.mxu0 %v1789
        %2794 = vmatpush.msra.mxu0 %v1785
        %2795 = vmatpush.msra.mxu0 %v1781
        %2796 = vmatpush.msra.mxu0 %v1777
        %2797 = vmatpush.msra.mxu0 %v1773
        %2798 = vmatpush.msra.mxu0 %v1769
        %2799 = vmatpush.msra.mxu0 %v1765
        %2800 = vmatpush.msra.mxu0 %v1761
        %2801 = vmatpush.msra.mxu0 %v1757
        %2802 = vmatpush.msra.mxu0 %v1753
        %2803 = vmatpush.msra.mxu0 %v1749
        %2804 = vmatpush.msra.mxu0 %v1745
        %2805 = vmatpush.msra.mxu0 %v1741
        %2806 = vmatpush.msra.mxu0 %v1737
        %2807 = vmatpush.msra.mxu0 %v1733
        %2808 = vmatmul.f32.gmra.mxu0 %v1858
        %v2809 = vpop.f32.mrf.mxu0
        %v2810 = vadd.f32 %v1957, %v2809
        %2811 = vmatmul.f32.gmra.mxu0 %v1860
        %v2812 = vpop.f32.mrf.mxu0
        %v2813 = vadd.f32 %v1962, %v2812
        %2814 = vmatmul.f32.gmra.mxu0 %v1862
        %v2815 = vpop.f32.mrf.mxu0
        %v2816 = vadd.f32 %v1967, %v2815
        %2817 = vmatmul.f32.gmra.mxu0 %v1864
        %v2818 = vpop.f32.mrf.mxu0
        %v2819 = vadd.f32 %v1972, %v2818
        %2820 = vmatmul.f32.gmra.mxu0 %v1866
        %v2821 = vpop.f32.mrf.mxu0
        %v2822 = vadd.f32 %v1977, %v2821
        %2823 = vmatmul.f32.gmra.mxu0 %v1868
        %v2824 = vpop.f32.mrf.mxu0
        %v2825 = vadd.f32 %v1982, %v2824
        %2826 = vmatmul.f32.gmra.mxu0 %v1870
        %v2827 = vpop.f32.mrf.mxu0
        %v2828 = vadd.f32 %v1987, %v2827
        %2829 = vmatmul.f32.gmra.mxu0 %v1872
        %v2830 = vpop.f32.mrf.mxu0
        %v2831 = vadd.f32 %v1992, %v2830
        %2832 = vmatmul.f32.gmra.mxu0 %v1874
        %v2833 = vpop.f32.mrf.mxu0
        %v2834 = vadd.f32 %v1997, %v2833
        %2835 = vmatmul.f32.gmra.mxu0 %v1876
        %v2836 = vpop.f32.mrf.mxu0
        %v2837 = vadd.f32 %v2002, %v2836
        %2838 = vmatmul.f32.gmra.mxu0 %v1878
        %v2839 = vpop.f32.mrf.mxu0
        %v2840 = vadd.f32 %v2007, %v2839
        %2841 = vmatmul.f32.gmra.mxu0 %v1880
        %v2842 = vpop.f32.mrf.mxu0
        %v2843 = vadd.f32 %v2012, %v2842
        %2844 = vmatmul.f32.gmra.mxu0 %v1882
        %v2845 = vpop.f32.mrf.mxu0
        %v2846 = vadd.f32 %v2017, %v2845
        %2847 = vmatmul.f32.gmra.mxu0 %v1884
        %v2848 = vpop.f32.mrf.mxu0
        %v2849 = vadd.f32 %v2022, %v2848
        %2850 = vmatmul.f32.gmra.mxu0 %v1886
        %v2851 = vpop.f32.mrf.mxu0
        %v2852 = vadd.f32 %v2027, %v2851
        %2853 = vmatmul.f32.gmra.mxu0 %v1888
        %v2854 = vpop.f32.mrf.mxu0
        %v2855 = vadd.f32 %v2032, %v2854
        %2856 = vmatmul.f32.gmra.mxu0 %v1890
        %v2857 = vpop.f32.mrf.mxu0
        %v2858 = vadd.f32 %v2037, %v2857
        %2859 = vmatmul.f32.gmra.mxu0 %v1892
        %v2860 = vpop.f32.mrf.mxu0
        %v2861 = vadd.f32 %v2042, %v2860
        %2862 = vmatmul.f32.gmra.mxu0 %v1894
        %v2863 = vpop.f32.mrf.mxu0
        %v2864 = vadd.f32 %v2047, %v2863
        %2865 = vmatmul.f32.gmra.mxu0 %v1896
        %v2866 = vpop.f32.mrf.mxu0
        %v2867 = vadd.f32 %v2052, %v2866
        %2868 = vmatmul.f32.gmra.mxu0 %v1898
        %v2869 = vpop.f32.mrf.mxu0
        %v2870 = vadd.f32 %v2057, %v2869
        %2871 = vmatmul.f32.gmra.mxu0 %v1900
        %v2872 = vpop.f32.mrf.mxu0
        %v2873 = vadd.f32 %v2062, %v2872
        %2874 = vmatmul.f32.gmra.mxu0 %v1902
        %v2875 = vpop.f32.mrf.mxu0
        %v2876 = vadd.f32 %v2067, %v2875
        %2877 = vmatmul.f32.gmra.mxu0 %v1904
        %v2878 = vpop.f32.mrf.mxu0
        %v2879 = vadd.f32 %v2072, %v2878
        %2880 = vmatmul.f32.gmra.mxu0 %v1906
        %v2881 = vpop.f32.mrf.mxu0
        %v2882 = vadd.f32 %v2077, %v2881
        %2883 = vmatmul.f32.gmra.mxu0 %v1908
        %v2884 = vpop.f32.mrf.mxu0
        %v2885 = vadd.f32 %v2082, %v2884
        %2886 = vmatmul.f32.gmra.mxu0 %v1910
        %v2887 = vpop.f32.mrf.mxu0
        %v2888 = vadd.f32 %v2087, %v2887
        %2889 = vmatmul.f32.gmra.mxu0 %v1912
        %v2890 = vpop.f32.mrf.mxu0
        %v2891 = vadd.f32 %v2092, %v2890
        %2892 = vmatmul.f32.gmra.mxu0 %v1914
        %v2893 = vpop.f32.mrf.mxu0
        %v2894 = vadd.f32 %v2097, %v2893
        %2895 = vmatmul.f32.gmra.mxu0 %v1916
        %v2896 = vpop.f32.mrf.mxu0
        %v2897 = vadd.f32 %v2102, %v2896
        %2898 = vmatmul.f32.gmra.mxu0 %v1918
        %v2899 = vpop.f32.mrf.mxu0
        %v2900 = vadd.f32 %v2107, %v2899
        %2901 = vmatmul.f32.gmra.mxu0 %v1920
        %v2902 = vpop.f32.mrf.mxu0
        %v2903 = vadd.f32 %v2112, %v2902
        %2904 = vdwg.mxu0
        %2905 = vmatpush.msra.mxu0 %v1857
        %2906 = vmatpush.msra.mxu0 %v1853
        %2907 = vmatpush.msra.mxu0 %v1849
        %2908 = vmatpush.msra.mxu0 %v1845
        %2909 = vmatpush.msra.mxu0 %v1841
        %2910 = vmatpush.msra.mxu0 %v1837
        %2911 = vmatpush.msra.mxu0 %v1833
        %2912 = vmatpush.msra.mxu0 %v1829
        %2913 = vmatpush.msra.mxu0 %v1825
        %2914 = vmatpush.msra.mxu0 %v1821
        %2915 = vmatpush.msra.mxu0 %v1817
        %2916 = vmatpush.msra.mxu0 %v1813
        %2917 = vmatpush.msra.mxu0 %v1809
        %2918 = vmatpush.msra.mxu0 %v1805
        %2919 = vmatpush.msra.mxu0 %v1801
        %2920 = vmatpush.msra.mxu0 %v1797
        %2921 = vmatmul.f32.gmra.mxu0 %v1859
        %v2922 = vpop.f32.mrf.mxu0
        %v2923 = vadd.f32 %v2810, %v2922
        %2924 = vmatmul.f32.gmra.mxu0 %v1861
        %v2925 = vpop.f32.mrf.mxu0
        %v2926 = vadd.f32 %v2813, %v2925
        %2927 = vmatmul.f32.gmra.mxu0 %v1863
        %v2928 = vpop.f32.mrf.mxu0
        %v2929 = vadd.f32 %v2816, %v2928
        %2930 = vmatmul.f32.gmra.mxu0 %v1865
        %v2931 = vpop.f32.mrf.mxu0
        %v2932 = vadd.f32 %v2819, %v2931
        %2933 = vmatmul.f32.gmra.mxu0 %v1867
        %v2934 = vpop.f32.mrf.mxu0
        %v2935 = vadd.f32 %v2822, %v2934
        %2936 = vmatmul.f32.gmra.mxu0 %v1869
        %v2937 = vpop.f32.mrf.mxu0
        %v2938 = vadd.f32 %v2825, %v2937
        %2939 = vmatmul.f32.gmra.mxu0 %v1871
        %v2940 = vpop.f32.mrf.mxu0
        %v2941 = vadd.f32 %v2828, %v2940
        %2942 = vmatmul.f32.gmra.mxu0 %v1873
        %v2943 = vpop.f32.mrf.mxu0
        %v2944 = vadd.f32 %v2831, %v2943
        %2945 = vmatmul.f32.gmra.mxu0 %v1875
        %v2946 = vpop.f32.mrf.mxu0
        %v2947 = vadd.f32 %v2834, %v2946
        %2948 = vmatmul.f32.gmra.mxu0 %v1877
        %v2949 = vpop.f32.mrf.mxu0
        %v2950 = vadd.f32 %v2837, %v2949
        %2951 = vmatmul.f32.gmra.mxu0 %v1879
        %v2952 = vpop.f32.mrf.mxu0
        %v2953 = vadd.f32 %v2840, %v2952
        %2954 = vmatmul.f32.gmra.mxu0 %v1881
        %v2955 = vpop.f32.mrf.mxu0
        %v2956 = vadd.f32 %v2843, %v2955
        %2957 = vmatmul.f32.gmra.mxu0 %v1883
        %v2958 = vpop.f32.mrf.mxu0
        %v2959 = vadd.f32 %v2846, %v2958
        %2960 = vmatmul.f32.gmra.mxu0 %v1885
        %v2961 = vpop.f32.mrf.mxu0
        %v2962 = vadd.f32 %v2849, %v2961
        %2963 = vmatmul.f32.gmra.mxu0 %v1887
        %v2964 = vpop.f32.mrf.mxu0
        %v2965 = vadd.f32 %v2852, %v2964
        %2966 = vmatmul.f32.gmra.mxu0 %v1889
        %v2967 = vpop.f32.mrf.mxu0
        %v2968 = vadd.f32 %v2855, %v2967
        %2969 = vmatmul.f32.gmra.mxu0 %v1891
        %v2970 = vpop.f32.mrf.mxu0
        %v2971 = vadd.f32 %v2858, %v2970
        %2972 = vmatmul.f32.gmra.mxu0 %v1893
        %v2973 = vpop.f32.mrf.mxu0
        %v2974 = vadd.f32 %v2861, %v2973
        %2975 = vmatmul.f32.gmra.mxu0 %v1895
        %v2976 = vpop.f32.mrf.mxu0
        %v2977 = vadd.f32 %v2864, %v2976
        %2978 = vmatmul.f32.gmra.mxu0 %v1897
        %v2979 = vpop.f32.mrf.mxu0
        %v2980 = vadd.f32 %v2867, %v2979
        %2981 = vmatmul.f32.gmra.mxu0 %v1899
        %v2982 = vpop.f32.mrf.mxu0
        %v2983 = vadd.f32 %v2870, %v2982
        %2984 = vmatmul.f32.gmra.mxu0 %v1901
        %v2985 = vpop.f32.mrf.mxu0
        %v2986 = vadd.f32 %v2873, %v2985
        %2987 = vmatmul.f32.gmra.mxu0 %v1903
        %v2988 = vpop.f32.mrf.mxu0
        %v2989 = vadd.f32 %v2876, %v2988
        %2990 = vmatmul.f32.gmra.mxu0 %v1905
        %v2991 = vpop.f32.mrf.mxu0
        %v2992 = vadd.f32 %v2879, %v2991
        %2993 = vmatmul.f32.gmra.mxu0 %v1907
        %v2994 = vpop.f32.mrf.mxu0
        %v2995 = vadd.f32 %v2882, %v2994
        %2996 = vmatmul.f32.gmra.mxu0 %v1909
        %v2997 = vpop.f32.mrf.mxu0
        %v2998 = vadd.f32 %v2885, %v2997
        %2999 = vmatmul.f32.gmra.mxu0 %v1911
        %v3000 = vpop.f32.mrf.mxu0
        %v3001 = vadd.f32 %v2888, %v3000
        %3002 = vmatmul.f32.gmra.mxu0 %v1913
        %v3003 = vpop.f32.mrf.mxu0
        %v3004 = vadd.f32 %v2891, %v3003
        %3005 = vmatmul.f32.gmra.mxu0 %v1915
        %v3006 = vpop.f32.mrf.mxu0
        %v3007 = vadd.f32 %v2894, %v3006
        %3008 = vmatmul.f32.gmra.mxu0 %v1917
        %v3009 = vpop.f32.mrf.mxu0
        %v3010 = vadd.f32 %v2897, %v3009
        %3011 = vmatmul.f32.gmra.mxu0 %v1919
        %v3012 = vpop.f32.mrf.mxu0
        %v3013 = vadd.f32 %v2900, %v3012
        %3014 = vmatmul.f32.gmra.mxu0 %v1921
        %v3015 = vpop.f32.mrf.mxu0
        %v3016 = vadd.f32 %v2903, %v3015
        %3017 = vdwg.mxu0
        %v3018 = vmax.f32 %v2245, 0.0
        %v3019 = vmax.f32 %v2471, 0.0
        %v3020 = vmax.f32 %v2697, 0.0
        %v3021 = vmax.f32 %v2923, 0.0
        %v3022 = vmax.f32 %v2248, 0.0
        %v3023 = vmax.f32 %v2474, 0.0
        %v3024 = vmax.f32 %v2700, 0.0
        %v3025 = vmax.f32 %v2926, 0.0
        %v3026 = vmax.f32 %v2251, 0.0
        %v3027 = vmax.f32 %v2477, 0.0
        %v3028 = vmax.f32 %v2703, 0.0
        %v3029 = vmax.f32 %v2929, 0.0
        %v3030 = vmax.f32 %v2254, 0.0
        %v3031 = vmax.f32 %v2480, 0.0
        %v3032 = vmax.f32 %v2706, 0.0
        %v3033 = vmax.f32 %v2932, 0.0
        %v3034 = vmax.f32 %v2257, 0.0
        %v3035 = vmax.f32 %v2483, 0.0
        %v3036 = vmax.f32 %v2709, 0.0
        %v3037 = vmax.f32 %v2935, 0.0
        %v3038 = vmax.f32 %v2260, 0.0
        %v3039 = vmax.f32 %v2486, 0.0
        %v3040 = vmax.f32 %v2712, 0.0
        %v3041 = vmax.f32 %v2938, 0.0
        %v3042 = vmax.f32 %v2263, 0.0
        %v3043 = vmax.f32 %v2489, 0.0
        %v3044 = vmax.f32 %v2715, 0.0
        %v3045 = vmax.f32 %v2941, 0.0
        %v3046 = vmax.f32 %v2266, 0.0
        %v3047 = vmax.f32 %v2492, 0.0
        %v3048 = vmax.f32 %v2718, 0.0
        %v3049 = vmax.f32 %v2944, 0.0
        %v3050 = vmax.f32 %v2269, 0.0
        %v3051 = vmax.f32 %v2495, 0.0
        %v3052 = vmax.f32 %v2721, 0.0
        %v3053 = vmax.f32 %v2947, 0.0
        %v3054 = vmax.f32 %v2272, 0.0
        %v3055 = vmax.f32 %v2498, 0.0
        %v3056 = vmax.f32 %v2724, 0.0
        %v3057 = vmax.f32 %v2950, 0.0
        %v3058 = vmax.f32 %v2275, 0.0
        %v3059 = vmax.f32 %v2501, 0.0
        %v3060 = vmax.f32 %v2727, 0.0
        %v3061 = vmax.f32 %v2953, 0.0
        %v3062 = vmax.f32 %v2278, 0.0
        %v3063 = vmax.f32 %v2504, 0.0
        %v3064 = vmax.f32 %v2730, 0.0
        %v3065 = vmax.f32 %v2956, 0.0
        %v3066 = vmax.f32 %v2281, 0.0
        %v3067 = vmax.f32 %v2507, 0.0
        %v3068 = vmax.f32 %v2733, 0.0
        %v3069 = vmax.f32 %v2959, 0.0
        %v3070 = vmax.f32 %v2284, 0.0
        %v3071 = vmax.f32 %v2510, 0.0
        %v3072 = vmax.f32 %v2736, 0.0
        %v3073 = vmax.f32 %v2962, 0.0
        %v3074 = vmax.f32 %v2287, 0.0
        %v3075 = vmax.f32 %v2513, 0.0
        %v3076 = vmax.f32 %v2739, 0.0
        %v3077 = vmax.f32 %v2965, 0.0
        %v3078 = vmax.f32 %v2290, 0.0
        %v3079 = vmax.f32 %v2516, 0.0
        %v3080 = vmax.f32 %v2742, 0.0
        %v3081 = vmax.f32 %v2968, 0.0
        %v3082 = vmax.f32 %v2293, 0.0
        %v3083 = vmax.f32 %v2519, 0.0
        %v3084 = vmax.f32 %v2745, 0.0
        %v3085 = vmax.f32 %v2971, 0.0
        %v3086 = vmax.f32 %v2296, 0.0
        %v3087 = vmax.f32 %v2522, 0.0
        %v3088 = vmax.f32 %v2748, 0.0
        %v3089 = vmax.f32 %v2974, 0.0
        %v3090 = vmax.f32 %v2299, 0.0
        %v3091 = vmax.f32 %v2525, 0.0
        %v3092 = vmax.f32 %v2751, 0.0
        %v3093 = vmax.f32 %v2977, 0.0
        %v3094 = vmax.f32 %v2302, 0.0
        %v3095 = vmax.f32 %v2528, 0.0
        %v3096 = vmax.f32 %v2754, 0.0
        %v3097 = vmax.f32 %v2980, 0.0
        %v3098 = vmax.f32 %v2305, 0.0
        %v3099 = vmax.f32 %v2531, 0.0
        %v3100 = vmax.f32 %v2757, 0.0
        %v3101 = vmax.f32 %v2983, 0.0
        %v3102 = vmax.f32 %v2308, 0.0
        %v3103 = vmax.f32 %v2534, 0.0
        %v3104 = vmax.f32 %v2760, 0.0
        %v3105 = vmax.f32 %v2986, 0.0
        %v3106 = vmax.f32 %v2311, 0.0
        %v3107 = vmax.f32 %v2537, 0.0
        %v3108 = vmax.f32 %v2763, 0.0
        %v3109 = vmax.f32 %v2989, 0.0
        %v3110 = vmax.f32 %v2314, 0.0
        %v3111 = vmax.f32 %v2540, 0.0
        %v3112 = vmax.f32 %v2766, 0.0
        %v3113 = vmax.f32 %v2992, 0.0
        %v3114 = vmax.f32 %v2317, 0.0
        %v3115 = vmax.f32 %v2543, 0.0
        %v3116 = vmax.f32 %v2769, 0.0
        %v3117 = vmax.f32 %v2995, 0.0
        %v3118 = vmax.f32 %v2320, 0.0
        %v3119 = vmax.f32 %v2546, 0.0
        %v3120 = vmax.f32 %v2772, 0.0
        %v3121 = vmax.f32 %v2998, 0.0
        %v3122 = vmax.f32 %v2323, 0.0
        %v3123 = vmax.f32 %v2549, 0.0
        %v3124 = vmax.f32 %v2775, 0.0
        %v3125 = vmax.f32 %v3001, 0.0
        %v3126 = vmax.f32 %v2326, 0.0
        %v3127 = vmax.f32 %v2552, 0.0
        %v3128 = vmax.f32 %v2778, 0.0
        %v3129 = vmax.f32 %v3004, 0.0
        %v3130 = vmax.f32 %v2329, 0.0
        %v3131 = vmax.f32 %v2555, 0.0
        %v3132 = vmax.f32 %v2781, 0.0
        %v3133 = vmax.f32 %v3007, 0.0
        %v3134 = vmax.f32 %v2332, 0.0
        %v3135 = vmax.f32 %v2558, 0.0
        %v3136 = vmax.f32 %v2784, 0.0
        %v3137 = vmax.f32 %v3010, 0.0
        %v3138 = vmax.f32 %v2335, 0.0
        %v3139 = vmax.f32 %v2561, 0.0
        %v3140 = vmax.f32 %v2787, 0.0
        %v3141 = vmax.f32 %v3013, 0.0
        %v3142 = vmax.f32 %v2338, 0.0
        %v3143 = vmax.f32 %v2564, 0.0
        %v3144 = vmax.f32 %v2790, 0.0
        %v3145 = vmax.f32 %v3016, 0.0
        %v3146 = vld [vmem:[%s5] sm:$0xff]
        %v3147 = vld [vmem:[%s5 + $0x8] sm:$0xff]
        %v3148 = vld [vmem:[%s5 + $0x10] sm:$0xff]
        %v3149 = vld [vmem:[%s5 + $0x18] sm:$0xff]
        %v3150 = vld [vmem:[%s5 + $0x20] sm:$0xff]
        %v3151 = vld [vmem:[%s5 + $0x28] sm:$0xff]
        %v3152 = vld [vmem:[%s5 + $0x30] sm:$0xff]
        %v3153 = vld [vmem:[%s5 + $0x38] sm:$0xff]
        %v3154 = vld [vmem:[%s5 + $0x40] sm:$0xff]
        %v3155 = vld [vmem:[%s5 + $0x48] sm:$0xff]
        %v3156 = vld [vmem:[%s5 + $0x50] sm:$0xff]
        %v3157 = vld [vmem:[%s5 + $0x58] sm:$0xff]
        %v3158 = vld [vmem:[%s5 + $0x60] sm:$0xff]
        %v3159 = vld [vmem:[%s5 + $0x68] sm:$0xff]
        %v3160 = vld [vmem:[%s5 + $0x70] sm:$0xff]
        %v3161 = vld [vmem:[%s5 + $0x78] sm:$0xff]
        %v3162 = vld [vmem:[%s5 + $0x80] sm:$0xff]
        %v3163 = vld [vmem:[%s5 + $0x88] sm:$0xff]
        %v3164 = vld [vmem:[%s5 + $0x90] sm:$0xff]
        %v3165 = vld [vmem:[%s5 + $0x98] sm:$0xff]
        %v3166 = vld [vmem:[%s5 + $0xa0] sm:$0xff]
        %v3167 = vld [vmem:[%s5 + $0xa8] sm:$0xff]
        %v3168 = vld [vmem:[%s5 + $0xb0] sm:$0xff]
        %v3169 = vld [vmem:[%s5 + $0xb8] sm:$0xff]
        %v3170 = vld [vmem:[%s5 + $0xc0] sm:$0xff]
        %v3171 = vld [vmem:[%s5 + $0xc8] sm:$0xff]
        %v3172 = vld [vmem:[%s5 + $0xd0] sm:$0xff]
        %v3173 = vld [vmem:[%s5 + $0xd8] sm:$0xff]
        %v3174 = vld [vmem:[%s5 + $0xe0] sm:$0xff]
        %v3175 = vld [vmem:[%s5 + $0xe8] sm:$0xff]
        %v3176 = vld [vmem:[%s5 + $0xf0] sm:$0xff]
        %v3177 = vld [vmem:[%s5 + $0xf8] sm:$0xff]
        %3179 = vset.pattern.permute.xlu0 0
        %3180 = vperm.xlu0 %3179, %v3146
        %v3181 = vpop.permute.xlu0 %3180
        %3184 = vset.pattern.permute.xlu0 0
        %3185 = vperm.xlu0 %3184, %v3147
        %v3186 = vpop.permute.xlu0 %3185
        %3189 = vset.pattern.permute.xlu0 0
        %3190 = vperm.xlu0 %3189, %v3148
        %v3191 = vpop.permute.xlu0 %3190
        %3194 = vset.pattern.permute.xlu0 0
        %3195 = vperm.xlu0 %3194, %v3149
        %v3196 = vpop.permute.xlu0 %3195
        %3199 = vset.pattern.permute.xlu0 0
        %3200 = vperm.xlu0 %3199, %v3150
        %v3201 = vpop.permute.xlu0 %3200
        %3204 = vset.pattern.permute.xlu0 0
        %3205 = vperm.xlu0 %3204, %v3151
        %v3206 = vpop.permute.xlu0 %3205
        %3209 = vset.pattern.permute.xlu0 0
        %3210 = vperm.xlu0 %3209, %v3152
        %v3211 = vpop.permute.xlu0 %3210
        %3214 = vset.pattern.permute.xlu0 0
        %3215 = vperm.xlu0 %3214, %v3153
        %v3216 = vpop.permute.xlu0 %3215
        %3219 = vset.pattern.permute.xlu0 0
        %3220 = vperm.xlu0 %3219, %v3154
        %v3221 = vpop.permute.xlu0 %3220
        %3224 = vset.pattern.permute.xlu0 0
        %3225 = vperm.xlu0 %3224, %v3155
        %v3226 = vpop.permute.xlu0 %3225
        %3229 = vset.pattern.permute.xlu0 0
        %3230 = vperm.xlu0 %3229, %v3156
        %v3231 = vpop.permute.xlu0 %3230
        %3234 = vset.pattern.permute.xlu0 0
        %3235 = vperm.xlu0 %3234, %v3157
        %v3236 = vpop.permute.xlu0 %3235
        %3239 = vset.pattern.permute.xlu0 0
        %3240 = vperm.xlu0 %3239, %v3158
        %v3241 = vpop.permute.xlu0 %3240
        %3244 = vset.pattern.permute.xlu0 0
        %3245 = vperm.xlu0 %3244, %v3159
        %v3246 = vpop.permute.xlu0 %3245
        %3249 = vset.pattern.permute.xlu0 0
        %3250 = vperm.xlu0 %3249, %v3160
        %v3251 = vpop.permute.xlu0 %3250
        %3254 = vset.pattern.permute.xlu0 0
        %3255 = vperm.xlu0 %3254, %v3161
        %v3256 = vpop.permute.xlu0 %3255
        %3259 = vset.pattern.permute.xlu0 0
        %3260 = vperm.xlu0 %3259, %v3162
        %v3261 = vpop.permute.xlu0 %3260
        %3264 = vset.pattern.permute.xlu0 0
        %3265 = vperm.xlu0 %3264, %v3163
        %v3266 = vpop.permute.xlu0 %3265
        %3269 = vset.pattern.permute.xlu0 0
        %3270 = vperm.xlu0 %3269, %v3164
        %v3271 = vpop.permute.xlu0 %3270
        %3274 = vset.pattern.permute.xlu0 0
        %3275 = vperm.xlu0 %3274, %v3165
        %v3276 = vpop.permute.xlu0 %3275
        %3279 = vset.pattern.permute.xlu0 0
        %3280 = vperm.xlu0 %3279, %v3166
        %v3281 = vpop.permute.xlu0 %3280
        %3284 = vset.pattern.permute.xlu0 0
        %3285 = vperm.xlu0 %3284, %v3167
        %v3286 = vpop.permute.xlu0 %3285
        %3289 = vset.pattern.permute.xlu0 0
        %3290 = vperm.xlu0 %3289, %v3168
        %v3291 = vpop.permute.xlu0 %3290
        %3294 = vset.pattern.permute.xlu0 0
        %3295 = vperm.xlu0 %3294, %v3169
        %v3296 = vpop.permute.xlu0 %3295
        %3299 = vset.pattern.permute.xlu0 0
        %3300 = vperm.xlu0 %3299, %v3170
        %v3301 = vpop.permute.xlu0 %3300
        %3304 = vset.pattern.permute.xlu0 0
        %3305 = vperm.xlu0 %3304, %v3171
        %v3306 = vpop.permute.xlu0 %3305
        %3309 = vset.pattern.permute.xlu0 0
        %3310 = vperm.xlu0 %3309, %v3172
        %v3311 = vpop.permute.xlu0 %3310
        %3314 = vset.pattern.permute.xlu0 0
        %3315 = vperm.xlu0 %3314, %v3173
        %v3316 = vpop.permute.xlu0 %3315
        %3319 = vset.pattern.permute.xlu0 0
        %3320 = vperm.xlu0 %3319, %v3174
        %v3321 = vpop.permute.xlu0 %3320
        %3324 = vset.pattern.permute.xlu0 0
        %3325 = vperm.xlu0 %3324, %v3175
        %v3326 = vpop.permute.xlu0 %3325
        %3329 = vset.pattern.permute.xlu0 0
        %3330 = vperm.xlu0 %3329, %v3176
        %v3331 = vpop.permute.xlu0 %3330
        %3334 = vset.pattern.permute.xlu0 0
        %3335 = vperm.xlu0 %3334, %v3177
        %v3336 = vpop.permute.xlu0 %3335
        %v3338 = vmul.f32 %v3018, %v3181
        %v3339 = vmul.f32 %v3019, %v3181
        %v3340 = vmul.f32 %v3020, %v3181
        %v3341 = vmul.f32 %v3021, %v3181
        %v3342 = vmul.f32 %v3022, %v3186
        %v3343 = vmul.f32 %v3023, %v3186
        %v3344 = vmul.f32 %v3024, %v3186
        %v3345 = vmul.f32 %v3025, %v3186
        %v3346 = vmul.f32 %v3026, %v3191
        %v3347 = vmul.f32 %v3027, %v3191
        %v3348 = vmul.f32 %v3028, %v3191
        %v3349 = vmul.f32 %v3029, %v3191
        %v3350 = vmul.f32 %v3030, %v3196
        %v3351 = vmul.f32 %v3031, %v3196
        %v3352 = vmul.f32 %v3032, %v3196
        %v3353 = vmul.f32 %v3033, %v3196
        %v3354 = vmul.f32 %v3034, %v3201
        %v3355 = vmul.f32 %v3035, %v3201
        %v3356 = vmul.f32 %v3036, %v3201
        %v3357 = vmul.f32 %v3037, %v3201
        %v3358 = vmul.f32 %v3038, %v3206
        %v3359 = vmul.f32 %v3039, %v3206
        %v3360 = vmul.f32 %v3040, %v3206
        %v3361 = vmul.f32 %v3041, %v3206
        %v3362 = vmul.f32 %v3042, %v3211
        %v3363 = vmul.f32 %v3043, %v3211
        %v3364 = vmul.f32 %v3044, %v3211
        %v3365 = vmul.f32 %v3045, %v3211
        %v3366 = vmul.f32 %v3046, %v3216
        %v3367 = vmul.f32 %v3047, %v3216
        %v3368 = vmul.f32 %v3048, %v3216
        %v3369 = vmul.f32 %v3049, %v3216
        %v3370 = vmul.f32 %v3050, %v3221
        %v3371 = vmul.f32 %v3051, %v3221
        %v3372 = vmul.f32 %v3052, %v3221
        %v3373 = vmul.f32 %v3053, %v3221
        %v3374 = vmul.f32 %v3054, %v3226
        %v3375 = vmul.f32 %v3055, %v3226
        %v3376 = vmul.f32 %v3056, %v3226
        %v3377 = vmul.f32 %v3057, %v3226
        %v3378 = vmul.f32 %v3058, %v3231
        %v3379 = vmul.f32 %v3059, %v3231
        %v3380 = vmul.f32 %v3060, %v3231
        %v3381 = vmul.f32 %v3061, %v3231
        %v3382 = vmul.f32 %v3062, %v3236
        %v3383 = vmul.f32 %v3063, %v3236
        %v3384 = vmul.f32 %v3064, %v3236
        %v3385 = vmul.f32 %v3065, %v3236
        %v3386 = vmul.f32 %v3066, %v3241
        %v3387 = vmul.f32 %v3067, %v3241
        %v3388 = vmul.f32 %v3068, %v3241
        %v3389 = vmul.f32 %v3069, %v3241
        %v3390 = vmul.f32 %v3070, %v3246
        %v3391 = vmul.f32 %v3071, %v3246
        %v3392 = vmul.f32 %v3072, %v3246
        %v3393 = vmul.f32 %v3073, %v3246
        %v3394 = vmul.f32 %v3074, %v3251
        %v3395 = vmul.f32 %v3075, %v3251
        %v3396 = vmul.f32 %v3076, %v3251
        %v3397 = vmul.f32 %v3077, %v3251
        %v3398 = vmul.f32 %v3078, %v3256
        %v3399 = vmul.f32 %v3079, %v3256
        %v3400 = vmul.f32 %v3080, %v3256
        %v3401 = vmul.f32 %v3081, %v3256
        %v3402 = vmul.f32 %v3082, %v3261
        %v3403 = vmul.f32 %v3083, %v3261
        %v3404 = vmul.f32 %v3084, %v3261
        %v3405 = vmul.f32 %v3085, %v3261
        %v3406 = vmul.f32 %v3086, %v3266
        %v3407 = vmul.f32 %v3087, %v3266
        %v3408 = vmul.f32 %v3088, %v3266
        %v3409 = vmul.f32 %v3089, %v3266
        %v3410 = vmul.f32 %v3090, %v3271
        %v3411 = vmul.f32 %v3091, %v3271
        %v3412 = vmul.f32 %v3092, %v3271
        %v3413 = vmul.f32 %v3093, %v3271
        %v3414 = vmul.f32 %v3094, %v3276
        %v3415 = vmul.f32 %v3095, %v3276
        %v3416 = vmul.f32 %v3096, %v3276
        %v3417 = vmul.f32 %v3097, %v3276
        %v3418 = vmul.f32 %v3098, %v3281
        %v3419 = vmul.f32 %v3099, %v3281
        %v3420 = vmul.f32 %v3100, %v3281
        %v3421 = vmul.f32 %v3101, %v3281
        %v3422 = vmul.f32 %v3102, %v3286
        %v3423 = vmul.f32 %v3103, %v3286
        %v3424 = vmul.f32 %v3104, %v3286
        %v3425 = vmul.f32 %v3105, %v3286
        %v3426 = vmul.f32 %v3106, %v3291
        %v3427 = vmul.f32 %v3107, %v3291
        %v3428 = vmul.f32 %v3108, %v3291
        %v3429 = vmul.f32 %v3109, %v3291
        %v3430 = vmul.f32 %v3110, %v3296
        %v3431 = vmul.f32 %v3111, %v3296
        %v3432 = vmul.f32 %v3112, %v3296
        %v3433 = vmul.f32 %v3113, %v3296
        %v3434 = vmul.f32 %v3114, %v3301
        %v3435 = vmul.f32 %v3115, %v3301
        %v3436 = vmul.f32 %v3116, %v3301
        %v3437 = vmul.f32 %v3117, %v3301
        %v3438 = vmul.f32 %v3118, %v3306
        %v3439 = vmul.f32 %v3119, %v3306
        %v3440 = vmul.f32 %v3120, %v3306
        %v3441 = vmul.f32 %v3121, %v3306
        %v3442 = vmul.f32 %v3122, %v3311
        %v3443 = vmul.f32 %v3123, %v3311
        %v3444 = vmul.f32 %v3124, %v3311
        %v3445 = vmul.f32 %v3125, %v3311
        %v3446 = vmul.f32 %v3126, %v3316
        %v3447 = vmul.f32 %v3127, %v3316
        %v3448 = vmul.f32 %v3128, %v3316
        %v3449 = vmul.f32 %v3129, %v3316
        %v3450 = vmul.f32 %v3130, %v3321
        %v3451 = vmul.f32 %v3131, %v3321
        %v3452 = vmul.f32 %v3132, %v3321
        %v3453 = vmul.f32 %v3133, %v3321
        %v3454 = vmul.f32 %v3134, %v3326
        %v3455 = vmul.f32 %v3135, %v3326
        %v3456 = vmul.f32 %v3136, %v3326
        %v3457 = vmul.f32 %v3137, %v3326
        %v3458 = vmul.f32 %v3138, %v3331
        %v3459 = vmul.f32 %v3139, %v3331
        %v3460 = vmul.f32 %v3140, %v3331
        %v3461 = vmul.f32 %v3141, %v3331
        %v3462 = vmul.f32 %v3142, %v3336
        %v3463 = vmul.f32 %v3143, %v3336
        %v3464 = vmul.f32 %v3144, %v3336
        %v3465 = vmul.f32 %v3145, %v3336
        %v3466 = vadd.f32 %v3338, %v3342
        %v3467 = vadd.f32 %v3466, %v3346
        %v3468 = vadd.f32 %v3467, %v3350
        %v3469 = vadd.f32 %v3468, %v3354
        %v3470 = vadd.f32 %v3469, %v3358
        %v3471 = vadd.f32 %v3470, %v3362
        %v3472 = vadd.f32 %v3471, %v3366
        %v3473 = vadd.f32 %v3472, %v3370
        %v3474 = vadd.f32 %v3473, %v3374
        %v3475 = vadd.f32 %v3474, %v3378
        %v3476 = vadd.f32 %v3475, %v3382
        %v3477 = vadd.f32 %v3476, %v3386
        %v3478 = vadd.f32 %v3477, %v3390
        %v3479 = vadd.f32 %v3478, %v3394
        %v3480 = vadd.f32 %v3479, %v3398
        %v3481 = vadd.f32 %v3480, %v3402
        %v3482 = vadd.f32 %v3481, %v3406
        %v3483 = vadd.f32 %v3482, %v3410
        %v3484 = vadd.f32 %v3483, %v3414
        %v3485 = vadd.f32 %v3484, %v3418
        %v3486 = vadd.f32 %v3485, %v3422
        %v3487 = vadd.f32 %v3486, %v3426
        %v3488 = vadd.f32 %v3487, %v3430
        %v3489 = vadd.f32 %v3488, %v3434
        %v3490 = vadd.f32 %v3489, %v3438
        %v3491 = vadd.f32 %v3490, %v3442
        %v3492 = vadd.f32 %v3491, %v3446
        %v3493 = vadd.f32 %v3492, %v3450
        %v3494 = vadd.f32 %v3493, %v3454
        %v3495 = vadd.f32 %v3494, %v3458
        %v3496 = vadd.f32 %v3495, %v3462
        %v3497 = vrot.slane %v3496, 4
        %v3498 = vadd.f32 %v3496, %v3497
        %v3499 = vrot.slane %v3498, 2
        %v3500 = vadd.f32 %v3498, %v3499
        %v3501 = vrot.slane %v3500, 1
        %v3502 = vadd.f32 %v3500, %v3501
        %v3503 = vadd.f32 %v3339, %v3343
        %v3504 = vadd.f32 %v3503, %v3347
        %v3505 = vadd.f32 %v3504, %v3351
        %v3506 = vadd.f32 %v3505, %v3355
        %v3507 = vadd.f32 %v3506, %v3359
        %v3508 = vadd.f32 %v3507, %v3363
        %v3509 = vadd.f32 %v3508, %v3367
        %v3510 = vadd.f32 %v3509, %v3371
        %v3511 = vadd.f32 %v3510, %v3375
        %v3512 = vadd.f32 %v3511, %v3379
        %v3513 = vadd.f32 %v3512, %v3383
        %v3514 = vadd.f32 %v3513, %v3387
        %v3515 = vadd.f32 %v3514, %v3391
        %v3516 = vadd.f32 %v3515, %v3395
        %v3517 = vadd.f32 %v3516, %v3399
        %v3518 = vadd.f32 %v3517, %v3403
        %v3519 = vadd.f32 %v3518, %v3407
        %v3520 = vadd.f32 %v3519, %v3411
        %v3521 = vadd.f32 %v3520, %v3415
        %v3522 = vadd.f32 %v3521, %v3419
        %v3523 = vadd.f32 %v3522, %v3423
        %v3524 = vadd.f32 %v3523, %v3427
        %v3525 = vadd.f32 %v3524, %v3431
        %v3526 = vadd.f32 %v3525, %v3435
        %v3527 = vadd.f32 %v3526, %v3439
        %v3528 = vadd.f32 %v3527, %v3443
        %v3529 = vadd.f32 %v3528, %v3447
        %v3530 = vadd.f32 %v3529, %v3451
        %v3531 = vadd.f32 %v3530, %v3455
        %v3532 = vadd.f32 %v3531, %v3459
        %v3533 = vadd.f32 %v3532, %v3463
        %v3534 = vrot.slane %v3533, 4
        %v3535 = vadd.f32 %v3533, %v3534
        %v3536 = vrot.slane %v3535, 2
        %v3537 = vadd.f32 %v3535, %v3536
        %v3538 = vrot.slane %v3537, 1
        %v3539 = vadd.f32 %v3537, %v3538
        %v3540 = vadd.f32 %v3340, %v3344
        %v3541 = vadd.f32 %v3540, %v3348
        %v3542 = vadd.f32 %v3541, %v3352
        %v3543 = vadd.f32 %v3542, %v3356
        %v3544 = vadd.f32 %v3543, %v3360
        %v3545 = vadd.f32 %v3544, %v3364
        %v3546 = vadd.f32 %v3545, %v3368
        %v3547 = vadd.f32 %v3546, %v3372
        %v3548 = vadd.f32 %v3547, %v3376
        %v3549 = vadd.f32 %v3548, %v3380
        %v3550 = vadd.f32 %v3549, %v3384
        %v3551 = vadd.f32 %v3550, %v3388
        %v3552 = vadd.f32 %v3551, %v3392
        %v3553 = vadd.f32 %v3552, %v3396
        %v3554 = vadd.f32 %v3553, %v3400
        %v3555 = vadd.f32 %v3554, %v3404
        %v3556 = vadd.f32 %v3555, %v3408
        %v3557 = vadd.f32 %v3556, %v3412
        %v3558 = vadd.f32 %v3557, %v3416
        %v3559 = vadd.f32 %v3558, %v3420
        %v3560 = vadd.f32 %v3559, %v3424
        %v3561 = vadd.f32 %v3560, %v3428
        %v3562 = vadd.f32 %v3561, %v3432
        %v3563 = vadd.f32 %v3562, %v3436
        %v3564 = vadd.f32 %v3563, %v3440
        %v3565 = vadd.f32 %v3564, %v3444
        %v3566 = vadd.f32 %v3565, %v3448
        %v3567 = vadd.f32 %v3566, %v3452
        %v3568 = vadd.f32 %v3567, %v3456
        %v3569 = vadd.f32 %v3568, %v3460
        %v3570 = vadd.f32 %v3569, %v3464
        %v3571 = vrot.slane %v3570, 4
        %v3572 = vadd.f32 %v3570, %v3571
        %v3573 = vrot.slane %v3572, 2
        %v3574 = vadd.f32 %v3572, %v3573
        %v3575 = vrot.slane %v3574, 1
        %v3576 = vadd.f32 %v3574, %v3575
        %v3577 = vadd.f32 %v3341, %v3345
        %v3578 = vadd.f32 %v3577, %v3349
        %v3579 = vadd.f32 %v3578, %v3353
        %v3580 = vadd.f32 %v3579, %v3357
        %v3581 = vadd.f32 %v3580, %v3361
        %v3582 = vadd.f32 %v3581, %v3365
        %v3583 = vadd.f32 %v3582, %v3369
        %v3584 = vadd.f32 %v3583, %v3373
        %v3585 = vadd.f32 %v3584, %v3377
        %v3586 = vadd.f32 %v3585, %v3381
        %v3587 = vadd.f32 %v3586, %v3385
        %v3588 = vadd.f32 %v3587, %v3389
        %v3589 = vadd.f32 %v3588, %v3393
        %v3590 = vadd.f32 %v3589, %v3397
        %v3591 = vadd.f32 %v3590, %v3401
        %v3592 = vadd.f32 %v3591, %v3405
        %v3593 = vadd.f32 %v3592, %v3409
        %v3594 = vadd.f32 %v3593, %v3413
        %v3595 = vadd.f32 %v3594, %v3417
        %v3596 = vadd.f32 %v3595, %v3421
        %v3597 = vadd.f32 %v3596, %v3425
        %v3598 = vadd.f32 %v3597, %v3429
        %v3599 = vadd.f32 %v3598, %v3433
        %v3600 = vadd.f32 %v3599, %v3437
        %v3601 = vadd.f32 %v3600, %v3441
        %v3602 = vadd.f32 %v3601, %v3445
        %v3603 = vadd.f32 %v3602, %v3449
        %v3604 = vadd.f32 %v3603, %v3453
        %v3605 = vadd.f32 %v3604, %v3457
        %v3606 = vadd.f32 %v3605, %v3461
        %v3607 = vadd.f32 %v3606, %v3465
        %v3608 = vrot.slane %v3607, 4
        %v3609 = vadd.f32 %v3607, %v3608
        %v3610 = vrot.slane %v3609, 2
        %v3611 = vadd.f32 %v3609, %v3610
        %v3612 = vrot.slane %v3611, 1
        %v3613 = vadd.f32 %v3611, %v3612
        %v3614 = vld [vmem:[#allocation2] sm:$0x1]
        %3616 = vset.pattern.permute.xlu0 0
        %3617 = vperm.xlu0 %3616, %v3614
        %v3618 = vpop.permute.xlu0 %3617
        %v3620 = vperm.slane %v3618, 0
        %v3621 = vadd.f32 %v3502, %v3620
        %v3622 = vadd.f32 %v3539, %v3620
        %v3623 = vadd.f32 %v3576, %v3620
        %v3624 = vadd.f32 %v3613, %v3620
        %v3629 = vrot.slane %v3622, 7
        %v3630 = vrot.slane %v3623, 6
        %v3631 = vrot.slane %v3624, 5
        %vm3632 = vcmask 1040384
        %v3633 = vsel %vm3632, %v3621, %v3629
        %vm3634 = vcmask 1042434
        %v3635 = vsel %vm3634, %v3630, %v3631
        %vm3636 = vcmask 1041408
        %v3637 = vsel %vm3636, %v3633, %v3635
        %v3639 = vlaneseq
        %vm3640 = vcmp.ge.s32.totalorder %v3639, 0
        %vm3641 = vcmp.lt.s32.totalorder %v3639, 512
        %vm3642 = vmand %vm3640, %vm3641
        %3643 = vst.msk [vmem:[%s274] sm:$0xf] %vm3642, %v3637
        %s3644 = sand.u32 %s183, 1
        %s3645 = scalar_lea.sflag [#allocation4], %s3644
        %s3646 = sand.u32 %s183, 1
        %s3647 = smul.addr %s3646, 4
        %s3648 = scalar_lea.vmem [#allocation3], %s3647
        // Predicated region
        $region49: #{tpu_custom_call.1} parent=47 // pred_check
          %p3649 = pneg %p193
        $region50: #{tpu_custom_call.1} parent=47 // pred_check_branch
          %3651 = sbr.rel (%p3649) target = $region52
        $region51: #{tpu_custom_call.1} parent=47 // pred_region
          %s3652 = smul.u32 4, %s23
          %3654 = vsyncadd %s3645, 0
          %s3655 = scalar_lea.hbm %s7, %s3652
          %s3657 = sshll.u32 %s3648, 4
          %s3658 = int_to_ptr.vmem [resolvable:$true] %s3657
          %s3659 = sshll.u32 %s3655, 4
          %s3660 = int_to_ptr.hbm [resolvable:$true] %s3659
          %3662 = dma.vmem_to_hbm [thread:$0]  %s3658, 64, %s3660, %s3645
        $region52: #{tpu_custom_call.1} parent=47 // pred_fallthru
          _
      $region48: #{tpu_custom_call.1} parent=5 // pred_fallthru
        _
      %p3663 = scmp.le.s32.totalorder 2, %s18
      // Predicated region
      $region53: #{tpu_custom_call.1} parent=5 // pred_check
        %p3664 = pneg %p3663
      $region54: #{tpu_custom_call.1} parent=5 // pred_check_branch
        %3666 = sbr.rel (%p3664) target = $region56
      $region55: #{tpu_custom_call.1} parent=5 // pred_region
        %s3667 = ssub.s32 %s18, 2
        // Predicated region
        $region57: #{tpu_custom_call.1} parent=55 // pred_check
          %p3668 = pneg %p199
        $region58: #{tpu_custom_call.1} parent=55 // pred_check_branch
          %3670 = sbr.rel (%p3668) target = $region60
        $region59: #{tpu_custom_call.1} parent=55 // pred_region
          %s3671 = sand.u32 %s184, 1
          %s3672 = scalar_lea.sflag [#allocation4], %s3671
          %s3673 = sand.u32 %s184, 1
          %s3674 = smul.addr %s3673, 4
          %s3675 = scalar_lea.vmem [#allocation3], %s3674
          %3677 = dma.done %s3672, 64
        $region60: #{tpu_custom_call.1} parent=55 // pred_fallthru
          _
      $region56: #{tpu_custom_call.1} parent=5 // pred_fallthru
        _
    $region6: #{tpu_custom_call.1} parent=1 // loop_footer
      %s22 = sadd.s32 1, %s18
    $region7: #{tpu_custom_call.1} parent=1 // loop_footer_branch
      %17 = sbr.rel target = $region3
    $region8: #{tpu_custom_call.1} parent=1 // loop_exit
      _
    %3678 = vsyncpa [#allocation4], 1
    %s3679 = scalar_lea.sflag [#allocation4], 1
    %3680 = vsyncpa %s3679, 1

</llo_original>
